<compile_context>
chip_gen: v7x
topology: tpu7x:2x2x1
jax: 0.10.0
libtpu: 0.0.40
codegen_flags: <defaults>
</compile_context>

<pallas_src>
import numpy as np
import jax
import jax.numpy as jnp
from jax.experimental import pallas as pl
from jax.experimental.pallas import tpu as pltpu


# ---------------------------------------------------------------------------
# Pallas kernel
# ---------------------------------------------------------------------------
def _make_kernel(num_heads, head_dim, scale):
    C = num_heads * head_dim

    def kernel(x_ref, tq_ref, wq_ref, wkv_ref, wproj_ref,
               bq_ref, bkv_ref, bproj_ref, o_ref, acc_ref):
        def mm(a, b):
            # DEFAULT precision: bf16 multiply on the MXU, f32 accumulate.
            return jnp.dot(a, b, preferred_element_type=jnp.float32)

        x = x_ref[0].astype(jnp.float32)                  # [N, C]
        tq = tq_ref[...]                                  # [N, C] gathered task tokens

        # Projections. Attention scale is folded into q; k|v come from one dot.
        q = (mm(tq, wq_ref[...]) + bq_ref[...]) * scale   # [N, C]
        kv = mm(x, wkv_ref[...]) + bkv_ref[...]           # [N, 2C]

        for h in range(num_heads):                        # unrolled, static slices
            lo, hi = h * head_dim, (h + 1) * head_dim
            q_h = q[:, lo:hi]                             # [N, d]
            k_h = kv[:, lo:hi]                            # [N, d]
            v_h = kv[:, C + lo:C + hi]                    # [N, d]
            # q_h @ k_h^T without an explicit transpose.
            s = jax.lax.dot_general(
                q_h, k_h, (((1,), (1,)), ((), ())),
                preferred_element_type=jnp.float32)       # [N, N]
            s = s - jnp.max(s, axis=-1, keepdims=True)
            p = jnp.exp(s)
            inv = pl.reciprocal(jnp.sum(p, axis=-1, keepdims=True), approx=True)
            acc_ref[:, lo:hi] = mm(p * inv, v_h)          # [N, d] head output

        o = acc_ref[...]                                  # merged heads [N, C]
        o_ref[0] = (mm(o, wproj_ref[...]) + bproj_ref[...]).astype(o_ref.dtype)

    return kernel


# ---------------------------------------------------------------------------
# Wrapper
# ---------------------------------------------------------------------------
def attention_dec(x, H, W, params, *, num_heads=8, sr_ratio=1, qk_scale=None):
    """Pallas TPU forward of Attention_dec.

    x: [B, N, C] with N == H * W.
    params: dict with
      task_query [1, n_task, C],
      wq [C, C], wkv [C, 2C], wproj [C, C]   (pre-transposed: y = x @ W + b),
      optional bq [C], bkv [2C] (qkv_bias), bproj [C].
    """
    if sr_ratio > 1:
        # TODO(synk): Conv2d(stride=sr)+LayerNorm spatial-reduction path.
        raise NotImplementedError("sr_ratio > 1 path not implemented")

    B, N, C = x.shape
    assert N == H * W, "x sequence length must equal H*W"
    assert C % num_heads == 0
    d = C // num_heads
    scale = float(qk_scale) if qk_scale is not None else float(d) ** -0.5

    f32 = lambda a: jnp.asarray(a, jnp.float32)

    # Batch-shared task-query path: nearest interpolation over the task-token
    # axis (48 -> N) commutes with Linear_q, so gather the tokens host-side.
    tq = f32(params["task_query"]).reshape(-1, C)              # [n_task, C]
    n_task = tq.shape[0]
    idx = np.floor(np.arange(N, dtype=np.float64) * (n_task / N)).astype(np.int32)
    tq_int = tq[idx]                                           # [N, C]

    wq, wkv, wproj = f32(params["wq"]), f32(params["wkv"]), f32(params["wproj"])
    bq = f32(params.get("bq", jnp.zeros((C,), jnp.float32))).reshape(1, C)
    bkv = f32(params.get("bkv", jnp.zeros((2 * C,), jnp.float32))).reshape(1, 2 * C)
    bproj = f32(params.get("bproj", jnp.zeros((C,), jnp.float32))).reshape(1, C)

    in_specs = [
        pl.BlockSpec((1, N, C), lambda b: (b, 0, 0)),          # x: one batch / step
        pl.BlockSpec((N, C), lambda b: (0, 0)),                # gathered task tokens
        pl.BlockSpec((C, C), lambda b: (0, 0)),                # wq
        pl.BlockSpec((C, 2 * C), lambda b: (0, 0)),            # wkv
        pl.BlockSpec((C, C), lambda b: (0, 0)),                # wproj
        pl.BlockSpec((1, C), lambda b: (0, 0)),                # bq
        pl.BlockSpec((1, 2 * C), lambda b: (0, 0)),            # bkv
        pl.BlockSpec((1, C), lambda b: (0, 0)),                # bproj
    ]

    return pl.pallas_call(
        _make_kernel(num_heads, d, scale),
        out_shape=jax.ShapeDtypeStruct((B, N, C), x.dtype),
        grid=(B,),
        in_specs=in_specs,
        out_specs=pl.BlockSpec((1, N, C), lambda b: (b, 0, 0)),
        scratch_shapes=[pltpu.VMEM((N, C), jnp.float32)],
        compiler_params=pltpu.CompilerParams(
            dimension_semantics=("parallel",)),                # megacore on v7x
    )(x, tq_int, wq, wkv, wproj, bq, bkv, bproj)


# ---------------------------------------------------------------------------
# Pure numpy (float64) reference in the original torch op order
# ---------------------------------------------------------------------------
def _reference_numpy(x, task_query, wq, wkv, wproj, bq, bkv, bproj,
                     num_heads, qk_scale=None):
    x = np.asarray(x, np.float64)
    B, N, C = x.shape
    d = C // num_heads
    scale = qk_scale if qk_scale is not None else d ** -0.5

    tq = np.asarray(task_query, np.float64).reshape(-1, C)     # [48, C]
    q_lin = tq @ np.asarray(wq, np.float64) + np.asarray(bq, np.float64)
    n_task = tq.shape[0]
    # F.interpolate(mode='nearest') per head over the token dim == token gather.
    idx = np.floor(np.arange(N, dtype=np.float64) * (n_task / N)).astype(np.int64)
    q_int = q_lin[idx]                                         # [N, C]

    out = np.zeros((B, N, C))
    for b in range(B):
        kv = x[b] @ np.asarray(wkv, np.float64) + np.asarray(bkv, np.float64)
        k, v = kv[:, :C], kv[:, C:]
        o = np.zeros((N, C))
        for h in range(num_heads):
            lo, hi = h * d, (h + 1) * d
            s = (q_int[:, lo:hi] @ k[:, lo:hi].T) * scale
            s = s - s.max(-1, keepdims=True)
            p = np.exp(s)
            o[:, lo:hi] = (p / p.sum(-1, keepdims=True)) @ v[:, lo:hi]
        out[b] = o @ np.asarray(wproj, np.float64) + np.asarray(bproj, np.float64)
    return out


if __name__ == "__main__":
    key = jax.random.PRNGKey(0)
    B, H, W = 2, 8, 8
    N = H * W                        # 64 tokens
    C, num_heads = 64, 8             # head_dim = 8
    n_task = 48                      # Attention_dec.task_query is [1, 48, dim]

    ks = jax.random.split(key, 6)
    w_std = 1.0 / np.sqrt(C)
    x = jax.random.normal(ks[0], (B, N, C), jnp.float32)
    params = dict(
        task_query=jax.random.normal(ks[1], (1, n_task, C), jnp.float32),
        wq=jax.random.normal(ks[2], (C, C), jnp.float32) * w_std,
        wkv=jax.random.normal(ks[3], (C, 2 * C), jnp.float32) * w_std,
        wproj=jax.random.normal(ks[4], (C, C), jnp.float32) * w_std,
        bproj=jax.random.normal(ks[5], (C,), jnp.float32) * 0.02,
    )  # qkv_bias=False (module default): no bq / bkv

    out = jax.block_until_ready(
        attention_dec(x, H, W, params, num_heads=num_heads))
    assert out.shape == (B, N, C) and out.dtype == x.dtype

    ref = _reference_numpy(
        np.asarray(x), np.asarray(params["task_query"]),
        np.asarray(params["wq"]), np.asarray(params["wkv"]),
        np.asarray(params["wproj"]),
        np.zeros((C,)), np.zeros((2 * C,)), np.asarray(params["bproj"]),
        num_heads)
    err = np.abs(np.asarray(out, np.float64) - ref).max()
    # DEFAULT MXU precision (bf16 multiply, f32 accumulate) + approx reciprocal.
    assert err < 2e-2, f"max abs err vs reference: {err}"

    print("KERNEL_OK")
</pallas_src>

<mosaic_0001>
module attributes {stable_mosaic.version = 11 : i64} {
  func.func @kernel(%arg0: i32, %arg1: memref<1x64x64xf32, #tpu.memory_space<vmem>>, %arg2: memref<64x64xf32, #tpu.memory_space<vmem>>, %arg3: memref<64x64xf32, #tpu.memory_space<vmem>>, %arg4: memref<64x128xf32, #tpu.memory_space<vmem>>, %arg5: memref<64x64xf32, #tpu.memory_space<vmem>>, %arg6: memref<1x64xf32, #tpu.memory_space<vmem>>, %arg7: memref<1x128xf32, #tpu.memory_space<vmem>>, %arg8: memref<1x64xf32, #tpu.memory_space<vmem>>, %arg9: memref<1x64x64xf32, #tpu.memory_space<vmem>>, %arg10: memref<64x64xf32, #tpu.memory_space<vmem>>) attributes {dimension_semantics = [#tpu.dimension_semantics<parallel>], iteration_bounds = array<i64: 2>, scalar_prefetch = 0 : i64, scratch_operands = 1 : i64, tpu.core_type = #tpu.core_type<tc>, window_params = [{transform_indices = @transform_0, window_bounds = array<i64: 1, 64, 64>}, {pipeline_mode = #tpu.pipeline_mode<synchronous>, transform_indices = @transform_1, window_bounds = array<i64: 64, 64>}, {pipeline_mode = #tpu.pipeline_mode<synchronous>, transform_indices = @transform_2, window_bounds = array<i64: 64, 64>}, {pipeline_mode = #tpu.pipeline_mode<synchronous>, transform_indices = @transform_3, window_bounds = array<i64: 64, 128>}, {pipeline_mode = #tpu.pipeline_mode<synchronous>, transform_indices = @transform_4, window_bounds = array<i64: 64, 64>}, {pipeline_mode = #tpu.pipeline_mode<synchronous>, transform_indices = @transform_5, window_bounds = array<i64: 1, 64>}, {pipeline_mode = #tpu.pipeline_mode<synchronous>, transform_indices = @transform_6, window_bounds = array<i64: 1, 128>}, {pipeline_mode = #tpu.pipeline_mode<synchronous>, transform_indices = @transform_7, window_bounds = array<i64: 1, 64>}, {transform_indices = @transform_8, window_bounds = array<i64: 1, 64, 64>}]} {
    %c0 = arith.constant 0 : index
    %c0_0 = arith.constant 0 : index
    %c0_1 = arith.constant 0 : index
    %0 = vector.load %arg1[%c0, %c0_0, %c0_1] : memref<1x64x64xf32, #tpu.memory_space<vmem>>, vector<1x64x64xf32>
    %1 = vector.shape_cast %0 : vector<1x64x64xf32> to vector<64x64xf32>
    %c0_2 = arith.constant 0 : index
    %c0_3 = arith.constant 0 : index
    %2 = vector.load %arg2[%c0_2, %c0_3] : memref<64x64xf32, #tpu.memory_space<vmem>>, vector<64x64xf32>
    %c0_4 = arith.constant 0 : index
    %c0_5 = arith.constant 0 : index
    %3 = vector.load %arg3[%c0_4, %c0_5] : memref<64x64xf32, #tpu.memory_space<vmem>>, vector<64x64xf32>
    %cst = arith.constant dense<0.000000e+00> : vector<64x64xf32>
    %4 = tpu.matmul %2, %3, %cst {dimension_numbers = #tpu.dot_dimension_numbers<[1], [0], [0], [1], [0, 0, 1, 1], [], []>} : vector<64x64xf32>, vector<64x64xf32>, vector<64x64xf32> -> vector<64x64xf32>
    %c0_6 = arith.constant 0 : index
    %c0_7 = arith.constant 0 : index
    %5 = vector.load %arg6[%c0_6, %c0_7] : memref<1x64xf32, #tpu.memory_space<vmem>>, vector<1x64xf32>
    %6 = vector.broadcast %5 : vector<1x64xf32> to vector<64x64xf32>
    %7 = arith.addf %4, %6 : vector<64x64xf32>
    %cst_8 = arith.constant 0.353553385 : f32
    %8 = vector.broadcast %cst_8 : f32 to vector<64x64xf32>
    %9 = arith.mulf %7, %8 : vector<64x64xf32>
    %c0_9 = arith.constant 0 : index
    %c0_10 = arith.constant 0 : index
    %10 = vector.load %arg4[%c0_9, %c0_10] : memref<64x128xf32, #tpu.memory_space<vmem>>, vector<64x128xf32>
    %cst_11 = arith.constant dense<0.000000e+00> : vector<64x128xf32>
    %11 = tpu.matmul %1, %10, %cst_11 {dimension_numbers = #tpu.dot_dimension_numbers<[1], [0], [0], [1], [0, 0, 1, 1], [], []>} : vector<64x64xf32>, vector<64x128xf32>, vector<64x128xf32> -> vector<64x128xf32>
    %c0_12 = arith.constant 0 : index
    %c0_13 = arith.constant 0 : index
    %12 = vector.load %arg7[%c0_12, %c0_13] : memref<1x128xf32, #tpu.memory_space<vmem>>, vector<1x128xf32>
    %13 = vector.broadcast %12 : vector<1x128xf32> to vector<64x128xf32>
    %14 = arith.addf %11, %13 : vector<64x128xf32>
    %15 = vector.extract_strided_slice %9 {offsets = [0, 0], sizes = [64, 8], strides = [1, 1]} : vector<64x64xf32> to vector<64x8xf32>
    %16 = vector.extract_strided_slice %14 {offsets = [0, 0], sizes = [64, 8], strides = [1, 1]} : vector<64x128xf32> to vector<64x8xf32>
    %17 = vector.extract_strided_slice %14 {offsets = [0, 64], sizes = [64, 8], strides = [1, 1]} : vector<64x128xf32> to vector<64x8xf32>
    %cst_14 = arith.constant dense<0.000000e+00> : vector<64x64xf32>
    %18 = tpu.matmul %15, %16, %cst_14 {dimension_numbers = #tpu.dot_dimension_numbers<[1], [1], [0], [0], [0, 0, 1, 0], [], []>} : vector<64x8xf32>, vector<64x8xf32>, vector<64x64xf32> -> vector<64x64xf32>
    %cst_15 = arith.constant dense<0xFF800000> : vector<64xf32>
    %19 = vector.multi_reduction <maximumf>, %18, %cst_15 [1] : vector<64x64xf32> to vector<64xf32>
    %20 = vector.shape_cast %19 : vector<64xf32> to vector<64x1xf32>
    %21 = vector.broadcast %20 : vector<64x1xf32> to vector<64x64xf32>
    %22 = arith.subf %18, %21 : vector<64x64xf32>
    %23 = math.exp %22 : vector<64x64xf32>
    %cst_16 = arith.constant dense<0.000000e+00> : vector<64xf32>
    %24 = vector.multi_reduction <add>, %23, %cst_16 [1] : vector<64x64xf32> to vector<64xf32>
    %25 = vector.shape_cast %24 : vector<64xf32> to vector<64x1xf32>
    %26 = tpu.reciprocal %25 {approx = true} : vector<64x1xf32> -> vector<64x1xf32>
    %27 = vector.broadcast %26 : vector<64x1xf32> to vector<64x64xf32>
    %28 = arith.mulf %23, %27 : vector<64x64xf32>
    %cst_17 = arith.constant dense<0.000000e+00> : vector<64x8xf32>
    %29 = tpu.matmul %28, %17, %cst_17 {dimension_numbers = #tpu.dot_dimension_numbers<[1], [0], [0], [1], [0, 0, 1, 1], [], []>} : vector<64x64xf32>, vector<64x8xf32>, vector<64x8xf32> -> vector<64x8xf32>
    %c0_18 = arith.constant 0 : index
    %c0_19 = arith.constant 0 : index
    %30 = vector.load %arg10[%c0_18, %c0_19] : memref<64x64xf32, #tpu.memory_space<vmem>>, vector<64x8xf32>
    tpu.vector_store %arg10[%c0_18, %c0_19], %29 {strides = array<i32>} : memref<64x64xf32, #tpu.memory_space<vmem>>, vector<64x8xf32>,
    %31 = vector.extract_strided_slice %9 {offsets = [0, 8], sizes = [64, 8], strides = [1, 1]} : vector<64x64xf32> to vector<64x8xf32>
    %32 = vector.extract_strided_slice %14 {offsets = [0, 8], sizes = [64, 8], strides = [1, 1]} : vector<64x128xf32> to vector<64x8xf32>
    %33 = vector.extract_strided_slice %14 {offsets = [0, 72], sizes = [64, 8], strides = [1, 1]} : vector<64x128xf32> to vector<64x8xf32>
    %cst_20 = arith.constant dense<0.000000e+00> : vector<64x64xf32>
    %34 = tpu.matmul %31, %32, %cst_20 {dimension_numbers = #tpu.dot_dimension_numbers<[1], [1], [0], [0], [0, 0, 1, 0], [], []>} : vector<64x8xf32>, vector<64x8xf32>, vector<64x64xf32> -> vector<64x64xf32>
    %cst_21 = arith.constant dense<0xFF800000> : vector<64xf32>
    %35 = vector.multi_reduction <maximumf>, %34, %cst_21 [1] : vector<64x64xf32> to vector<64xf32>
    %36 = vector.shape_cast %35 : vector<64xf32> to vector<64x1xf32>
    %37 = vector.broadcast %36 : vector<64x1xf32> to vector<64x64xf32>
    %38 = arith.subf %34, %37 : vector<64x64xf32>
    %39 = math.exp %38 : vector<64x64xf32>
    %cst_22 = arith.constant dense<0.000000e+00> : vector<64xf32>
    %40 = vector.multi_reduction <add>, %39, %cst_22 [1] : vector<64x64xf32> to vector<64xf32>
    %41 = vector.shape_cast %40 : vector<64xf32> to vector<64x1xf32>
    %42 = tpu.reciprocal %41 {approx = true} : vector<64x1xf32> -> vector<64x1xf32>
    %43 = vector.broadcast %42 : vector<64x1xf32> to vector<64x64xf32>
    %44 = arith.mulf %39, %43 : vector<64x64xf32>
    %cst_23 = arith.constant dense<0.000000e+00> : vector<64x8xf32>
    %45 = tpu.matmul %44, %33, %cst_23 {dimension_numbers = #tpu.dot_dimension_numbers<[1], [0], [0], [1], [0, 0, 1, 1], [], []>} : vector<64x64xf32>, vector<64x8xf32>, vector<64x8xf32> -> vector<64x8xf32>
    %c0_24 = arith.constant 0 : index
    %c8 = arith.constant 8 : index
    %46 = vector.load %arg10[%c0_24, %c8] : memref<64x64xf32, #tpu.memory_space<vmem>>, vector<64x8xf32>
    tpu.vector_store %arg10[%c0_24, %c8], %45 {strides = array<i32>} : memref<64x64xf32, #tpu.memory_space<vmem>>, vector<64x8xf32>,
    %47 = vector.extract_strided_slice %9 {offsets = [0, 16], sizes = [64, 8], strides = [1, 1]} : vector<64x64xf32> to vector<64x8xf32>
    %48 = vector.extract_strided_slice %14 {offsets = [0, 16], sizes = [64, 8], strides = [1, 1]} : vector<64x128xf32> to vector<64x8xf32>
    %49 = vector.extract_strided_slice %14 {offsets = [0, 80], sizes = [64, 8], strides = [1, 1]} : vector<64x128xf32> to vector<64x8xf32>
    %cst_25 = arith.constant dense<0.000000e+00> : vector<64x64xf32>
    %50 = tpu.matmul %47, %48, %cst_25 {dimension_numbers = #tpu.dot_dimension_numbers<[1], [1], [0], [0], [0, 0, 1, 0], [], []>} : vector<64x8xf32>, vector<64x8xf32>, vector<64x64xf32> -> vector<64x64xf32>
    %cst_26 = arith.constant dense<0xFF800000> : vector<64xf32>
    %51 = vector.multi_reduction <maximumf>, %50, %cst_26 [1] : vector<64x64xf32> to vector<64xf32>
    %52 = vector.shape_cast %51 : vector<64xf32> to vector<64x1xf32>
    %53 = vector.broadcast %52 : vector<64x1xf32> to vector<64x64xf32>
    %54 = arith.subf %50, %53 : vector<64x64xf32>
    %55 = math.exp %54 : vector<64x64xf32>
    %cst_27 = arith.constant dense<0.000000e+00> : vector<64xf32>
    %56 = vector.multi_reduction <add>, %55, %cst_27 [1] : vector<64x64xf32> to vector<64xf32>
    %57 = vector.shape_cast %56 : vector<64xf32> to vector<64x1xf32>
    %58 = tpu.reciprocal %57 {approx = true} : vector<64x1xf32> -> vector<64x1xf32>
    %59 = vector.broadcast %58 : vector<64x1xf32> to vector<64x64xf32>
    %60 = arith.mulf %55, %59 : vector<64x64xf32>
    %cst_28 = arith.constant dense<0.000000e+00> : vector<64x8xf32>
    %61 = tpu.matmul %60, %49, %cst_28 {dimension_numbers = #tpu.dot_dimension_numbers<[1], [0], [0], [1], [0, 0, 1, 1], [], []>} : vector<64x64xf32>, vector<64x8xf32>, vector<64x8xf32> -> vector<64x8xf32>
    %c0_29 = arith.constant 0 : index
    %c16 = arith.constant 16 : index
    %62 = vector.load %arg10[%c0_29, %c16] : memref<64x64xf32, #tpu.memory_space<vmem>>, vector<64x8xf32>
    tpu.vector_store %arg10[%c0_29, %c16], %61 {strides = array<i32>} : memref<64x64xf32, #tpu.memory_space<vmem>>, vector<64x8xf32>,
    %63 = vector.extract_strided_slice %9 {offsets = [0, 24], sizes = [64, 8], strides = [1, 1]} : vector<64x64xf32> to vector<64x8xf32>
    %64 = vector.extract_strided_slice %14 {offsets = [0, 24], sizes = [64, 8], strides = [1, 1]} : vector<64x128xf32> to vector<64x8xf32>
    %65 = vector.extract_strided_slice %14 {offsets = [0, 88], sizes = [64, 8], strides = [1, 1]} : vector<64x128xf32> to vector<64x8xf32>
    %cst_30 = arith.constant dense<0.000000e+00> : vector<64x64xf32>
    %66 = tpu.matmul %63, %64, %cst_30 {dimension_numbers = #tpu.dot_dimension_numbers<[1], [1], [0], [0], [0, 0, 1, 0], [], []>} : vector<64x8xf32>, vector<64x8xf32>, vector<64x64xf32> -> vector<64x64xf32>
    %cst_31 = arith.constant dense<0xFF800000> : vector<64xf32>
    %67 = vector.multi_reduction <maximumf>, %66, %cst_31 [1] : vector<64x64xf32> to vector<64xf32>
    %68 = vector.shape_cast %67 : vector<64xf32> to vector<64x1xf32>
    %69 = vector.broadcast %68 : vector<64x1xf32> to vector<64x64xf32>
    %70 = arith.subf %66, %69 : vector<64x64xf32>
    %71 = math.exp %70 : vector<64x64xf32>
    %cst_32 = arith.constant dense<0.000000e+00> : vector<64xf32>
    %72 = vector.multi_reduction <add>, %71, %cst_32 [1] : vector<64x64xf32> to vector<64xf32>
    %73 = vector.shape_cast %72 : vector<64xf32> to vector<64x1xf32>
    %74 = tpu.reciprocal %73 {approx = true} : vector<64x1xf32> -> vector<64x1xf32>
    %75 = vector.broadcast %74 : vector<64x1xf32> to vector<64x64xf32>
    %76 = arith.mulf %71, %75 : vector<64x64xf32>
    %cst_33 = arith.constant dense<0.000000e+00> : vector<64x8xf32>
    %77 = tpu.matmul %76, %65, %cst_33 {dimension_numbers = #tpu.dot_dimension_numbers<[1], [0], [0], [1], [0, 0, 1, 1], [], []>} : vector<64x64xf32>, vector<64x8xf32>, vector<64x8xf32> -> vector<64x8xf32>
    %c0_34 = arith.constant 0 : index
    %c24 = arith.constant 24 : index
    %78 = vector.load %arg10[%c0_34, %c24] : memref<64x64xf32, #tpu.memory_space<vmem>>, vector<64x8xf32>
    tpu.vector_store %arg10[%c0_34, %c24], %77 {strides = array<i32>} : memref<64x64xf32, #tpu.memory_space<vmem>>, vector<64x8xf32>,
    %79 = vector.extract_strided_slice %9 {offsets = [0, 32], sizes = [64, 8], strides = [1, 1]} : vector<64x64xf32> to vector<64x8xf32>
    %80 = vector.extract_strided_slice %14 {offsets = [0, 32], sizes = [64, 8], strides = [1, 1]} : vector<64x128xf32> to vector<64x8xf32>
    %81 = vector.extract_strided_slice %14 {offsets = [0, 96], sizes = [64, 8], strides = [1, 1]} : vector<64x128xf32> to vector<64x8xf32>
    %cst_35 = arith.constant dense<0.000000e+00> : vector<64x64xf32>
    %82 = tpu.matmul %79, %80, %cst_35 {dimension_numbers = #tpu.dot_dimension_numbers<[1], [1], [0], [0], [0, 0, 1, 0], [], []>} : vector<64x8xf32>, vector<64x8xf32>, vector<64x64xf32> -> vector<64x64xf32>
    %cst_36 = arith.constant dense<0xFF800000> : vector<64xf32>
    %83 = vector.multi_reduction <maximumf>, %82, %cst_36 [1] : vector<64x64xf32> to vector<64xf32>
    %84 = vector.shape_cast %83 : vector<64xf32> to vector<64x1xf32>
    %85 = vector.broadcast %84 : vector<64x1xf32> to vector<64x64xf32>
    %86 = arith.subf %82, %85 : vector<64x64xf32>
    %87 = math.exp %86 : vector<64x64xf32>
    %cst_37 = arith.constant dense<0.000000e+00> : vector<64xf32>
    %88 = vector.multi_reduction <add>, %87, %cst_37 [1] : vector<64x64xf32> to vector<64xf32>
    %89 = vector.shape_cast %88 : vector<64xf32> to vector<64x1xf32>
    %90 = tpu.reciprocal %89 {approx = true} : vector<64x1xf32> -> vector<64x1xf32>
    %91 = vector.broadcast %90 : vector<64x1xf32> to vector<64x64xf32>
    %92 = arith.mulf %87, %91 : vector<64x64xf32>
    %cst_38 = arith.constant dense<0.000000e+00> : vector<64x8xf32>
    %93 = tpu.matmul %92, %81, %cst_38 {dimension_numbers = #tpu.dot_dimension_numbers<[1], [0], [0], [1], [0, 0, 1, 1], [], []>} : vector<64x64xf32>, vector<64x8xf32>, vector<64x8xf32> -> vector<64x8xf32>
    %c0_39 = arith.constant 0 : index
    %c32 = arith.constant 32 : index
    %94 = vector.load %arg10[%c0_39, %c32] : memref<64x64xf32, #tpu.memory_space<vmem>>, vector<64x8xf32>
    tpu.vector_store %arg10[%c0_39, %c32], %93 {strides = array<i32>} : memref<64x64xf32, #tpu.memory_space<vmem>>, vector<64x8xf32>,
    %95 = vector.extract_strided_slice %9 {offsets = [0, 40], sizes = [64, 8], strides = [1, 1]} : vector<64x64xf32> to vector<64x8xf32>
    %96 = vector.extract_strided_slice %14 {offsets = [0, 40], sizes = [64, 8], strides = [1, 1]} : vector<64x128xf32> to vector<64x8xf32>
    %97 = vector.extract_strided_slice %14 {offsets = [0, 104], sizes = [64, 8], strides = [1, 1]} : vector<64x128xf32> to vector<64x8xf32>
    %cst_40 = arith.constant dense<0.000000e+00> : vector<64x64xf32>
    %98 = tpu.matmul %95, %96, %cst_40 {dimension_numbers = #tpu.dot_dimension_numbers<[1], [1], [0], [0], [0, 0, 1, 0], [], []>} : vector<64x8xf32>, vector<64x8xf32>, vector<64x64xf32> -> vector<64x64xf32>
    %cst_41 = arith.constant dense<0xFF800000> : vector<64xf32>
    %99 = vector.multi_reduction <maximumf>, %98, %cst_41 [1] : vector<64x64xf32> to vector<64xf32>
    %100 = vector.shape_cast %99 : vector<64xf32> to vector<64x1xf32>
    %101 = vector.broadcast %100 : vector<64x1xf32> to vector<64x64xf32>
    %102 = arith.subf %98, %101 : vector<64x64xf32>
    %103 = math.exp %102 : vector<64x64xf32>
    %cst_42 = arith.constant dense<0.000000e+00> : vector<64xf32>
    %104 = vector.multi_reduction <add>, %103, %cst_42 [1] : vector<64x64xf32> to vector<64xf32>
    %105 = vector.shape_cast %104 : vector<64xf32> to vector<64x1xf32>
    %106 = tpu.reciprocal %105 {approx = true} : vector<64x1xf32> -> vector<64x1xf32>
    %107 = vector.broadcast %106 : vector<64x1xf32> to vector<64x64xf32>
    %108 = arith.mulf %103, %107 : vector<64x64xf32>
    %cst_43 = arith.constant dense<0.000000e+00> : vector<64x8xf32>
    %109 = tpu.matmul %108, %97, %cst_43 {dimension_numbers = #tpu.dot_dimension_numbers<[1], [0], [0], [1], [0, 0, 1, 1], [], []>} : vector<64x64xf32>, vector<64x8xf32>, vector<64x8xf32> -> vector<64x8xf32>
    %c0_44 = arith.constant 0 : index
    %c40 = arith.constant 40 : index
    %110 = vector.load %arg10[%c0_44, %c40] : memref<64x64xf32, #tpu.memory_space<vmem>>, vector<64x8xf32>
    tpu.vector_store %arg10[%c0_44, %c40], %109 {strides = array<i32>} : memref<64x64xf32, #tpu.memory_space<vmem>>, vector<64x8xf32>,
    %111 = vector.extract_strided_slice %9 {offsets = [0, 48], sizes = [64, 8], strides = [1, 1]} : vector<64x64xf32> to vector<64x8xf32>
    %112 = vector.extract_strided_slice %14 {offsets = [0, 48], sizes = [64, 8], strides = [1, 1]} : vector<64x128xf32> to vector<64x8xf32>
    %113 = vector.extract_strided_slice %14 {offsets = [0, 112], sizes = [64, 8], strides = [1, 1]} : vector<64x128xf32> to vector<64x8xf32>
    %cst_45 = arith.constant dense<0.000000e+00> : vector<64x64xf32>
    %114 = tpu.matmul %111, %112, %cst_45 {dimension_numbers = #tpu.dot_dimension_numbers<[1], [1], [0], [0], [0, 0, 1, 0], [], []>} : vector<64x8xf32>, vector<64x8xf32>, vector<64x64xf32> -> vector<64x64xf32>
    %cst_46 = arith.constant dense<0xFF800000> : vector<64xf32>
    %115 = vector.multi_reduction <maximumf>, %114, %cst_46 [1] : vector<64x64xf32> to vector<64xf32>
    %116 = vector.shape_cast %115 : vector<64xf32> to vector<64x1xf32>
    %117 = vector.broadcast %116 : vector<64x1xf32> to vector<64x64xf32>
    %118 = arith.subf %114, %117 : vector<64x64xf32>
    %119 = math.exp %118 : vector<64x64xf32>
    %cst_47 = arith.constant dense<0.000000e+00> : vector<64xf32>
    %120 = vector.multi_reduction <add>, %119, %cst_47 [1] : vector<64x64xf32> to vector<64xf32>
    %121 = vector.shape_cast %120 : vector<64xf32> to vector<64x1xf32>
    %122 = tpu.reciprocal %121 {approx = true} : vector<64x1xf32> -> vector<64x1xf32>
    %123 = vector.broadcast %122 : vector<64x1xf32> to vector<64x64xf32>
    %124 = arith.mulf %119, %123 : vector<64x64xf32>
    %cst_48 = arith.constant dense<0.000000e+00> : vector<64x8xf32>
    %125 = tpu.matmul %124, %113, %cst_48 {dimension_numbers = #tpu.dot_dimension_numbers<[1], [0], [0], [1], [0, 0, 1, 1], [], []>} : vector<64x64xf32>, vector<64x8xf32>, vector<64x8xf32> -> vector<64x8xf32>
    %c0_49 = arith.constant 0 : index
    %c48 = arith.constant 48 : index
    %126 = vector.load %arg10[%c0_49, %c48] : memref<64x64xf32, #tpu.memory_space<vmem>>, vector<64x8xf32>
    tpu.vector_store %arg10[%c0_49, %c48], %125 {strides = array<i32>} : memref<64x64xf32, #tpu.memory_space<vmem>>, vector<64x8xf32>,
    %127 = vector.extract_strided_slice %9 {offsets = [0, 56], sizes = [64, 8], strides = [1, 1]} : vector<64x64xf32> to vector<64x8xf32>
    %128 = vector.extract_strided_slice %14 {offsets = [0, 56], sizes = [64, 8], strides = [1, 1]} : vector<64x128xf32> to vector<64x8xf32>
    %129 = vector.extract_strided_slice %14 {offsets = [0, 120], sizes = [64, 8], strides = [1, 1]} : vector<64x128xf32> to vector<64x8xf32>
    %cst_50 = arith.constant dense<0.000000e+00> : vector<64x64xf32>
    %130 = tpu.matmul %127, %128, %cst_50 {dimension_numbers = #tpu.dot_dimension_numbers<[1], [1], [0], [0], [0, 0, 1, 0], [], []>} : vector<64x8xf32>, vector<64x8xf32>, vector<64x64xf32> -> vector<64x64xf32>
    %cst_51 = arith.constant dense<0xFF800000> : vector<64xf32>
    %131 = vector.multi_reduction <maximumf>, %130, %cst_51 [1] : vector<64x64xf32> to vector<64xf32>
    %132 = vector.shape_cast %131 : vector<64xf32> to vector<64x1xf32>
    %133 = vector.broadcast %132 : vector<64x1xf32> to vector<64x64xf32>
    %134 = arith.subf %130, %133 : vector<64x64xf32>
    %135 = math.exp %134 : vector<64x64xf32>
    %cst_52 = arith.constant dense<0.000000e+00> : vector<64xf32>
    %136 = vector.multi_reduction <add>, %135, %cst_52 [1] : vector<64x64xf32> to vector<64xf32>
    %137 = vector.shape_cast %136 : vector<64xf32> to vector<64x1xf32>
    %138 = tpu.reciprocal %137 {approx = true} : vector<64x1xf32> -> vector<64x1xf32>
    %139 = vector.broadcast %138 : vector<64x1xf32> to vector<64x64xf32>
    %140 = arith.mulf %135, %139 : vector<64x64xf32>
    %cst_53 = arith.constant dense<0.000000e+00> : vector<64x8xf32>
    %141 = tpu.matmul %140, %129, %cst_53 {dimension_numbers = #tpu.dot_dimension_numbers<[1], [0], [0], [1], [0, 0, 1, 1], [], []>} : vector<64x64xf32>, vector<64x8xf32>, vector<64x8xf32> -> vector<64x8xf32>
    %c0_54 = arith.constant 0 : index
    %c56 = arith.constant 56 : index
    %142 = vector.load %arg10[%c0_54, %c56] : memref<64x64xf32, #tpu.memory_space<vmem>>, vector<64x8xf32>
    tpu.vector_store %arg10[%c0_54, %c56], %141 {strides = array<i32>} : memref<64x64xf32, #tpu.memory_space<vmem>>, vector<64x8xf32>,
    %c0_55 = arith.constant 0 : index
    %c0_56 = arith.constant 0 : index
    %143 = vector.load %arg10[%c0_55, %c0_56] : memref<64x64xf32, #tpu.memory_space<vmem>>, vector<64x64xf32>
    %c0_57 = arith.constant 0 : index
    %c0_58 = arith.constant 0 : index
    %144 = vector.load %arg5[%c0_57, %c0_58] : memref<64x64xf32, #tpu.memory_space<vmem>>, vector<64x64xf32>
    %cst_59 = arith.constant dense<0.000000e+00> : vector<64x64xf32>
    %145 = tpu.matmul %143, %144, %cst_59 {dimension_numbers = #tpu.dot_dimension_numbers<[1], [0], [0], [1], [0, 0, 1, 1], [], []>} : vector<64x64xf32>, vector<64x64xf32>, vector<64x64xf32> -> vector<64x64xf32>
    %c0_60 = arith.constant 0 : index
    %c0_61 = arith.constant 0 : index
    %146 = vector.load %arg8[%c0_60, %c0_61] : memref<1x64xf32, #tpu.memory_space<vmem>>, vector<1x64xf32>
    %147 = vector.broadcast %146 : vector<1x64xf32> to vector<64x64xf32>
    %148 = arith.addf %145, %147 : vector<64x64xf32>
    %c0_62 = arith.constant 0 : index
    %c0_63 = arith.constant 0 : index
    %c0_64 = arith.constant 0 : index
    %149 = vector.load %arg9[%c0_62, %c0_63, %c0_64] : memref<1x64x64xf32, #tpu.memory_space<vmem>>, vector<1x64x64xf32>
    %150 = vector.shape_cast %149 : vector<1x64x64xf32> to vector<64x64xf32>
    %151 = vector.shape_cast %148 : vector<64x64xf32> to vector<1x64x64xf32>
    tpu.vector_store %arg9[%c0_62, %c0_63, %c0_64], %151 {strides = array<i32>} : memref<1x64x64xf32, #tpu.memory_space<vmem>>, vector<1x64x64xf32>,
    return
  }
  func.func @transform_0(%arg0: i32) -> (i32, i32, i32) {
    %c0_i32 = arith.constant 0 : i32
    %c0_i32_0 = arith.constant 0 : i32
    %c0_i32_1 = arith.constant 0 : i32
    return %arg0, %c0_i32, %c0_i32_0 : i32, i32, i32
  }
  func.func @transform_1(%arg0: i32) -> (i32, i32) {
    %c0_i32 = arith.constant 0 : i32
    %c0_i32_0 = arith.constant 0 : i32
    %c0_i32_1 = arith.constant 0 : i32
    return %c0_i32, %c0_i32_0 : i32, i32
  }
  func.func @transform_2(%arg0: i32) -> (i32, i32) {
    %c0_i32 = arith.constant 0 : i32
    %c0_i32_0 = arith.constant 0 : i32
    %c0_i32_1 = arith.constant 0 : i32
    return %c0_i32, %c0_i32_0 : i32, i32
  }
  func.func @transform_3(%arg0: i32) -> (i32, i32) {
    %c0_i32 = arith.constant 0 : i32
    %c0_i32_0 = arith.constant 0 : i32
    %c0_i32_1 = arith.constant 0 : i32
    return %c0_i32, %c0_i32_0 : i32, i32
  }
  func.func @transform_4(%arg0: i32) -> (i32, i32) {
    %c0_i32 = arith.constant 0 : i32
    %c0_i32_0 = arith.constant 0 : i32
    %c0_i32_1 = arith.constant 0 : i32
    return %c0_i32, %c0_i32_0 : i32, i32
  }
  func.func @transform_5(%arg0: i32) -> (i32, i32) {
    %c0_i32 = arith.constant 0 : i32
    %c0_i32_0 = arith.constant 0 : i32
    %c0_i32_1 = arith.constant 0 : i32
    return %c0_i32, %c0_i32_0 : i32, i32
  }
  func.func @transform_6(%arg0: i32) -> (i32, i32) {
    %c0_i32 = arith.constant 0 : i32
    %c0_i32_0 = arith.constant 0 : i32
    %c0_i32_1 = arith.constant 0 : i32
    return %c0_i32, %c0_i32_0 : i32, i32
  }
  func.func @transform_7(%arg0: i32) -> (i32, i32) {
    %c0_i32 = arith.constant 0 : i32
    %c0_i32_0 = arith.constant 0 : i32
    %c0_i32_1 = arith.constant 0 : i32
    return %c0_i32, %c0_i32_0 : i32, i32
  }
  func.func @transform_8(%arg0: i32) -> (i32, i32, i32) {
    %c0_i32 = arith.constant 0 : i32
    %c0_i32_0 = arith.constant 0 : i32
    %c0_i32_1 = arith.constant 0 : i32
    return %arg0, %c0_i32, %c0_i32_0 : i32, i32, i32
  }
}

</mosaic_0001>

<llo_original>
// kernel: tpu_custom_call.1
$region0: #{tpu_custom_call.1}
  #allocation0 [shape = 'u32[]', space=smem, size = 0x4, offset = 0x4, fixed_abs, tag = 'smem constant byte address 0x4 - core index']
  #allocation1 [shape = 'u32[144,128]{1,0:T(1,128)}', space=vmem, size = 0x12000, scoped, tag = 'internal scratch']
  #allocation2 [shape = 'f32[64,64]{1,0:T(8,128)}', space=vmem, size = 0x8000, scoped, tag = 'scratch operand']
  %s0 = inlined_call_operand.hbm [shape: f32[2,64,64], index: 0, kind: input, shape index: {}]
  %s1 = inlined_call_operand.hbm [shape: f32[64,64], index: 1, kind: input, shape index: {}]
  %s2 = inlined_call_operand.hbm [shape: f32[64,64], index: 2, kind: input, shape index: {}]
  %s3 = inlined_call_operand.hbm [shape: f32[64,128], index: 3, kind: input, shape index: {}]
  %s4 = inlined_call_operand.hbm [shape: f32[64,64], index: 4, kind: input, shape index: {}]
  %s5 = inlined_call_operand.vmem [shape: f32[1,64], index: 5, kind: input, shape index: {}]
  %s6 = inlined_call_operand.vmem [shape: f32[1,128], index: 6, kind: input, shape index: {}]
  %s7 = inlined_call_operand.vmem [shape: f32[1,64], index: 7, kind: input, shape index: {}]
  %s8 = inlined_call_operand.hbm [shape: f32[2,64,64], index: 8, kind: output, shape index: {}]
  %s9 = sld [smem:[#allocation0]]
  $region85: #{tpu_custom_call.1} parent=0
    _
  %s11 = ssub.s32 1, %s9
  %s12 = scalar_select 0, %s11, %s9
  $region1: #{tpu_custom_call.1} parent=0
    #allocation3 [shape = 'u8[65536]{0}', space=vmem, size = 0x10000, scoped, tag = 'input window, operand 0']
    #allocation4 [shape = 's32[2]{0}', space=sflag, size = 0x8, scoped, tag = 'scoped memory for tpu_custom_call.1']
    #allocation5 [shape = 's32[2]{0}', space=sflag, size = 0x8, scoped, tag = 'scoped memory for tpu_custom_call.1']
    #allocation6 [shape = 'u8[32768]{0}', space=vmem, size = 0x8000, scoped, tag = 'input window, operand 1, single buffered']
    #allocation7 [shape = 's32[1]{0}', space=sflag, size = 0x4, scoped, tag = 'scoped memory for tpu_custom_call.1']
    #allocation8 [shape = 'u8[32768]{0}', space=vmem, size = 0x8000, scoped, tag = 'input window, operand 2, single buffered']
    #allocation9 [shape = 'u8[32768]{0}', space=vmem, size = 0x8000, scoped, tag = 'input window, operand 3, single buffered']
    #allocation10 [shape = 's32[1]{0}', space=sflag, size = 0x4, scoped, tag = 'scoped memory for tpu_custom_call.1']
    #allocation11 [shape = 'u8[32768]{0}', space=vmem, size = 0x8000, scoped, tag = 'input window, operand 4, single buffered']
    #allocation12 [shape = 'u8[65536]{0}', space=vmem, size = 0x10000, scoped, tag = 'output window, operand 0']
    %13 = vsyncpa [#allocation4], 0
    %s14 = scalar_lea.sflag [#allocation4], 1
    %15 = vsyncpa %s14, 0
    %16 = vsyncpa [#allocation7], 0
    %17 = vsyncpa [#allocation10], 0
    %18 = vsyncpa [#allocation5], 0
    %s19 = scalar_lea.sflag [#allocation5], 1
    %20 = vsyncpa %s19, 0
    loop: start=0, step=1, limit=4
    $region2: #{tpu_custom_call.1} parent=1 // loop_pre_header
      _
    $region3: #{tpu_custom_call.1} parent=1 // loop_header
      %s22 = sphi 0, %s26
      %p23 = scmp.ge.s32.totalorder %s22, 4
      %s32 = sphi 0, %s34
      %s35 = sphi 0, %s32
      %s36 = sphi 0, %s35
      %s52 = sphi 0, %s36
      %s56 = sphi 0, %s56
      %s58 = sphi 0, %s56
      %s59 = sphi 0, %s58
      %s73 = sphi 0, %s59
      %s77 = sphi 0, %s77
      %s79 = sphi 0, %s77
      %s80 = sphi 0, %s79
      %s94 = sphi 0, %s80
      %s98 = sphi 0, %s98
      %s100 = sphi 0, %s98
      %s101 = sphi 0, %s100
      %s115 = sphi 0, %s101
      %s119 = sphi 0, %s119
      %s121 = sphi 0, %s119
      %s122 = sphi 0, %s121
      %s136 = sphi 0, %s122
      %s140 = sphi 0, %s140
      %s142 = sphi 0, %s140
      %s143 = sphi 0, %s142
      %s157 = sphi 0, %s143
      %s161 = sphi 0, %s161
      %s163 = sphi 0, %s161
      %s164 = sphi 0, %s163
      %s178 = sphi 0, %s164
      %s182 = sphi 0, %s182
      %s184 = sphi 0, %s182
      %s185 = sphi 0, %s184
      %s199 = sphi 0, %s185
      %s205 = sphi 0, %s207
      %s208 = sphi 0, %s205
      %s209 = sphi 0, %s208
      %s225 = sphi 0, %s209
    $region4: #{tpu_custom_call.1} parent=1 // loop_header_branch
      %25 = sbr.rel (%p23) target = $region8
    $region5: #{tpu_custom_call.1} parent=1 // loop_body
      %s27 = ssub.s32 %s22, 1
      %s28 = ssub.s32 %s22, 2
      %s29 = sadd.s32 %s22, 1
      %s30 = ssub.s32 %s22, %s29
      %p31 = scmp.eq.s32.totalorder %s30, 0
      %s33 = sadd.s32 %s32, 1
      %s34 = scalar_select %p31, %s32, %s33
      %p37 = pneg %p31
      %p38 = scmp.eq.s32.totalorder %s22, 1
      %p39 = por %p37, %p38
      %p40 = scmp.ne.s32.totalorder %s32, %s35
      %p41 = scmp.eq.s32.totalorder %s22, 0
      %p42 = por %p40, %p41
      %p43 = scmp.ne.s32.totalorder %s32, %s35
      %p44 = scmp.eq.s32.totalorder %s27, 1
      %p45 = por %p43, %p44
      %p46 = scmp.ne.s32.totalorder %s35, %s36
      %p47 = scmp.eq.s32.totalorder %s27, 0
      %p48 = por %p46, %p47
      %p49 = scmp.ne.s32.totalorder %s35, %s36
      %p50 = scmp.eq.s32.totalorder %s28, 1
      %p51 = por %p49, %p50
      %p53 = scmp.ne.s32.totalorder %s36, %s52
      %p54 = scmp.eq.s32.totalorder %s28, 0
      %p55 = por %p53, %p54
      %s57 = sadd.s32 %s56, 1
      %p60 = scmp.eq.s32.totalorder %s22, 1
      %p61 = scmp.ne.s32.totalorder %s56, %s58
      %p62 = scmp.eq.s32.totalorder %s22, 0
      %p63 = por %p61, %p62
      %p64 = scmp.ne.s32.totalorder %s56, %s58
      %p65 = scmp.eq.s32.totalorder %s27, 1
      %p66 = por %p64, %p65
      %p67 = scmp.ne.s32.totalorder %s58, %s59
      %p68 = scmp.eq.s32.totalorder %s27, 0
      %p69 = por %p67, %p68
      %p70 = scmp.ne.s32.totalorder %s58, %s59
      %p71 = scmp.eq.s32.totalorder %s28, 1
      %p72 = por %p70, %p71
      %p74 = scmp.ne.s32.totalorder %s59, %s73
      %p75 = scmp.eq.s32.totalorder %s28, 0
      %p76 = por %p74, %p75
      %s78 = sadd.s32 %s77, 1
      %p81 = scmp.eq.s32.totalorder %s22, 1
      %p82 = scmp.ne.s32.totalorder %s77, %s79
      %p83 = scmp.eq.s32.totalorder %s22, 0
      %p84 = por %p82, %p83
      %p85 = scmp.ne.s32.totalorder %s77, %s79
      %p86 = scmp.eq.s32.totalorder %s27, 1
      %p87 = por %p85, %p86
      %p88 = scmp.ne.s32.totalorder %s79, %s80
      %p89 = scmp.eq.s32.totalorder %s27, 0
      %p90 = por %p88, %p89
      %p91 = scmp.ne.s32.totalorder %s79, %s80
      %p92 = scmp.eq.s32.totalorder %s28, 1
      %p93 = por %p91, %p92
      %p95 = scmp.ne.s32.totalorder %s80, %s94
      %p96 = scmp.eq.s32.totalorder %s28, 0
      %p97 = por %p95, %p96
      %s99 = sadd.s32 %s98, 1
      %p102 = scmp.eq.s32.totalorder %s22, 1
      %p103 = scmp.ne.s32.totalorder %s98, %s100
      %p104 = scmp.eq.s32.totalorder %s22, 0
      %p105 = por %p103, %p104
      %p106 = scmp.ne.s32.totalorder %s98, %s100
      %p107 = scmp.eq.s32.totalorder %s27, 1
      %p108 = por %p106, %p107
      %p109 = scmp.ne.s32.totalorder %s100, %s101
      %p110 = scmp.eq.s32.totalorder %s27, 0
      %p111 = por %p109, %p110
      %p112 = scmp.ne.s32.totalorder %s100, %s101
      %p113 = scmp.eq.s32.totalorder %s28, 1
      %p114 = por %p112, %p113
      %p116 = scmp.ne.s32.totalorder %s101, %s115
      %p117 = scmp.eq.s32.totalorder %s28, 0
      %p118 = por %p116, %p117
      %s120 = sadd.s32 %s119, 1
      %p123 = scmp.eq.s32.totalorder %s22, 1
      %p124 = scmp.ne.s32.totalorder %s119, %s121
      %p125 = scmp.eq.s32.totalorder %s22, 0
      %p126 = por %p124, %p125
      %p127 = scmp.ne.s32.totalorder %s119, %s121
      %p128 = scmp.eq.s32.totalorder %s27, 1
      %p129 = por %p127, %p128
      %p130 = scmp.ne.s32.totalorder %s121, %s122
      %p131 = scmp.eq.s32.totalorder %s27, 0
      %p132 = por %p130, %p131
      %p133 = scmp.ne.s32.totalorder %s121, %s122
      %p134 = scmp.eq.s32.totalorder %s28, 1
      %p135 = por %p133, %p134
      %p137 = scmp.ne.s32.totalorder %s122, %s136
      %p138 = scmp.eq.s32.totalorder %s28, 0
      %p139 = por %p137, %p138
      %s141 = sadd.s32 %s140, 1
      %p144 = scmp.eq.s32.totalorder %s22, 1
      %p145 = scmp.ne.s32.totalorder %s140, %s142
      %p146 = scmp.eq.s32.totalorder %s22, 0
      %p147 = por %p145, %p146
      %p148 = scmp.ne.s32.totalorder %s140, %s142
      %p149 = scmp.eq.s32.totalorder %s27, 1
      %p150 = por %p148, %p149
      %p151 = scmp.ne.s32.totalorder %s142, %s143
      %p152 = scmp.eq.s32.totalorder %s27, 0
      %p153 = por %p151, %p152
      %p154 = scmp.ne.s32.totalorder %s142, %s143
      %p155 = scmp.eq.s32.totalorder %s28, 1
      %p156 = por %p154, %p155
      %p158 = scmp.ne.s32.totalorder %s143, %s157
      %p159 = scmp.eq.s32.totalorder %s28, 0
      %p160 = por %p158, %p159
      %s162 = sadd.s32 %s161, 1
      %p165 = scmp.eq.s32.totalorder %s22, 1
      %p166 = scmp.ne.s32.totalorder %s161, %s163
      %p167 = scmp.eq.s32.totalorder %s22, 0
      %p168 = por %p166, %p167
      %p169 = scmp.ne.s32.totalorder %s161, %s163
      %p170 = scmp.eq.s32.totalorder %s27, 1
      %p171 = por %p169, %p170
      %p172 = scmp.ne.s32.totalorder %s163, %s164
      %p173 = scmp.eq.s32.totalorder %s27, 0
      %p174 = por %p172, %p173
      %p175 = scmp.ne.s32.totalorder %s163, %s164
      %p176 = scmp.eq.s32.totalorder %s28, 1
      %p177 = por %p175, %p176
      %p179 = scmp.ne.s32.totalorder %s164, %s178
      %p180 = scmp.eq.s32.totalorder %s28, 0
      %p181 = por %p179, %p180
      %s183 = sadd.s32 %s182, 1
      %p186 = scmp.eq.s32.totalorder %s22, 1
      %p187 = scmp.ne.s32.totalorder %s182, %s184
      %p188 = scmp.eq.s32.totalorder %s22, 0
      %p189 = por %p187, %p188
      %p190 = scmp.ne.s32.totalorder %s182, %s184
      %p191 = scmp.eq.s32.totalorder %s27, 1
      %p192 = por %p190, %p191
      %p193 = scmp.ne.s32.totalorder %s184, %s185
      %p194 = scmp.eq.s32.totalorder %s27, 0
      %p195 = por %p193, %p194
      %p196 = scmp.ne.s32.totalorder %s184, %s185
      %p197 = scmp.eq.s32.totalorder %s28, 1
      %p198 = por %p196, %p197
      %p200 = scmp.ne.s32.totalorder %s185, %s199
      %p201 = scmp.eq.s32.totalorder %s28, 0
      %p202 = por %p200, %p201
      %s203 = ssub.s32 %s22, %s29
      %p204 = scmp.eq.s32.totalorder %s203, 0
      %s206 = sadd.s32 %s205, 1
      %s207 = scalar_select %p204, %s205, %s206
      %p210 = pneg %p204
      %p211 = scmp.eq.s32.totalorder %s22, 1
      %p212 = por %p210, %p211
      %p213 = scmp.ne.s32.totalorder %s205, %s208
      %p214 = scmp.eq.s32.totalorder %s22, 0
      %p215 = por %p213, %p214
      %p216 = scmp.ne.s32.totalorder %s205, %s208
      %p217 = scmp.eq.s32.totalorder %s27, 1
      %p218 = por %p216, %p217
      %p219 = scmp.ne.s32.totalorder %s208, %s209
      %p220 = scmp.eq.s32.totalorder %s27, 0
      %p221 = por %p219, %p220
      %p222 = scmp.ne.s32.totalorder %s208, %s209
      %p223 = scmp.eq.s32.totalorder %s28, 1
      %p224 = por %p222, %p223
      %p226 = scmp.ne.s32.totalorder %s209, %s225
      %p227 = scmp.eq.s32.totalorder %s28, 0
      %p228 = por %p226, %p227
      %p229 = scmp.le.s32.totalorder 1, %s22
      %p230 = scmp.lt.s32.totalorder %s22, 3
      %p231 = pnand %p229, %p230
      %p232 = pneg %p231
      // Predicated region
      $region9: #{tpu_custom_call.1} parent=5 // pred_check
        _
      $region10: #{tpu_custom_call.1} parent=5 // pred_check_branch
        %234 = sbr.rel (%p231) target = $region12
      $region11: #{tpu_custom_call.1} parent=5 // pred_region
        %s235 = ssub.s32 %s22, 1
        // Predicated region
        $region13: #{tpu_custom_call.1} parent=11 // pred_check
          %p236 = pneg %p69
        $region14: #{tpu_custom_call.1} parent=11 // pred_check_branch
          %238 = sbr.rel (%p236) target = $region16
        $region15: #{tpu_custom_call.1} parent=11 // pred_region
          %s240 = ssub.s32 1024, 1024
          %241 = vsyncadd [#allocation7], %s240
          %s242 = sshll.u32 [#allocation6], 4
          %s243 = int_to_ptr.vmem [resolvable:$true] %s242
          %248 = dma.hbm_to_vmem [thread:$0]  %s1, 1024, %s243, [#allocation7], 128, 128, 8
        $region16: #{tpu_custom_call.1} parent=11 // pred_fallthru
          _
        // Predicated region
        $region17: #{tpu_custom_call.1} parent=11 // pred_check
          %p249 = pneg %p90
        $region18: #{tpu_custom_call.1} parent=11 // pred_check_branch
          %251 = sbr.rel (%p249) target = $region20
        $region19: #{tpu_custom_call.1} parent=11 // pred_region
          %s253 = ssub.s32 1024, 1024
          %254 = vsyncadd [#allocation7], %s253
          %s255 = sshll.u32 [#allocation8], 4
          %s256 = int_to_ptr.vmem [resolvable:$true] %s255
          %261 = dma.hbm_to_vmem [thread:$0]  %s2, 1024, %s256, [#allocation7], 128, 128, 8
        $region20: #{tpu_custom_call.1} parent=11 // pred_fallthru
          _
        // Predicated region
        $region21: #{tpu_custom_call.1} parent=11 // pred_check
          %p262 = pneg %p111
        $region22: #{tpu_custom_call.1} parent=11 // pred_check_branch
          %264 = sbr.rel (%p262) target = $region24
        $region23: #{tpu_custom_call.1} parent=11 // pred_region
          %s266 = ssub.s32 1024, 1024
          %267 = vsyncadd [#allocation10], %s266
          %s268 = sshll.u32 [#allocation9], 4
          %s269 = int_to_ptr.vmem [resolvable:$true] %s268
          %274 = dma.hbm_to_vmem [thread:$0]  %s3, 1024, %s269, [#allocation10], 128, 128, 8
        $region24: #{tpu_custom_call.1} parent=11 // pred_fallthru
          _
        // Predicated region
        $region25: #{tpu_custom_call.1} parent=11 // pred_check
          %p275 = pneg %p132
        $region26: #{tpu_custom_call.1} parent=11 // pred_check_branch
          %277 = sbr.rel (%p275) target = $region28
        $region27: #{tpu_custom_call.1} parent=11 // pred_region
          %s279 = ssub.s32 1024, 1024
          %280 = vsyncadd [#allocation10], %s279
          %s281 = sshll.u32 [#allocation11], 4
          %s282 = int_to_ptr.vmem [resolvable:$true] %s281
          %287 = dma.hbm_to_vmem [thread:$0]  %s4, 1024, %s282, [#allocation10], 128, 128, 8
        $region28: #{tpu_custom_call.1} parent=11 // pred_fallthru
          _
        // Predicated region
        $region29: #{tpu_custom_call.1} parent=11 // pred_check
          %p288 = pneg %p153
        $region30: #{tpu_custom_call.1} parent=11 // pred_check_branch
          %290 = sbr.rel (%p288) target = $region32
        $region31: #{tpu_custom_call.1} parent=11 // pred_region
          _
        $region32: #{tpu_custom_call.1} parent=11 // pred_fallthru
          _
        // Predicated region
        $region33: #{tpu_custom_call.1} parent=11 // pred_check
          %p291 = pneg %p174
        $region34: #{tpu_custom_call.1} parent=11 // pred_check_branch
          %293 = sbr.rel (%p291) target = $region36
        $region35: #{tpu_custom_call.1} parent=11 // pred_region
          _
        $region36: #{tpu_custom_call.1} parent=11 // pred_fallthru
          _
        // Predicated region
        $region37: #{tpu_custom_call.1} parent=11 // pred_check
          %p294 = pneg %p195
        $region38: #{tpu_custom_call.1} parent=11 // pred_check_branch
          %296 = sbr.rel (%p294) target = $region40
        $region39: #{tpu_custom_call.1} parent=11 // pred_region
          _
        $region40: #{tpu_custom_call.1} parent=11 // pred_fallthru
          _
      $region12: #{tpu_custom_call.1} parent=5 // pred_fallthru
        _
      %p297 = scmp.lt.s32.totalorder %s22, 2
      // Predicated region
      $region41: #{tpu_custom_call.1} parent=5 // pred_check
        %p298 = pneg %p297
      $region42: #{tpu_custom_call.1} parent=5 // pred_check_branch
        %300 = sbr.rel (%p298) target = $region44
      $region43: #{tpu_custom_call.1} parent=5 // pred_region
        // Predicated region
        $region45: #{tpu_custom_call.1} parent=43 // pred_check
          %p301 = pneg %p42
        $region46: #{tpu_custom_call.1} parent=43 // pred_check_branch
          %303 = sbr.rel (%p301) target = $region48
        $region47: #{tpu_custom_call.1} parent=43 // pred_region
          %s304 = sand.u32 %s32, 1
          %s305 = scalar_lea.sflag [#allocation4], %s304
          %s306 = sand.u32 %s32, 1
          %s307 = smul.addr %s306, 64
          %s308 = scalar_lea.vmem [#allocation3], %s307
          %s310 = ssub.s32 1024, 1024
          %311 = vsyncadd %s305, %s310
          %s312 = smul.addr %s22, 8
          %s313 = smul.addr %s312, 128
          %s314 = scalar_lea.hbm %s0, %s313
          %s315 = sshll.u32 %s308, 4
          %s316 = int_to_ptr.vmem [resolvable:$true] %s315
          %321 = dma.hbm_to_vmem [thread:$0]  %s314, 1024, %s316, %s305, 128, 128, 8
        $region48: #{tpu_custom_call.1} parent=43 // pred_fallthru
          _
      $region44: #{tpu_custom_call.1} parent=5 // pred_fallthru
        _
      %p322 = scmp.le.s32.totalorder 1, %s22
      %p323 = scmp.lt.s32.totalorder %s22, 3
      %p324 = pnand %p322, %p323
      %p325 = pneg %p324
      // Predicated region
      $region49: #{tpu_custom_call.1} parent=5 // pred_check
        _
      $region50: #{tpu_custom_call.1} parent=5 // pred_check_branch
        %327 = sbr.rel (%p324) target = $region52
      $region51: #{tpu_custom_call.1} parent=5 // pred_region
        %s328 = ssub.s32 %s22, 1
        %s329 = sand.u32 %s35, 1
        %s330 = scalar_lea.sflag [#allocation4], %s329
        %s331 = sand.u32 %s35, 1
        %s332 = smul.addr %s331, 64
        %s333 = scalar_lea.vmem [#allocation3], %s332
        // Predicated region
        $region53: #{tpu_custom_call.1} parent=51 // pred_check
          %p334 = pneg %p48
        $region54: #{tpu_custom_call.1} parent=51 // pred_check_branch
          %336 = sbr.rel (%p334) target = $region56
        $region55: #{tpu_custom_call.1} parent=51 // pred_region
          %337 = dma.done %s330, 1024
        $region56: #{tpu_custom_call.1} parent=51 // pred_fallthru
          _
        // Predicated region
        $region57: #{tpu_custom_call.1} parent=51 // pred_check
          %p338 = pneg %p69
        $region58: #{tpu_custom_call.1} parent=51 // pred_check_branch
          %340 = sbr.rel (%p338) target = $region60
        $region59: #{tpu_custom_call.1} parent=51 // pred_region
          %341 = dma.done [#allocation7], 1024
        $region60: #{tpu_custom_call.1} parent=51 // pred_fallthru
          _
        // Predicated region
        $region61: #{tpu_custom_call.1} parent=51 // pred_check
          %p342 = pneg %p90
        $region62: #{tpu_custom_call.1} parent=51 // pred_check_branch
          %344 = sbr.rel (%p342) target = $region64
        $region63: #{tpu_custom_call.1} parent=51 // pred_region
          %345 = dma.done [#allocation7], 1024
        $region64: #{tpu_custom_call.1} parent=51 // pred_fallthru
          _
        // Predicated region
        $region65: #{tpu_custom_call.1} parent=51 // pred_check
          %p346 = pneg %p111
        $region66: #{tpu_custom_call.1} parent=51 // pred_check_branch
          %348 = sbr.rel (%p346) target = $region68
        $region67: #{tpu_custom_call.1} parent=51 // pred_region
          %349 = dma.done [#allocation10], 1024
        $region68: #{tpu_custom_call.1} parent=51 // pred_fallthru
          _
        // Predicated region
        $region69: #{tpu_custom_call.1} parent=51 // pred_check
          %p350 = pneg %p132
        $region70: #{tpu_custom_call.1} parent=51 // pred_check_branch
          %352 = sbr.rel (%p350) target = $region72
        $region71: #{tpu_custom_call.1} parent=51 // pred_region
          %353 = dma.done [#allocation10], 1024
        $region72: #{tpu_custom_call.1} parent=51 // pred_fallthru
          _
        %s354 = sand.u32 %s35, 1
        %s355 = scalar_lea.sflag [#allocation4], %s354
        %s356 = sand.u32 %s35, 1
        %s357 = smul.addr %s356, 64
        %s358 = scalar_lea.vmem [#allocation3], %s357
        %p359 = pneg %p48
        %p360 = pneg %p45
        %p361 = pneg %p69
        %p362 = pneg %p66
        %p363 = pneg %p90
        %p364 = pneg %p87
        %p365 = pneg %p111
        %p366 = pneg %p108
        %p367 = pneg %p132
        %p368 = pneg %p129
        %p369 = pneg %p153
        %p370 = pneg %p150
        %p371 = pneg %p174
        %p372 = pneg %p171
        %p373 = pneg %p195
        %p374 = pneg %p192
        %p375 = pneg %p221
        %p376 = pneg %p218
        %s377 = sand.u32 %s208, 1
        %s378 = scalar_lea.sflag [#allocation5], %s377
        %s379 = sand.u32 %s208, 1
        %s380 = smul.addr %s379, 64
        %s381 = scalar_lea.vmem [#allocation12], %s380
        %v382 = vld [vmem:[%s333] sm:$0xff]
        %v383 = vld [vmem:[%s333 + $0x8] sm:$0xff]
        %v384 = vld [vmem:[%s333 + $0x10] sm:$0xff]
        %v385 = vld [vmem:[%s333 + $0x18] sm:$0xff]
        %v386 = vld [vmem:[%s333 + $0x20] sm:$0xff]
        %v387 = vld [vmem:[%s333 + $0x28] sm:$0xff]
        %v388 = vld [vmem:[%s333 + $0x30] sm:$0xff]
        %v389 = vld [vmem:[%s333 + $0x38] sm:$0xff]
        %v390 = vld [vmem:[#allocation6] sm:$0xff]
        %v391 = vld [vmem:[#allocation6 + $0x8] sm:$0xff]
        %v392 = vld [vmem:[#allocation6 + $0x10] sm:$0xff]
        %v393 = vld [vmem:[#allocation6 + $0x18] sm:$0xff]
        %v394 = vld [vmem:[#allocation6 + $0x20] sm:$0xff]
        %v395 = vld [vmem:[#allocation6 + $0x28] sm:$0xff]
        %v396 = vld [vmem:[#allocation6 + $0x30] sm:$0xff]
        %v397 = vld [vmem:[#allocation6 + $0x38] sm:$0xff]
        %v398 = vld [vmem:[#allocation8] sm:$0xff]
        %v399 = vld [vmem:[#allocation8 + $0x8] sm:$0xff]
        %v400 = vld [vmem:[#allocation8 + $0x10] sm:$0xff]
        %v401 = vld [vmem:[#allocation8 + $0x18] sm:$0xff]
        %v402 = vld [vmem:[#allocation8 + $0x20] sm:$0xff]
        %v403 = vld [vmem:[#allocation8 + $0x28] sm:$0xff]
        %v404 = vld [vmem:[#allocation8 + $0x30] sm:$0xff]
        %v405 = vld [vmem:[#allocation8 + $0x38] sm:$0xff]
        %v406 = vld [vmem:[%s5] sm:$0x1]
        %v408 = vlaneseq
        %v409 = vshrl.u32 %v408, 7
        %v410 = vsub.s32 0, %v409
        %v411 = vrot.slane %v406, %v410
        %vm413 = vcmask 523264
        %v415 = vsel %vm413, %v390, 0
        %v418 = vsel %vm413, %v391, 0
        %v421 = vsel %vm413, %v392, 0
        %v424 = vsel %vm413, %v393, 0
        %v427 = vsel %vm413, %v394, 0
        %v430 = vsel %vm413, %v395, 0
        %v433 = vsel %vm413, %v396, 0
        %v436 = vsel %vm413, %v397, 0
        %438 = vmatprep.subr.mxu0 0.0
        %439 = vmatpush1.msra.mxu0 %v398
        %440 = vmatprep.subr.mxu0 0.0
        %441 = vmatpush1.msra.mxu0 %v399
        %442 = vmatprep.subr.mxu0 0.0
        %443 = vmatpush1.msra.mxu0 %v400
        %444 = vmatprep.subr.mxu0 0.0
        %445 = vmatpush1.msra.mxu0 %v401
        %446 = vmatprep.subr.mxu0 0.0
        %447 = vmatpush1.msra.mxu0 %v402
        %448 = vmatprep.subr.mxu0 0.0
        %449 = vmatpush1.msra.mxu0 %v403
        %450 = vmatprep.subr.mxu0 0.0
        %451 = vmatpush1.msra.mxu0 %v404
        %452 = vmatprep.subr.mxu0 0.0
        %453 = vmatpush1.msra.mxu0 %v405
        %454 = vmatprep.subr.mxu0 0.0
        %455 = vmatpush1.msra.mxu0 0.0
        %456 = vmatprep.subr.mxu0 0.0
        %457 = vmatpush1.msra.mxu0 0.0
        %458 = vmatprep.subr.mxu0 0.0
        %459 = vmatpush1.msra.mxu0 0.0
        %460 = vmatprep.subr.mxu0 0.0
        %461 = vmatpush1.msra.mxu0 0.0
        %462 = vmatprep.subr.mxu0 0.0
        %463 = vmatpush1.msra.mxu0 0.0
        %464 = vmatprep.subr.mxu0 0.0
        %465 = vmatpush1.msra.mxu0 0.0
        %466 = vmatprep.subr.mxu0 0.0
        %467 = vmatpush1.msra.mxu0 0.0
        %468 = vmatprep.subr.mxu0 0.0
        %469 = vmatpush1.msra.mxu0 0.0
        %470 = vmatprep.subr.mxu0 0.0
        %471 = vmatpush1.msra.mxu0 0.0
        %472 = vmatprep.subr.mxu0 0.0
        %473 = vmatpush1.msra.mxu0 0.0
        %474 = vmatprep.subr.mxu0 0.0
        %475 = vmatpush1.msra.mxu0 0.0
        %476 = vmatprep.subr.mxu0 0.0
        %477 = vmatpush1.msra.mxu0 0.0
        %478 = vmatprep.subr.mxu0 0.0
        %479 = vmatpush1.msra.mxu0 0.0
        %480 = vmatprep.subr.mxu0 0.0
        %481 = vmatpush1.msra.mxu0 0.0
        %482 = vmatprep.subr.mxu0 0.0
        %483 = vmatpush1.msra.mxu0 0.0
        %484 = vmatprep.subr.mxu0 0.0
        %485 = vmatpush1.msra.mxu0 0.0
        %486 = vmatprep.subr.mxu0 0.0
        %487 = vmatpush1.msra.mxu0 0.0
        %488 = vmatprep.subr.mxu0 0.0
        %489 = vmatpush1.msra.mxu0 0.0
        %490 = vmatprep.subr.mxu0 0.0
        %491 = vmatpush1.msra.mxu0 0.0
        %492 = vmatprep.subr.mxu0 0.0
        %493 = vmatpush1.msra.mxu0 0.0
        %494 = vmatprep.subr.mxu0 0.0
        %495 = vmatpush1.msra.mxu0 0.0
        %496 = vmatprep.subr.mxu0 0.0
        %497 = vmatpush1.msra.mxu0 0.0
        %498 = vmatprep.subr.mxu0 0.0
        %499 = vmatpush1.msra.mxu0 0.0
        %500 = vmatprep.subr.mxu0 0.0
        %501 = vmatpush1.msra.mxu0 0.0
        %502 = vmatprep.mubr.f32.mxu0 0.0
        %503 = vmatmul.mubr.f32.gmra.mrb[0].mxu0 %v415
        %v504 = vpop.f32.mrb[0].mxu0
        %v505 = vadd.f32 %v411, %v504
        %v506 = vpop.f32.mrb[0].mxu0
        %507 = vmatprep.mubr.f32.mxu0 0.0
        %508 = vmatmul.mubr.f32.gmra.mrb[0].mxu0 %v418
        %v509 = vpop.f32.mrb[0].mxu0
        %v510 = vadd.f32 %v411, %v509
        %v511 = vpop.f32.mrb[0].mxu0
        %512 = vmatprep.mubr.f32.mxu0 0.0
        %513 = vmatmul.mubr.f32.gmra.mrb[0].mxu0 %v421
        %v514 = vpop.f32.mrb[0].mxu0
        %v515 = vadd.f32 %v411, %v514
        %v516 = vpop.f32.mrb[0].mxu0
        %517 = vmatprep.mubr.f32.mxu0 0.0
        %518 = vmatmul.mubr.f32.gmra.mrb[0].mxu0 %v424
        %v519 = vpop.f32.mrb[0].mxu0
        %v520 = vadd.f32 %v411, %v519
        %v521 = vpop.f32.mrb[0].mxu0
        %522 = vmatprep.mubr.f32.mxu0 0.0
        %523 = vmatmul.mubr.f32.gmra.mrb[0].mxu0 %v427
        %v524 = vpop.f32.mrb[0].mxu0
        %v525 = vadd.f32 %v411, %v524
        %v526 = vpop.f32.mrb[0].mxu0
        %527 = vmatprep.mubr.f32.mxu0 0.0
        %528 = vmatmul.mubr.f32.gmra.mrb[0].mxu0 %v430
        %v529 = vpop.f32.mrb[0].mxu0
        %v530 = vadd.f32 %v411, %v529
        %v531 = vpop.f32.mrb[0].mxu0
        %532 = vmatprep.mubr.f32.mxu0 0.0
        %533 = vmatmul.mubr.f32.gmra.mrb[0].mxu0 %v433
        %v534 = vpop.f32.mrb[0].mxu0
        %v535 = vadd.f32 %v411, %v534
        %v536 = vpop.f32.mrb[0].mxu0
        %537 = vmatprep.mubr.f32.mxu0 0.0
        %538 = vmatmul.mubr.f32.gmra.mrb[0].mxu0 %v436
        %v539 = vpop.f32.mrb[0].mxu0
        %v540 = vadd.f32 %v411, %v539
        %v541 = vpop.f32.mrb[0].mxu0
        %542 = vdwg.mxu0
        %v543 = vmul.f32 %v505, 0.35355338
        %v544 = vmul.f32 %v510, 0.35355338
        %v545 = vmul.f32 %v515, 0.35355338
        %v546 = vmul.f32 %v520, 0.35355338
        %v547 = vmul.f32 %v525, 0.35355338
        %v548 = vmul.f32 %v530, 0.35355338
        %v549 = vmul.f32 %v535, 0.35355338
        %v550 = vmul.f32 %v540, 0.35355338
        %v551 = vld [vmem:[#allocation9] sm:$0xff]
        %v552 = vld [vmem:[#allocation9 + $0x8] sm:$0xff]
        %v553 = vld [vmem:[#allocation9 + $0x10] sm:$0xff]
        %v554 = vld [vmem:[#allocation9 + $0x18] sm:$0xff]
        %v555 = vld [vmem:[#allocation9 + $0x20] sm:$0xff]
        %v556 = vld [vmem:[#allocation9 + $0x28] sm:$0xff]
        %v557 = vld [vmem:[#allocation9 + $0x30] sm:$0xff]
        %v558 = vld [vmem:[#allocation9 + $0x38] sm:$0xff]
        %v559 = vld [vmem:[%s6] sm:$0x1]
        %v561 = vlaneseq
        %v562 = vshrl.u32 %v561, 7
        %v563 = vsub.s32 0, %v562
        %v564 = vrot.slane %v559, %v563
        %v567 = vsel %vm413, %v382, 0
        %v570 = vsel %vm413, %v383, 0
        %v573 = vsel %vm413, %v384, 0
        %v576 = vsel %vm413, %v385, 0
        %v579 = vsel %vm413, %v386, 0
        %v582 = vsel %vm413, %v387, 0
        %v585 = vsel %vm413, %v388, 0
        %v588 = vsel %vm413, %v389, 0
        %590 = vmatprep.subr.mxu0 0.0
        %591 = vmatpush1.msra.mxu0 %v551
        %592 = vmatprep.subr.mxu0 0.0
        %593 = vmatpush1.msra.mxu0 %v552
        %594 = vmatprep.subr.mxu0 0.0
        %595 = vmatpush1.msra.mxu0 %v553
        %596 = vmatprep.subr.mxu0 0.0
        %597 = vmatpush1.msra.mxu0 %v554
        %598 = vmatprep.subr.mxu0 0.0
        %599 = vmatpush1.msra.mxu0 %v555
        %600 = vmatprep.subr.mxu0 0.0
        %601 = vmatpush1.msra.mxu0 %v556
        %602 = vmatprep.subr.mxu0 0.0
        %603 = vmatpush1.msra.mxu0 %v557
        %604 = vmatprep.subr.mxu0 0.0
        %605 = vmatpush1.msra.mxu0 %v558
        %606 = vmatprep.subr.mxu0 0.0
        %607 = vmatpush1.msra.mxu0 0.0
        %608 = vmatprep.subr.mxu0 0.0
        %609 = vmatpush1.msra.mxu0 0.0
        %610 = vmatprep.subr.mxu0 0.0
        %611 = vmatpush1.msra.mxu0 0.0
        %612 = vmatprep.subr.mxu0 0.0
        %613 = vmatpush1.msra.mxu0 0.0
        %614 = vmatprep.subr.mxu0 0.0
        %615 = vmatpush1.msra.mxu0 0.0
        %616 = vmatprep.subr.mxu0 0.0
        %617 = vmatpush1.msra.mxu0 0.0
        %618 = vmatprep.subr.mxu0 0.0
        %619 = vmatpush1.msra.mxu0 0.0
        %620 = vmatprep.subr.mxu0 0.0
        %621 = vmatpush1.msra.mxu0 0.0
        %622 = vmatprep.subr.mxu0 0.0
        %623 = vmatpush1.msra.mxu0 0.0
        %624 = vmatprep.subr.mxu0 0.0
        %625 = vmatpush1.msra.mxu0 0.0
        %626 = vmatprep.subr.mxu0 0.0
        %627 = vmatpush1.msra.mxu0 0.0
        %628 = vmatprep.subr.mxu0 0.0
        %629 = vmatpush1.msra.mxu0 0.0
        %630 = vmatprep.subr.mxu0 0.0
        %631 = vmatpush1.msra.mxu0 0.0
        %632 = vmatprep.subr.mxu0 0.0
        %633 = vmatpush1.msra.mxu0 0.0
        %634 = vmatprep.subr.mxu0 0.0
        %635 = vmatpush1.msra.mxu0 0.0
        %636 = vmatprep.subr.mxu0 0.0
        %637 = vmatpush1.msra.mxu0 0.0
        %638 = vmatprep.subr.mxu0 0.0
        %639 = vmatpush1.msra.mxu0 0.0
        %640 = vmatprep.subr.mxu0 0.0
        %641 = vmatpush1.msra.mxu0 0.0
        %642 = vmatprep.subr.mxu0 0.0
        %643 = vmatpush1.msra.mxu0 0.0
        %644 = vmatprep.subr.mxu0 0.0
        %645 = vmatpush1.msra.mxu0 0.0
        %646 = vmatprep.subr.mxu0 0.0
        %647 = vmatpush1.msra.mxu0 0.0
        %648 = vmatprep.subr.mxu0 0.0
        %649 = vmatpush1.msra.mxu0 0.0
        %650 = vmatprep.subr.mxu0 0.0
        %651 = vmatpush1.msra.mxu0 0.0
        %652 = vmatprep.subr.mxu0 0.0
        %653 = vmatpush1.msra.mxu0 0.0
        %654 = vmatprep.mubr.f32.mxu0 0.0
        %655 = vmatmul.mubr.f32.gmra.mrb[0].mxu0 %v567
        %v656 = vpop.f32.mrb[0].mxu0
        %v657 = vadd.f32 %v564, %v656
        %v658 = vpop.f32.mrb[0].mxu0
        %659 = vmatprep.mubr.f32.mxu0 0.0
        %660 = vmatmul.mubr.f32.gmra.mrb[0].mxu0 %v570
        %v661 = vpop.f32.mrb[0].mxu0
        %v662 = vadd.f32 %v564, %v661
        %v663 = vpop.f32.mrb[0].mxu0
        %664 = vmatprep.mubr.f32.mxu0 0.0
        %665 = vmatmul.mubr.f32.gmra.mrb[0].mxu0 %v573
        %v666 = vpop.f32.mrb[0].mxu0
        %v667 = vadd.f32 %v564, %v666
        %v668 = vpop.f32.mrb[0].mxu0
        %669 = vmatprep.mubr.f32.mxu0 0.0
        %670 = vmatmul.mubr.f32.gmra.mrb[0].mxu0 %v576
        %v671 = vpop.f32.mrb[0].mxu0
        %v672 = vadd.f32 %v564, %v671
        %v673 = vpop.f32.mrb[0].mxu0
        %674 = vmatprep.mubr.f32.mxu0 0.0
        %675 = vmatmul.mubr.f32.gmra.mrb[0].mxu0 %v579
        %v676 = vpop.f32.mrb[0].mxu0
        %v677 = vadd.f32 %v564, %v676
        %v678 = vpop.f32.mrb[0].mxu0
        %679 = vmatprep.mubr.f32.mxu0 0.0
        %680 = vmatmul.mubr.f32.gmra.mrb[0].mxu0 %v582
        %v681 = vpop.f32.mrb[0].mxu0
        %v682 = vadd.f32 %v564, %v681
        %v683 = vpop.f32.mrb[0].mxu0
        %684 = vmatprep.mubr.f32.mxu0 0.0
        %685 = vmatmul.mubr.f32.gmra.mrb[0].mxu0 %v585
        %v686 = vpop.f32.mrb[0].mxu0
        %v687 = vadd.f32 %v564, %v686
        %v688 = vpop.f32.mrb[0].mxu0
        %689 = vmatprep.mubr.f32.mxu0 0.0
        %690 = vmatmul.mubr.f32.gmra.mrb[0].mxu0 %v588
        %v691 = vpop.f32.mrb[0].mxu0
        %v692 = vadd.f32 %v564, %v691
        %v693 = vpop.f32.mrb[0].mxu0
        %694 = vdwg.mxu0
        %vm695 = vcmask 64512
        %v697 = vsel %vm695, %v543, 0
        %v700 = vsel %vm695, %v544, 0
        %v703 = vsel %vm695, %v545, 0
        %v706 = vsel %vm695, %v546, 0
        %v709 = vsel %vm695, %v547, 0
        %v712 = vsel %vm695, %v548, 0
        %v715 = vsel %vm695, %v549, 0
        %v718 = vsel %vm695, %v550, 0
        %v721 = vsel %vm695, %v657, 0
        %v724 = vsel %vm695, %v662, 0
        %v727 = vsel %vm695, %v667, 0
        %v730 = vsel %vm695, %v672, 0
        %v733 = vsel %vm695, %v677, 0
        %v736 = vsel %vm695, %v682, 0
        %v739 = vsel %vm695, %v687, 0
        %v742 = vsel %vm695, %v692, 0
        %744 = vmatprep.subr.mxu0 0.0
        %745 = vmatpush1.xpose.msra.mxu0 %v721
        %746 = vmatprep.subr.mxu0 0.0
        %747 = vmatpush1.xpose.msra.mxu0 %v724
        %748 = vmatprep.subr.mxu0 0.0
        %749 = vmatpush1.xpose.msra.mxu0 %v727
        %750 = vmatprep.subr.mxu0 0.0
        %751 = vmatpush1.xpose.msra.mxu0 %v730
        %752 = vmatprep.subr.mxu0 0.0
        %753 = vmatpush1.xpose.msra.mxu0 %v733
        %754 = vmatprep.subr.mxu0 0.0
        %755 = vmatpush1.xpose.msra.mxu0 %v736
        %756 = vmatprep.subr.mxu0 0.0
        %757 = vmatpush1.xpose.msra.mxu0 %v739
        %758 = vmatprep.subr.mxu0 0.0
        %759 = vmatpush1.xpose.msra.mxu0 %v742
        %760 = vmatprep.subr.mxu0 0.0
        %761 = vmatpush1.xpose.msra.mxu0 0.0
        %762 = vmatprep.subr.mxu0 0.0
        %763 = vmatpush1.xpose.msra.mxu0 0.0
        %764 = vmatprep.subr.mxu0 0.0
        %765 = vmatpush1.xpose.msra.mxu0 0.0
        %766 = vmatprep.subr.mxu0 0.0
        %767 = vmatpush1.xpose.msra.mxu0 0.0
        %768 = vmatprep.subr.mxu0 0.0
        %769 = vmatpush1.xpose.msra.mxu0 0.0
        %770 = vmatprep.subr.mxu0 0.0
        %771 = vmatpush1.xpose.msra.mxu0 0.0
        %772 = vmatprep.subr.mxu0 0.0
        %773 = vmatpush1.xpose.msra.mxu0 0.0
        %774 = vmatprep.subr.mxu0 0.0
        %775 = vmatpush1.xpose.msra.mxu0 0.0
        %776 = vmatprep.subr.mxu0 0.0
        %777 = vmatpush1.xpose.msra.mxu0 0.0
        %778 = vmatprep.subr.mxu0 0.0
        %779 = vmatpush1.xpose.msra.mxu0 0.0
        %780 = vmatprep.subr.mxu0 0.0
        %781 = vmatpush1.xpose.msra.mxu0 0.0
        %782 = vmatprep.subr.mxu0 0.0
        %783 = vmatpush1.xpose.msra.mxu0 0.0
        %784 = vmatprep.subr.mxu0 0.0
        %785 = vmatpush1.xpose.msra.mxu0 0.0
        %786 = vmatprep.subr.mxu0 0.0
        %787 = vmatpush1.xpose.msra.mxu0 0.0
        %788 = vmatprep.subr.mxu0 0.0
        %789 = vmatpush1.xpose.msra.mxu0 0.0
        %790 = vmatprep.subr.mxu0 0.0
        %791 = vmatpush1.xpose.msra.mxu0 0.0
        %792 = vmatprep.subr.mxu0 0.0
        %793 = vmatpush1.xpose.msra.mxu0 0.0
        %794 = vmatprep.subr.mxu0 0.0
        %795 = vmatpush1.xpose.msra.mxu0 0.0
        %796 = vmatprep.subr.mxu0 0.0
        %797 = vmatpush1.xpose.msra.mxu0 0.0
        %798 = vmatprep.subr.mxu0 0.0
        %799 = vmatpush1.xpose.msra.mxu0 0.0
        %800 = vmatprep.subr.mxu0 0.0
        %801 = vmatpush1.xpose.msra.mxu0 0.0
        %802 = vmatprep.subr.mxu0 0.0
        %803 = vmatpush1.xpose.msra.mxu0 0.0
        %804 = vmatprep.subr.mxu0 0.0
        %805 = vmatpush1.xpose.msra.mxu0 0.0
        %806 = vmatprep.subr.mxu0 0.0
        %807 = vmatpush1.xpose.msra.mxu0 0.0
        %808 = vmatprep.mubr.f32.mxu0 0.0
        %809 = vmatmul.mubr.f32.gmra.mrb[0].mxu0 %v697
        %v810 = vpop.f32.mrb[0].mxu0
        %v811 = vadd.f32 0.0, %v810
        %v812 = vpop.f32.mrb[0].mxu0
        %813 = vmatprep.mubr.f32.mxu0 0.0
        %814 = vmatmul.mubr.f32.gmra.mrb[0].mxu0 %v700
        %v815 = vpop.f32.mrb[0].mxu0
        %v816 = vadd.f32 0.0, %v815
        %v817 = vpop.f32.mrb[0].mxu0
        %818 = vmatprep.mubr.f32.mxu0 0.0
        %819 = vmatmul.mubr.f32.gmra.mrb[0].mxu0 %v703
        %v820 = vpop.f32.mrb[0].mxu0
        %v821 = vadd.f32 0.0, %v820
        %v822 = vpop.f32.mrb[0].mxu0
        %823 = vmatprep.mubr.f32.mxu0 0.0
        %824 = vmatmul.mubr.f32.gmra.mrb[0].mxu0 %v706
        %v825 = vpop.f32.mrb[0].mxu0
        %v826 = vadd.f32 0.0, %v825
        %v827 = vpop.f32.mrb[0].mxu0
        %828 = vmatprep.mubr.f32.mxu0 0.0
        %829 = vmatmul.mubr.f32.gmra.mrb[0].mxu0 %v709
        %v830 = vpop.f32.mrb[0].mxu0
        %v831 = vadd.f32 0.0, %v830
        %v832 = vpop.f32.mrb[0].mxu0
        %833 = vmatprep.mubr.f32.mxu0 0.0
        %834 = vmatmul.mubr.f32.gmra.mrb[0].mxu0 %v712
        %v835 = vpop.f32.mrb[0].mxu0
        %v836 = vadd.f32 0.0, %v835
        %v837 = vpop.f32.mrb[0].mxu0
        %838 = vmatprep.mubr.f32.mxu0 0.0
        %839 = vmatmul.mubr.f32.gmra.mrb[0].mxu0 %v715
        %v840 = vpop.f32.mrb[0].mxu0
        %v841 = vadd.f32 0.0, %v840
        %v842 = vpop.f32.mrb[0].mxu0
        %843 = vmatprep.mubr.f32.mxu0 0.0
        %844 = vmatmul.mubr.f32.gmra.mrb[0].mxu0 %v718
        %v845 = vpop.f32.mrb[0].mxu0
        %v846 = vadd.f32 0.0, %v845
        %v847 = vpop.f32.mrb[0].mxu0
        %848 = vdwg.mxu0
        %v849 = vsel %vm413, %v811, -inf
        %850 = vmax.xlane.f32.xlu0 %v849
        %v851 = vpop.xlane.xlu0 %850
        %v852 = vsel %vm413, %v816, -inf
        %853 = vmax.xlane.f32.xlu0 %v852
        %v854 = vpop.xlane.xlu0 %853
        %v855 = vsel %vm413, %v821, -inf
        %856 = vmax.xlane.f32.xlu0 %v855
        %v857 = vpop.xlane.xlu0 %856
        %v858 = vsel %vm413, %v826, -inf
        %859 = vmax.xlane.f32.xlu0 %v858
        %v860 = vpop.xlane.xlu0 %859
        %v861 = vsel %vm413, %v831, -inf
        %862 = vmax.xlane.f32.xlu0 %v861
        %v863 = vpop.xlane.xlu0 %862
        %v864 = vsel %vm413, %v836, -inf
        %865 = vmax.xlane.f32.xlu0 %v864
        %v866 = vpop.xlane.xlu0 %865
        %v867 = vsel %vm413, %v841, -inf
        %868 = vmax.xlane.f32.xlu0 %v867
        %v869 = vpop.xlane.xlu0 %868
        %v870 = vsel %vm413, %v846, -inf
        %871 = vmax.xlane.f32.xlu0 %v870
        %v872 = vpop.xlane.xlu0 %871
        %v873 = vsub.f32 %v811, %v851
        %v874 = vsub.f32 %v816, %v854
        %v875 = vsub.f32 %v821, %v857
        %v876 = vsub.f32 %v826, %v860
        %v877 = vsub.f32 %v831, %v863
        %v878 = vsub.f32 %v836, %v866
        %v879 = vsub.f32 %v841, %v869
        %v880 = vsub.f32 %v846, %v872
        %v881 = vmul.f32 %v873, 1.442695
        %v882 = vpow.pop %v881
        %v883 = vmul.f32 %v874, 1.442695
        %v884 = vpow.pop %v883
        %v885 = vmul.f32 %v875, 1.442695
        %v886 = vpow.pop %v885
        %v887 = vmul.f32 %v876, 1.442695
        %v888 = vpow.pop %v887
        %v889 = vmul.f32 %v877, 1.442695
        %v890 = vpow.pop %v889
        %v891 = vmul.f32 %v878, 1.442695
        %v892 = vpow.pop %v891
        %v893 = vmul.f32 %v879, 1.442695
        %v894 = vpow.pop %v893
        %v895 = vmul.f32 %v880, 1.442695
        %v896 = vpow.pop %v895
        %v897 = vsel %vm413, %v882, 0.0
        %898 = vadd.xlane.f32.xlu0 %v897
        %v899 = vpop.xlane.xlu0 %898
        %v900 = vsel %vm413, %v884, 0.0
        %901 = vadd.xlane.f32.xlu0 %v900
        %v902 = vpop.xlane.xlu0 %901
        %v903 = vsel %vm413, %v886, 0.0
        %904 = vadd.xlane.f32.xlu0 %v903
        %v905 = vpop.xlane.xlu0 %904
        %v906 = vsel %vm413, %v888, 0.0
        %907 = vadd.xlane.f32.xlu0 %v906
        %v908 = vpop.xlane.xlu0 %907
        %v909 = vsel %vm413, %v890, 0.0
        %910 = vadd.xlane.f32.xlu0 %v909
        %v911 = vpop.xlane.xlu0 %910
        %v912 = vsel %vm413, %v892, 0.0
        %913 = vadd.xlane.f32.xlu0 %v912
        %v914 = vpop.xlane.xlu0 %913
        %v915 = vsel %vm413, %v894, 0.0
        %916 = vadd.xlane.f32.xlu0 %v915
        %v917 = vpop.xlane.xlu0 %916
        %v918 = vsel %vm413, %v896, 0.0
        %919 = vadd.xlane.f32.xlu0 %v918
        %v920 = vpop.xlane.xlu0 %919
        %v921 = vrcp.pop %v899
        %v922 = vrcp.pop %v902
        %v923 = vrcp.pop %v905
        %v924 = vrcp.pop %v908
        %v925 = vrcp.pop %v911
        %v926 = vrcp.pop %v914
        %v927 = vrcp.pop %v917
        %v928 = vrcp.pop %v920
        %v929 = vmul.f32 %v882, %v921
        %v930 = vmul.f32 %v884, %v922
        %v931 = vmul.f32 %v886, %v923
        %v932 = vmul.f32 %v888, %v924
        %v933 = vmul.f32 %v890, %v925
        %v934 = vmul.f32 %v892, %v926
        %v935 = vmul.f32 %v894, %v927
        %v936 = vmul.f32 %v896, %v928
        %937 = vrot.lane.b32.xlu0 %v657, 64
        %v938 = vpop.permute.xlu0 %937
        %939 = vrot.lane.b32.xlu0 %v662, 64
        %v940 = vpop.permute.xlu0 %939
        %941 = vrot.lane.b32.xlu0 %v667, 64
        %v942 = vpop.permute.xlu0 %941
        %943 = vrot.lane.b32.xlu0 %v672, 64
        %v944 = vpop.permute.xlu0 %943
        %945 = vrot.lane.b32.xlu0 %v677, 64
        %v946 = vpop.permute.xlu0 %945
        %947 = vrot.lane.b32.xlu0 %v682, 64
        %v948 = vpop.permute.xlu0 %947
        %949 = vrot.lane.b32.xlu0 %v687, 64
        %v950 = vpop.permute.xlu0 %949
        %951 = vrot.lane.b32.xlu0 %v692, 64
        %v952 = vpop.permute.xlu0 %951
        %v962 = vsel %vm413, %v929, 0
        %v965 = vsel %vm413, %v930, 0
        %v968 = vsel %vm413, %v931, 0
        %v971 = vsel %vm413, %v932, 0
        %v974 = vsel %vm413, %v933, 0
        %v977 = vsel %vm413, %v934, 0
        %v980 = vsel %vm413, %v935, 0
        %v983 = vsel %vm413, %v936, 0
        %985 = vmatprep.subr.mxu0 0.0
        %986 = vmatpush1.msra.mxu0 %v938
        %987 = vmatprep.subr.mxu0 0.0
        %988 = vmatpush1.msra.mxu0 %v940
        %989 = vmatprep.subr.mxu0 0.0
        %990 = vmatpush1.msra.mxu0 %v942
        %991 = vmatprep.subr.mxu0 0.0
        %992 = vmatpush1.msra.mxu0 %v944
        %993 = vmatprep.subr.mxu0 0.0
        %994 = vmatpush1.msra.mxu0 %v946
        %995 = vmatprep.subr.mxu0 0.0
        %996 = vmatpush1.msra.mxu0 %v948
        %997 = vmatprep.subr.mxu0 0.0
        %998 = vmatpush1.msra.mxu0 %v950
        %999 = vmatprep.subr.mxu0 0.0
        %1000 = vmatpush1.msra.mxu0 %v952
        %1001 = vmatprep.subr.mxu0 0.0
        %1002 = vmatpush1.msra.mxu0 0.0
        %1003 = vmatprep.subr.mxu0 0.0
        %1004 = vmatpush1.msra.mxu0 0.0
        %1005 = vmatprep.subr.mxu0 0.0
        %1006 = vmatpush1.msra.mxu0 0.0
        %1007 = vmatprep.subr.mxu0 0.0
        %1008 = vmatpush1.msra.mxu0 0.0
        %1009 = vmatprep.subr.mxu0 0.0
        %1010 = vmatpush1.msra.mxu0 0.0
        %1011 = vmatprep.subr.mxu0 0.0
        %1012 = vmatpush1.msra.mxu0 0.0
        %1013 = vmatprep.subr.mxu0 0.0
        %1014 = vmatpush1.msra.mxu0 0.0
        %1015 = vmatprep.subr.mxu0 0.0
        %1016 = vmatpush1.msra.mxu0 0.0
        %1017 = vmatprep.subr.mxu0 0.0
        %1018 = vmatpush1.msra.mxu0 0.0
        %1019 = vmatprep.subr.mxu0 0.0
        %1020 = vmatpush1.msra.mxu0 0.0
        %1021 = vmatprep.subr.mxu0 0.0
        %1022 = vmatpush1.msra.mxu0 0.0
        %1023 = vmatprep.subr.mxu0 0.0
        %1024 = vmatpush1.msra.mxu0 0.0
        %1025 = vmatprep.subr.mxu0 0.0
        %1026 = vmatpush1.msra.mxu0 0.0
        %1027 = vmatprep.subr.mxu0 0.0
        %1028 = vmatpush1.msra.mxu0 0.0
        %1029 = vmatprep.subr.mxu0 0.0
        %1030 = vmatpush1.msra.mxu0 0.0
        %1031 = vmatprep.subr.mxu0 0.0
        %1032 = vmatpush1.msra.mxu0 0.0
        %1033 = vmatprep.subr.mxu0 0.0
        %1034 = vmatpush1.msra.mxu0 0.0
        %1035 = vmatprep.subr.mxu0 0.0
        %1036 = vmatpush1.msra.mxu0 0.0
        %1037 = vmatprep.subr.mxu0 0.0
        %1038 = vmatpush1.msra.mxu0 0.0
        %1039 = vmatprep.subr.mxu0 0.0
        %1040 = vmatpush1.msra.mxu0 0.0
        %1041 = vmatprep.subr.mxu0 0.0
        %1042 = vmatpush1.msra.mxu0 0.0
        %1043 = vmatprep.subr.mxu0 0.0
        %1044 = vmatpush1.msra.mxu0 0.0
        %1045 = vmatprep.subr.mxu0 0.0
        %1046 = vmatpush1.msra.mxu0 0.0
        %1047 = vmatprep.subr.mxu0 0.0
        %1048 = vmatpush1.msra.mxu0 0.0
        %1049 = vmatprep.mubr.f32.mxu0 0.0
        %1050 = vmatmul.mubr.f32.gmra.mrb[0].mxu0 %v962
        %v1051 = vpop.f32.mrb[0].mxu0
        %v1052 = vadd.f32 0.0, %v1051
        %v1053 = vpop.f32.mrb[0].mxu0
        %1054 = vmatprep.mubr.f32.mxu0 0.0
        %1055 = vmatmul.mubr.f32.gmra.mrb[0].mxu0 %v965
        %v1056 = vpop.f32.mrb[0].mxu0
        %v1057 = vadd.f32 0.0, %v1056
        %v1058 = vpop.f32.mrb[0].mxu0
        %1059 = vmatprep.mubr.f32.mxu0 0.0
        %1060 = vmatmul.mubr.f32.gmra.mrb[0].mxu0 %v968
        %v1061 = vpop.f32.mrb[0].mxu0
        %v1062 = vadd.f32 0.0, %v1061
        %v1063 = vpop.f32.mrb[0].mxu0
        %1064 = vmatprep.mubr.f32.mxu0 0.0
        %1065 = vmatmul.mubr.f32.gmra.mrb[0].mxu0 %v971
        %v1066 = vpop.f32.mrb[0].mxu0
        %v1067 = vadd.f32 0.0, %v1066
        %v1068 = vpop.f32.mrb[0].mxu0
        %1069 = vmatprep.mubr.f32.mxu0 0.0
        %1070 = vmatmul.mubr.f32.gmra.mrb[0].mxu0 %v974
        %v1071 = vpop.f32.mrb[0].mxu0
        %v1072 = vadd.f32 0.0, %v1071
        %v1073 = vpop.f32.mrb[0].mxu0
        %1074 = vmatprep.mubr.f32.mxu0 0.0
        %1075 = vmatmul.mubr.f32.gmra.mrb[0].mxu0 %v977
        %v1076 = vpop.f32.mrb[0].mxu0
        %v1077 = vadd.f32 0.0, %v1076
        %v1078 = vpop.f32.mrb[0].mxu0
        %1079 = vmatprep.mubr.f32.mxu0 0.0
        %1080 = vmatmul.mubr.f32.gmra.mrb[0].mxu0 %v980
        %v1081 = vpop.f32.mrb[0].mxu0
        %v1082 = vadd.f32 0.0, %v1081
        %v1083 = vpop.f32.mrb[0].mxu0
        %1084 = vmatprep.mubr.f32.mxu0 0.0
        %1085 = vmatmul.mubr.f32.gmra.mrb[0].mxu0 %v983
        %v1086 = vpop.f32.mrb[0].mxu0
        %v1087 = vadd.f32 0.0, %v1086
        %v1088 = vpop.f32.mrb[0].mxu0
        %1089 = vdwg.mxu0
        %1090 = vst.msk [vmem:[#allocation2] sm:$0xff] %vm695, %v1052
        %1091 = vst.msk [vmem:[#allocation2 + $0x8] sm:$0xff] %vm695, %v1057
        %1092 = vst.msk [vmem:[#allocation2 + $0x10] sm:$0xff] %vm695, %v1062
        %1093 = vst.msk [vmem:[#allocation2 + $0x18] sm:$0xff] %vm695, %v1067
        %1094 = vst.msk [vmem:[#allocation2 + $0x20] sm:$0xff] %vm695, %v1072
        %1095 = vst.msk [vmem:[#allocation2 + $0x28] sm:$0xff] %vm695, %v1077
        %1096 = vst.msk [vmem:[#allocation2 + $0x30] sm:$0xff] %vm695, %v1082
        %1097 = vst.msk [vmem:[#allocation2 + $0x38] sm:$0xff] %vm695, %v1087
        %1098 = vrot.lane.b32.xlu0 %v543, 120
        %v1099 = vpop.permute.xlu0 %1098
        %1100 = vrot.lane.b32.xlu0 %v544, 120
        %v1101 = vpop.permute.xlu0 %1100
        %1102 = vrot.lane.b32.xlu0 %v545, 120
        %v1103 = vpop.permute.xlu0 %1102
        %1104 = vrot.lane.b32.xlu0 %v546, 120
        %v1105 = vpop.permute.xlu0 %1104
        %1106 = vrot.lane.b32.xlu0 %v547, 120
        %v1107 = vpop.permute.xlu0 %1106
        %1108 = vrot.lane.b32.xlu0 %v548, 120
        %v1109 = vpop.permute.xlu0 %1108
        %1110 = vrot.lane.b32.xlu0 %v549, 120
        %v1111 = vpop.permute.xlu0 %1110
        %1112 = vrot.lane.b32.xlu0 %v550, 120
        %v1113 = vpop.permute.xlu0 %1112
        %1114 = vrot.lane.b32.xlu0 %v657, 120
        %v1115 = vpop.permute.xlu0 %1114
        %1116 = vrot.lane.b32.xlu0 %v662, 120
        %v1117 = vpop.permute.xlu0 %1116
        %1118 = vrot.lane.b32.xlu0 %v667, 120
        %v1119 = vpop.permute.xlu0 %1118
        %1120 = vrot.lane.b32.xlu0 %v672, 120
        %v1121 = vpop.permute.xlu0 %1120
        %1122 = vrot.lane.b32.xlu0 %v677, 120
        %v1123 = vpop.permute.xlu0 %1122
        %1124 = vrot.lane.b32.xlu0 %v682, 120
        %v1125 = vpop.permute.xlu0 %1124
        %1126 = vrot.lane.b32.xlu0 %v687, 120
        %v1127 = vpop.permute.xlu0 %1126
        %1128 = vrot.lane.b32.xlu0 %v692, 120
        %v1129 = vpop.permute.xlu0 %1128
        %v1130 = vsel %vm695, %v1099, 0
        %v1132 = vsel %vm695, %v1101, 0
        %v1134 = vsel %vm695, %v1103, 0
        %v1136 = vsel %vm695, %v1105, 0
        %v1138 = vsel %vm695, %v1107, 0
        %v1140 = vsel %vm695, %v1109, 0
        %v1142 = vsel %vm695, %v1111, 0
        %v1144 = vsel %vm695, %v1113, 0
        %v1146 = vsel %vm695, %v1115, 0
        %v1148 = vsel %vm695, %v1117, 0
        %v1150 = vsel %vm695, %v1119, 0
        %v1152 = vsel %vm695, %v1121, 0
        %v1154 = vsel %vm695, %v1123, 0
        %v1156 = vsel %vm695, %v1125, 0
        %v1158 = vsel %vm695, %v1127, 0
        %v1160 = vsel %vm695, %v1129, 0
        %1162 = vmatprep.subr.mxu0 0.0
        %1163 = vmatpush1.xpose.msra.mxu0 %v1146
        %1164 = vmatprep.subr.mxu0 0.0
        %1165 = vmatpush1.xpose.msra.mxu0 %v1148
        %1166 = vmatprep.subr.mxu0 0.0
        %1167 = vmatpush1.xpose.msra.mxu0 %v1150
        %1168 = vmatprep.subr.mxu0 0.0
        %1169 = vmatpush1.xpose.msra.mxu0 %v1152
        %1170 = vmatprep.subr.mxu0 0.0
        %1171 = vmatpush1.xpose.msra.mxu0 %v1154
        %1172 = vmatprep.subr.mxu0 0.0
        %1173 = vmatpush1.xpose.msra.mxu0 %v1156
        %1174 = vmatprep.subr.mxu0 0.0
        %1175 = vmatpush1.xpose.msra.mxu0 %v1158
        %1176 = vmatprep.subr.mxu0 0.0
        %1177 = vmatpush1.xpose.msra.mxu0 %v1160
        %1178 = vmatprep.subr.mxu0 0.0
        %1179 = vmatpush1.xpose.msra.mxu0 0.0
        %1180 = vmatprep.subr.mxu0 0.0
        %1181 = vmatpush1.xpose.msra.mxu0 0.0
        %1182 = vmatprep.subr.mxu0 0.0
        %1183 = vmatpush1.xpose.msra.mxu0 0.0
        %1184 = vmatprep.subr.mxu0 0.0
        %1185 = vmatpush1.xpose.msra.mxu0 0.0
        %1186 = vmatprep.subr.mxu0 0.0
        %1187 = vmatpush1.xpose.msra.mxu0 0.0
        %1188 = vmatprep.subr.mxu0 0.0
        %1189 = vmatpush1.xpose.msra.mxu0 0.0
        %1190 = vmatprep.subr.mxu0 0.0
        %1191 = vmatpush1.xpose.msra.mxu0 0.0
        %1192 = vmatprep.subr.mxu0 0.0
        %1193 = vmatpush1.xpose.msra.mxu0 0.0
        %1194 = vmatprep.subr.mxu0 0.0
        %1195 = vmatpush1.xpose.msra.mxu0 0.0
        %1196 = vmatprep.subr.mxu0 0.0
        %1197 = vmatpush1.xpose.msra.mxu0 0.0
        %1198 = vmatprep.subr.mxu0 0.0
        %1199 = vmatpush1.xpose.msra.mxu0 0.0
        %1200 = vmatprep.subr.mxu0 0.0
        %1201 = vmatpush1.xpose.msra.mxu0 0.0
        %1202 = vmatprep.subr.mxu0 0.0
        %1203 = vmatpush1.xpose.msra.mxu0 0.0
        %1204 = vmatprep.subr.mxu0 0.0
        %1205 = vmatpush1.xpose.msra.mxu0 0.0
        %1206 = vmatprep.subr.mxu0 0.0
        %1207 = vmatpush1.xpose.msra.mxu0 0.0
        %1208 = vmatprep.subr.mxu0 0.0
        %1209 = vmatpush1.xpose.msra.mxu0 0.0
        %1210 = vmatprep.subr.mxu0 0.0
        %1211 = vmatpush1.xpose.msra.mxu0 0.0
        %1212 = vmatprep.subr.mxu0 0.0
        %1213 = vmatpush1.xpose.msra.mxu0 0.0
        %1214 = vmatprep.subr.mxu0 0.0
        %1215 = vmatpush1.xpose.msra.mxu0 0.0
        %1216 = vmatprep.subr.mxu0 0.0
        %1217 = vmatpush1.xpose.msra.mxu0 0.0
        %1218 = vmatprep.subr.mxu0 0.0
        %1219 = vmatpush1.xpose.msra.mxu0 0.0
        %1220 = vmatprep.subr.mxu0 0.0
        %1221 = vmatpush1.xpose.msra.mxu0 0.0
        %1222 = vmatprep.subr.mxu0 0.0
        %1223 = vmatpush1.xpose.msra.mxu0 0.0
        %1224 = vmatprep.subr.mxu0 0.0
        %1225 = vmatpush1.xpose.msra.mxu0 0.0
        %1226 = vmatprep.mubr.f32.mxu0 0.0
        %1227 = vmatmul.mubr.f32.gmra.mrb[0].mxu0 %v1130
        %v1228 = vpop.f32.mrb[0].mxu0
        %v1229 = vadd.f32 0.0, %v1228
        %v1230 = vpop.f32.mrb[0].mxu0
        %1231 = vmatprep.mubr.f32.mxu0 0.0
        %1232 = vmatmul.mubr.f32.gmra.mrb[0].mxu0 %v1132
        %v1233 = vpop.f32.mrb[0].mxu0
        %v1234 = vadd.f32 0.0, %v1233
        %v1235 = vpop.f32.mrb[0].mxu0
        %1236 = vmatprep.mubr.f32.mxu0 0.0
        %1237 = vmatmul.mubr.f32.gmra.mrb[0].mxu0 %v1134
        %v1238 = vpop.f32.mrb[0].mxu0
        %v1239 = vadd.f32 0.0, %v1238
        %v1240 = vpop.f32.mrb[0].mxu0
        %1241 = vmatprep.mubr.f32.mxu0 0.0
        %1242 = vmatmul.mubr.f32.gmra.mrb[0].mxu0 %v1136
        %v1243 = vpop.f32.mrb[0].mxu0
        %v1244 = vadd.f32 0.0, %v1243
        %v1245 = vpop.f32.mrb[0].mxu0
        %1246 = vmatprep.mubr.f32.mxu0 0.0
        %1247 = vmatmul.mubr.f32.gmra.mrb[0].mxu0 %v1138
        %v1248 = vpop.f32.mrb[0].mxu0
        %v1249 = vadd.f32 0.0, %v1248
        %v1250 = vpop.f32.mrb[0].mxu0
        %1251 = vmatprep.mubr.f32.mxu0 0.0
        %1252 = vmatmul.mubr.f32.gmra.mrb[0].mxu0 %v1140
        %v1253 = vpop.f32.mrb[0].mxu0
        %v1254 = vadd.f32 0.0, %v1253
        %v1255 = vpop.f32.mrb[0].mxu0
        %1256 = vmatprep.mubr.f32.mxu0 0.0
        %1257 = vmatmul.mubr.f32.gmra.mrb[0].mxu0 %v1142
        %v1258 = vpop.f32.mrb[0].mxu0
        %v1259 = vadd.f32 0.0, %v1258
        %v1260 = vpop.f32.mrb[0].mxu0
        %1261 = vmatprep.mubr.f32.mxu0 0.0
        %1262 = vmatmul.mubr.f32.gmra.mrb[0].mxu0 %v1144
        %v1263 = vpop.f32.mrb[0].mxu0
        %v1264 = vadd.f32 0.0, %v1263
        %v1265 = vpop.f32.mrb[0].mxu0
        %1266 = vdwg.mxu0
        %v1267 = vsel %vm413, %v1229, -inf
        %1268 = vmax.xlane.f32.xlu0 %v1267
        %v1269 = vpop.xlane.xlu0 %1268
        %v1270 = vsel %vm413, %v1234, -inf
        %1271 = vmax.xlane.f32.xlu0 %v1270
        %v1272 = vpop.xlane.xlu0 %1271
        %v1273 = vsel %vm413, %v1239, -inf
        %1274 = vmax.xlane.f32.xlu0 %v1273
        %v1275 = vpop.xlane.xlu0 %1274
        %v1276 = vsel %vm413, %v1244, -inf
        %1277 = vmax.xlane.f32.xlu0 %v1276
        %v1278 = vpop.xlane.xlu0 %1277
        %v1279 = vsel %vm413, %v1249, -inf
        %1280 = vmax.xlane.f32.xlu0 %v1279
        %v1281 = vpop.xlane.xlu0 %1280
        %v1282 = vsel %vm413, %v1254, -inf
        %1283 = vmax.xlane.f32.xlu0 %v1282
        %v1284 = vpop.xlane.xlu0 %1283
        %v1285 = vsel %vm413, %v1259, -inf
        %1286 = vmax.xlane.f32.xlu0 %v1285
        %v1287 = vpop.xlane.xlu0 %1286
        %v1288 = vsel %vm413, %v1264, -inf
        %1289 = vmax.xlane.f32.xlu0 %v1288
        %v1290 = vpop.xlane.xlu0 %1289
        %v1291 = vsub.f32 %v1229, %v1269
        %v1292 = vsub.f32 %v1234, %v1272
        %v1293 = vsub.f32 %v1239, %v1275
        %v1294 = vsub.f32 %v1244, %v1278
        %v1295 = vsub.f32 %v1249, %v1281
        %v1296 = vsub.f32 %v1254, %v1284
        %v1297 = vsub.f32 %v1259, %v1287
        %v1298 = vsub.f32 %v1264, %v1290
        %v1299 = vmul.f32 %v1291, 1.442695
        %v1300 = vpow.pop %v1299
        %v1301 = vmul.f32 %v1292, 1.442695
        %v1302 = vpow.pop %v1301
        %v1303 = vmul.f32 %v1293, 1.442695
        %v1304 = vpow.pop %v1303
        %v1305 = vmul.f32 %v1294, 1.442695
        %v1306 = vpow.pop %v1305
        %v1307 = vmul.f32 %v1295, 1.442695
        %v1308 = vpow.pop %v1307
        %v1309 = vmul.f32 %v1296, 1.442695
        %v1310 = vpow.pop %v1309
        %v1311 = vmul.f32 %v1297, 1.442695
        %v1312 = vpow.pop %v1311
        %v1313 = vmul.f32 %v1298, 1.442695
        %v1314 = vpow.pop %v1313
        %v1315 = vsel %vm413, %v1300, 0.0
        %1316 = vadd.xlane.f32.xlu0 %v1315
        %v1317 = vpop.xlane.xlu0 %1316
        %v1318 = vsel %vm413, %v1302, 0.0
        %1319 = vadd.xlane.f32.xlu0 %v1318
        %v1320 = vpop.xlane.xlu0 %1319
        %v1321 = vsel %vm413, %v1304, 0.0
        %1322 = vadd.xlane.f32.xlu0 %v1321
        %v1323 = vpop.xlane.xlu0 %1322
        %v1324 = vsel %vm413, %v1306, 0.0
        %1325 = vadd.xlane.f32.xlu0 %v1324
        %v1326 = vpop.xlane.xlu0 %1325
        %v1327 = vsel %vm413, %v1308, 0.0
        %1328 = vadd.xlane.f32.xlu0 %v1327
        %v1329 = vpop.xlane.xlu0 %1328
        %v1330 = vsel %vm413, %v1310, 0.0
        %1331 = vadd.xlane.f32.xlu0 %v1330
        %v1332 = vpop.xlane.xlu0 %1331
        %v1333 = vsel %vm413, %v1312, 0.0
        %1334 = vadd.xlane.f32.xlu0 %v1333
        %v1335 = vpop.xlane.xlu0 %1334
        %v1336 = vsel %vm413, %v1314, 0.0
        %1337 = vadd.xlane.f32.xlu0 %v1336
        %v1338 = vpop.xlane.xlu0 %1337
        %v1339 = vrcp.pop %v1317
        %v1340 = vrcp.pop %v1320
        %v1341 = vrcp.pop %v1323
        %v1342 = vrcp.pop %v1326
        %v1343 = vrcp.pop %v1329
        %v1344 = vrcp.pop %v1332
        %v1345 = vrcp.pop %v1335
        %v1346 = vrcp.pop %v1338
        %v1347 = vmul.f32 %v1300, %v1339
        %v1348 = vmul.f32 %v1302, %v1340
        %v1349 = vmul.f32 %v1304, %v1341
        %v1350 = vmul.f32 %v1306, %v1342
        %v1351 = vmul.f32 %v1308, %v1343
        %v1352 = vmul.f32 %v1310, %v1344
        %v1353 = vmul.f32 %v1312, %v1345
        %v1354 = vmul.f32 %v1314, %v1346
        %1355 = vrot.lane.b32.xlu0 %v657, 56
        %v1356 = vpop.permute.xlu0 %1355
        %1357 = vrot.lane.b32.xlu0 %v662, 56
        %v1358 = vpop.permute.xlu0 %1357
        %1359 = vrot.lane.b32.xlu0 %v667, 56
        %v1360 = vpop.permute.xlu0 %1359
        %1361 = vrot.lane.b32.xlu0 %v672, 56
        %v1362 = vpop.permute.xlu0 %1361
        %1363 = vrot.lane.b32.xlu0 %v677, 56
        %v1364 = vpop.permute.xlu0 %1363
        %1365 = vrot.lane.b32.xlu0 %v682, 56
        %v1366 = vpop.permute.xlu0 %1365
        %1367 = vrot.lane.b32.xlu0 %v687, 56
        %v1368 = vpop.permute.xlu0 %1367
        %1369 = vrot.lane.b32.xlu0 %v692, 56
        %v1370 = vpop.permute.xlu0 %1369
        %v1380 = vsel %vm413, %v1347, 0
        %v1383 = vsel %vm413, %v1348, 0
        %v1386 = vsel %vm413, %v1349, 0
        %v1389 = vsel %vm413, %v1350, 0
        %v1392 = vsel %vm413, %v1351, 0
        %v1395 = vsel %vm413, %v1352, 0
        %v1398 = vsel %vm413, %v1353, 0
        %v1401 = vsel %vm413, %v1354, 0
        %1403 = vmatprep.subr.mxu0 0.0
        %1404 = vmatpush1.msra.mxu0 %v1356
        %1405 = vmatprep.subr.mxu0 0.0
        %1406 = vmatpush1.msra.mxu0 %v1358
        %1407 = vmatprep.subr.mxu0 0.0
        %1408 = vmatpush1.msra.mxu0 %v1360
        %1409 = vmatprep.subr.mxu0 0.0
        %1410 = vmatpush1.msra.mxu0 %v1362
        %1411 = vmatprep.subr.mxu0 0.0
        %1412 = vmatpush1.msra.mxu0 %v1364
        %1413 = vmatprep.subr.mxu0 0.0
        %1414 = vmatpush1.msra.mxu0 %v1366
        %1415 = vmatprep.subr.mxu0 0.0
        %1416 = vmatpush1.msra.mxu0 %v1368
        %1417 = vmatprep.subr.mxu0 0.0
        %1418 = vmatpush1.msra.mxu0 %v1370
        %1419 = vmatprep.subr.mxu0 0.0
        %1420 = vmatpush1.msra.mxu0 0.0
        %1421 = vmatprep.subr.mxu0 0.0
        %1422 = vmatpush1.msra.mxu0 0.0
        %1423 = vmatprep.subr.mxu0 0.0
        %1424 = vmatpush1.msra.mxu0 0.0
        %1425 = vmatprep.subr.mxu0 0.0
        %1426 = vmatpush1.msra.mxu0 0.0
        %1427 = vmatprep.subr.mxu0 0.0
        %1428 = vmatpush1.msra.mxu0 0.0
        %1429 = vmatprep.subr.mxu0 0.0
        %1430 = vmatpush1.msra.mxu0 0.0
        %1431 = vmatprep.subr.mxu0 0.0
        %1432 = vmatpush1.msra.mxu0 0.0
        %1433 = vmatprep.subr.mxu0 0.0
        %1434 = vmatpush1.msra.mxu0 0.0
        %1435 = vmatprep.subr.mxu0 0.0
        %1436 = vmatpush1.msra.mxu0 0.0
        %1437 = vmatprep.subr.mxu0 0.0
        %1438 = vmatpush1.msra.mxu0 0.0
        %1439 = vmatprep.subr.mxu0 0.0
        %1440 = vmatpush1.msra.mxu0 0.0
        %1441 = vmatprep.subr.mxu0 0.0
        %1442 = vmatpush1.msra.mxu0 0.0
        %1443 = vmatprep.subr.mxu0 0.0
        %1444 = vmatpush1.msra.mxu0 0.0
        %1445 = vmatprep.subr.mxu0 0.0
        %1446 = vmatpush1.msra.mxu0 0.0
        %1447 = vmatprep.subr.mxu0 0.0
        %1448 = vmatpush1.msra.mxu0 0.0
        %1449 = vmatprep.subr.mxu0 0.0
        %1450 = vmatpush1.msra.mxu0 0.0
        %1451 = vmatprep.subr.mxu0 0.0
        %1452 = vmatpush1.msra.mxu0 0.0
        %1453 = vmatprep.subr.mxu0 0.0
        %1454 = vmatpush1.msra.mxu0 0.0
        %1455 = vmatprep.subr.mxu0 0.0
        %1456 = vmatpush1.msra.mxu0 0.0
        %1457 = vmatprep.subr.mxu0 0.0
        %1458 = vmatpush1.msra.mxu0 0.0
        %1459 = vmatprep.subr.mxu0 0.0
        %1460 = vmatpush1.msra.mxu0 0.0
        %1461 = vmatprep.subr.mxu0 0.0
        %1462 = vmatpush1.msra.mxu0 0.0
        %1463 = vmatprep.subr.mxu0 0.0
        %1464 = vmatpush1.msra.mxu0 0.0
        %1465 = vmatprep.subr.mxu0 0.0
        %1466 = vmatpush1.msra.mxu0 0.0
        %1467 = vmatprep.mubr.f32.mxu0 0.0
        %1468 = vmatmul.mubr.f32.gmra.mrb[0].mxu0 %v1380
        %v1469 = vpop.f32.mrb[0].mxu0
        %v1470 = vadd.f32 0.0, %v1469
        %v1471 = vpop.f32.mrb[0].mxu0
        %1472 = vmatprep.mubr.f32.mxu0 0.0
        %1473 = vmatmul.mubr.f32.gmra.mrb[0].mxu0 %v1383
        %v1474 = vpop.f32.mrb[0].mxu0
        %v1475 = vadd.f32 0.0, %v1474
        %v1476 = vpop.f32.mrb[0].mxu0
        %1477 = vmatprep.mubr.f32.mxu0 0.0
        %1478 = vmatmul.mubr.f32.gmra.mrb[0].mxu0 %v1386
        %v1479 = vpop.f32.mrb[0].mxu0
        %v1480 = vadd.f32 0.0, %v1479
        %v1481 = vpop.f32.mrb[0].mxu0
        %1482 = vmatprep.mubr.f32.mxu0 0.0
        %1483 = vmatmul.mubr.f32.gmra.mrb[0].mxu0 %v1389
        %v1484 = vpop.f32.mrb[0].mxu0
        %v1485 = vadd.f32 0.0, %v1484
        %v1486 = vpop.f32.mrb[0].mxu0
        %1487 = vmatprep.mubr.f32.mxu0 0.0
        %1488 = vmatmul.mubr.f32.gmra.mrb[0].mxu0 %v1392
        %v1489 = vpop.f32.mrb[0].mxu0
        %v1490 = vadd.f32 0.0, %v1489
        %v1491 = vpop.f32.mrb[0].mxu0
        %1492 = vmatprep.mubr.f32.mxu0 0.0
        %1493 = vmatmul.mubr.f32.gmra.mrb[0].mxu0 %v1395
        %v1494 = vpop.f32.mrb[0].mxu0
        %v1495 = vadd.f32 0.0, %v1494
        %v1496 = vpop.f32.mrb[0].mxu0
        %1497 = vmatprep.mubr.f32.mxu0 0.0
        %1498 = vmatmul.mubr.f32.gmra.mrb[0].mxu0 %v1398
        %v1499 = vpop.f32.mrb[0].mxu0
        %v1500 = vadd.f32 0.0, %v1499
        %v1501 = vpop.f32.mrb[0].mxu0
        %1502 = vmatprep.mubr.f32.mxu0 0.0
        %1503 = vmatmul.mubr.f32.gmra.mrb[0].mxu0 %v1401
        %v1504 = vpop.f32.mrb[0].mxu0
        %v1505 = vadd.f32 0.0, %v1504
        %v1506 = vpop.f32.mrb[0].mxu0
        %1507 = vdwg.mxu0
        %1516 = vrot.lane.b32.xlu0 %v1470, 8
        %v1517 = vpop.permute.xlu0 %1516
        %1518 = vrot.lane.b32.xlu0 %v1475, 8
        %v1519 = vpop.permute.xlu0 %1518
        %1520 = vrot.lane.b32.xlu0 %v1480, 8
        %v1521 = vpop.permute.xlu0 %1520
        %1522 = vrot.lane.b32.xlu0 %v1485, 8
        %v1523 = vpop.permute.xlu0 %1522
        %1524 = vrot.lane.b32.xlu0 %v1490, 8
        %v1525 = vpop.permute.xlu0 %1524
        %1526 = vrot.lane.b32.xlu0 %v1495, 8
        %v1527 = vpop.permute.xlu0 %1526
        %1528 = vrot.lane.b32.xlu0 %v1500, 8
        %v1529 = vpop.permute.xlu0 %1528
        %1530 = vrot.lane.b32.xlu0 %v1505, 8
        %v1531 = vpop.permute.xlu0 %1530
        %vm1540 = vcmask 130112
        %1541 = vst.msk [vmem:[#allocation2] sm:$0xff] %vm1540, %v1517
        %1542 = vst.msk [vmem:[#allocation2 + $0x8] sm:$0xff] %vm1540, %v1519
        %1543 = vst.msk [vmem:[#allocation2 + $0x10] sm:$0xff] %vm1540, %v1521
        %1544 = vst.msk [vmem:[#allocation2 + $0x18] sm:$0xff] %vm1540, %v1523
        %1545 = vst.msk [vmem:[#allocation2 + $0x20] sm:$0xff] %vm1540, %v1525
        %1546 = vst.msk [vmem:[#allocation2 + $0x28] sm:$0xff] %vm1540, %v1527
        %1547 = vst.msk [vmem:[#allocation2 + $0x30] sm:$0xff] %vm1540, %v1529
        %1548 = vst.msk [vmem:[#allocation2 + $0x38] sm:$0xff] %vm1540, %v1531
        %1549 = vrot.lane.b32.xlu0 %v543, 112
        %v1550 = vpop.permute.xlu0 %1549
        %1551 = vrot.lane.b32.xlu0 %v544, 112
        %v1552 = vpop.permute.xlu0 %1551
        %1553 = vrot.lane.b32.xlu0 %v545, 112
        %v1554 = vpop.permute.xlu0 %1553
        %1555 = vrot.lane.b32.xlu0 %v546, 112
        %v1556 = vpop.permute.xlu0 %1555
        %1557 = vrot.lane.b32.xlu0 %v547, 112
        %v1558 = vpop.permute.xlu0 %1557
        %1559 = vrot.lane.b32.xlu0 %v548, 112
        %v1560 = vpop.permute.xlu0 %1559
        %1561 = vrot.lane.b32.xlu0 %v549, 112
        %v1562 = vpop.permute.xlu0 %1561
        %1563 = vrot.lane.b32.xlu0 %v550, 112
        %v1564 = vpop.permute.xlu0 %1563
        %1565 = vrot.lane.b32.xlu0 %v657, 112
        %v1566 = vpop.permute.xlu0 %1565
        %1567 = vrot.lane.b32.xlu0 %v662, 112
        %v1568 = vpop.permute.xlu0 %1567
        %1569 = vrot.lane.b32.xlu0 %v667, 112
        %v1570 = vpop.permute.xlu0 %1569
        %1571 = vrot.lane.b32.xlu0 %v672, 112
        %v1572 = vpop.permute.xlu0 %1571
        %1573 = vrot.lane.b32.xlu0 %v677, 112
        %v1574 = vpop.permute.xlu0 %1573
        %1575 = vrot.lane.b32.xlu0 %v682, 112
        %v1576 = vpop.permute.xlu0 %1575
        %1577 = vrot.lane.b32.xlu0 %v687, 112
        %v1578 = vpop.permute.xlu0 %1577
        %1579 = vrot.lane.b32.xlu0 %v692, 112
        %v1580 = vpop.permute.xlu0 %1579
        %v1581 = vsel %vm695, %v1550, 0
        %v1583 = vsel %vm695, %v1552, 0
        %v1585 = vsel %vm695, %v1554, 0
        %v1587 = vsel %vm695, %v1556, 0
        %v1589 = vsel %vm695, %v1558, 0
        %v1591 = vsel %vm695, %v1560, 0
        %v1593 = vsel %vm695, %v1562, 0
        %v1595 = vsel %vm695, %v1564, 0
        %v1597 = vsel %vm695, %v1566, 0
        %v1599 = vsel %vm695, %v1568, 0
        %v1601 = vsel %vm695, %v1570, 0
        %v1603 = vsel %vm695, %v1572, 0
        %v1605 = vsel %vm695, %v1574, 0
        %v1607 = vsel %vm695, %v1576, 0
        %v1609 = vsel %vm695, %v1578, 0
        %v1611 = vsel %vm695, %v1580, 0
        %1613 = vmatprep.subr.mxu0 0.0
        %1614 = vmatpush1.xpose.msra.mxu0 %v1597
        %1615 = vmatprep.subr.mxu0 0.0
        %1616 = vmatpush1.xpose.msra.mxu0 %v1599
        %1617 = vmatprep.subr.mxu0 0.0
        %1618 = vmatpush1.xpose.msra.mxu0 %v1601
        %1619 = vmatprep.subr.mxu0 0.0
        %1620 = vmatpush1.xpose.msra.mxu0 %v1603
        %1621 = vmatprep.subr.mxu0 0.0
        %1622 = vmatpush1.xpose.msra.mxu0 %v1605
        %1623 = vmatprep.subr.mxu0 0.0
        %1624 = vmatpush1.xpose.msra.mxu0 %v1607
        %1625 = vmatprep.subr.mxu0 0.0
        %1626 = vmatpush1.xpose.msra.mxu0 %v1609
        %1627 = vmatprep.subr.mxu0 0.0
        %1628 = vmatpush1.xpose.msra.mxu0 %v1611
        %1629 = vmatprep.subr.mxu0 0.0
        %1630 = vmatpush1.xpose.msra.mxu0 0.0
        %1631 = vmatprep.subr.mxu0 0.0
        %1632 = vmatpush1.xpose.msra.mxu0 0.0
        %1633 = vmatprep.subr.mxu0 0.0
        %1634 = vmatpush1.xpose.msra.mxu0 0.0
        %1635 = vmatprep.subr.mxu0 0.0
        %1636 = vmatpush1.xpose.msra.mxu0 0.0
        %1637 = vmatprep.subr.mxu0 0.0
        %1638 = vmatpush1.xpose.msra.mxu0 0.0
        %1639 = vmatprep.subr.mxu0 0.0
        %1640 = vmatpush1.xpose.msra.mxu0 0.0
        %1641 = vmatprep.subr.mxu0 0.0
        %1642 = vmatpush1.xpose.msra.mxu0 0.0
        %1643 = vmatprep.subr.mxu0 0.0
        %1644 = vmatpush1.xpose.msra.mxu0 0.0
        %1645 = vmatprep.subr.mxu0 0.0
        %1646 = vmatpush1.xpose.msra.mxu0 0.0
        %1647 = vmatprep.subr.mxu0 0.0
        %1648 = vmatpush1.xpose.msra.mxu0 0.0
        %1649 = vmatprep.subr.mxu0 0.0
        %1650 = vmatpush1.xpose.msra.mxu0 0.0
        %1651 = vmatprep.subr.mxu0 0.0
        %1652 = vmatpush1.xpose.msra.mxu0 0.0
        %1653 = vmatprep.subr.mxu0 0.0
        %1654 = vmatpush1.xpose.msra.mxu0 0.0
        %1655 = vmatprep.subr.mxu0 0.0
        %1656 = vmatpush1.xpose.msra.mxu0 0.0
        %1657 = vmatprep.subr.mxu0 0.0
        %1658 = vmatpush1.xpose.msra.mxu0 0.0
        %1659 = vmatprep.subr.mxu0 0.0
        %1660 = vmatpush1.xpose.msra.mxu0 0.0
        %1661 = vmatprep.subr.mxu0 0.0
        %1662 = vmatpush1.xpose.msra.mxu0 0.0
        %1663 = vmatprep.subr.mxu0 0.0
        %1664 = vmatpush1.xpose.msra.mxu0 0.0
        %1665 = vmatprep.subr.mxu0 0.0
        %1666 = vmatpush1.xpose.msra.mxu0 0.0
        %1667 = vmatprep.subr.mxu0 0.0
        %1668 = vmatpush1.xpose.msra.mxu0 0.0
        %1669 = vmatprep.subr.mxu0 0.0
        %1670 = vmatpush1.xpose.msra.mxu0 0.0
        %1671 = vmatprep.subr.mxu0 0.0
        %1672 = vmatpush1.xpose.msra.mxu0 0.0
        %1673 = vmatprep.subr.mxu0 0.0
        %1674 = vmatpush1.xpose.msra.mxu0 0.0
        %1675 = vmatprep.subr.mxu0 0.0
        %1676 = vmatpush1.xpose.msra.mxu0 0.0
        %1677 = vmatprep.mubr.f32.mxu0 0.0
        %1678 = vmatmul.mubr.f32.gmra.mrb[0].mxu0 %v1581
        %v1679 = vpop.f32.mrb[0].mxu0
        %v1680 = vadd.f32 0.0, %v1679
        %v1681 = vpop.f32.mrb[0].mxu0
        %1682 = vmatprep.mubr.f32.mxu0 0.0
        %1683 = vmatmul.mubr.f32.gmra.mrb[0].mxu0 %v1583
        %v1684 = vpop.f32.mrb[0].mxu0
        %v1685 = vadd.f32 0.0, %v1684
        %v1686 = vpop.f32.mrb[0].mxu0
        %1687 = vmatprep.mubr.f32.mxu0 0.0
        %1688 = vmatmul.mubr.f32.gmra.mrb[0].mxu0 %v1585
        %v1689 = vpop.f32.mrb[0].mxu0
        %v1690 = vadd.f32 0.0, %v1689
        %v1691 = vpop.f32.mrb[0].mxu0
        %1692 = vmatprep.mubr.f32.mxu0 0.0
        %1693 = vmatmul.mubr.f32.gmra.mrb[0].mxu0 %v1587
        %v1694 = vpop.f32.mrb[0].mxu0
        %v1695 = vadd.f32 0.0, %v1694
        %v1696 = vpop.f32.mrb[0].mxu0
        %1697 = vmatprep.mubr.f32.mxu0 0.0
        %1698 = vmatmul.mubr.f32.gmra.mrb[0].mxu0 %v1589
        %v1699 = vpop.f32.mrb[0].mxu0
        %v1700 = vadd.f32 0.0, %v1699
        %v1701 = vpop.f32.mrb[0].mxu0
        %1702 = vmatprep.mubr.f32.mxu0 0.0
        %1703 = vmatmul.mubr.f32.gmra.mrb[0].mxu0 %v1591
        %v1704 = vpop.f32.mrb[0].mxu0
        %v1705 = vadd.f32 0.0, %v1704
        %v1706 = vpop.f32.mrb[0].mxu0
        %1707 = vmatprep.mubr.f32.mxu0 0.0
        %1708 = vmatmul.mubr.f32.gmra.mrb[0].mxu0 %v1593
        %v1709 = vpop.f32.mrb[0].mxu0
        %v1710 = vadd.f32 0.0, %v1709
        %v1711 = vpop.f32.mrb[0].mxu0
        %1712 = vmatprep.mubr.f32.mxu0 0.0
        %1713 = vmatmul.mubr.f32.gmra.mrb[0].mxu0 %v1595
        %v1714 = vpop.f32.mrb[0].mxu0
        %v1715 = vadd.f32 0.0, %v1714
        %v1716 = vpop.f32.mrb[0].mxu0
        %1717 = vdwg.mxu0
        %v1718 = vsel %vm413, %v1680, -inf
        %1719 = vmax.xlane.f32.xlu0 %v1718
        %v1720 = vpop.xlane.xlu0 %1719
        %v1721 = vsel %vm413, %v1685, -inf
        %1722 = vmax.xlane.f32.xlu0 %v1721
        %v1723 = vpop.xlane.xlu0 %1722
        %v1724 = vsel %vm413, %v1690, -inf
        %1725 = vmax.xlane.f32.xlu0 %v1724
        %v1726 = vpop.xlane.xlu0 %1725
        %v1727 = vsel %vm413, %v1695, -inf
        %1728 = vmax.xlane.f32.xlu0 %v1727
        %v1729 = vpop.xlane.xlu0 %1728
        %v1730 = vsel %vm413, %v1700, -inf
        %1731 = vmax.xlane.f32.xlu0 %v1730
        %v1732 = vpop.xlane.xlu0 %1731
        %v1733 = vsel %vm413, %v1705, -inf
        %1734 = vmax.xlane.f32.xlu0 %v1733
        %v1735 = vpop.xlane.xlu0 %1734
        %v1736 = vsel %vm413, %v1710, -inf
        %1737 = vmax.xlane.f32.xlu0 %v1736
        %v1738 = vpop.xlane.xlu0 %1737
        %v1739 = vsel %vm413, %v1715, -inf
        %1740 = vmax.xlane.f32.xlu0 %v1739
        %v1741 = vpop.xlane.xlu0 %1740
        %v1742 = vsub.f32 %v1680, %v1720
        %v1743 = vsub.f32 %v1685, %v1723
        %v1744 = vsub.f32 %v1690, %v1726
        %v1745 = vsub.f32 %v1695, %v1729
        %v1746 = vsub.f32 %v1700, %v1732
        %v1747 = vsub.f32 %v1705, %v1735
        %v1748 = vsub.f32 %v1710, %v1738
        %v1749 = vsub.f32 %v1715, %v1741
        %v1750 = vmul.f32 %v1742, 1.442695
        %v1751 = vpow.pop %v1750
        %v1752 = vmul.f32 %v1743, 1.442695
        %v1753 = vpow.pop %v1752
        %v1754 = vmul.f32 %v1744, 1.442695
        %v1755 = vpow.pop %v1754
        %v1756 = vmul.f32 %v1745, 1.442695
        %v1757 = vpow.pop %v1756
        %v1758 = vmul.f32 %v1746, 1.442695
        %v1759 = vpow.pop %v1758
        %v1760 = vmul.f32 %v1747, 1.442695
        %v1761 = vpow.pop %v1760
        %v1762 = vmul.f32 %v1748, 1.442695
        %v1763 = vpow.pop %v1762
        %v1764 = vmul.f32 %v1749, 1.442695
        %v1765 = vpow.pop %v1764
        %v1766 = vsel %vm413, %v1751, 0.0
        %1767 = vadd.xlane.f32.xlu0 %v1766
        %v1768 = vpop.xlane.xlu0 %1767
        %v1769 = vsel %vm413, %v1753, 0.0
        %1770 = vadd.xlane.f32.xlu0 %v1769
        %v1771 = vpop.xlane.xlu0 %1770
        %v1772 = vsel %vm413, %v1755, 0.0
        %1773 = vadd.xlane.f32.xlu0 %v1772
        %v1774 = vpop.xlane.xlu0 %1773
        %v1775 = vsel %vm413, %v1757, 0.0
        %1776 = vadd.xlane.f32.xlu0 %v1775
        %v1777 = vpop.xlane.xlu0 %1776
        %v1778 = vsel %vm413, %v1759, 0.0
        %1779 = vadd.xlane.f32.xlu0 %v1778
        %v1780 = vpop.xlane.xlu0 %1779
        %v1781 = vsel %vm413, %v1761, 0.0
        %1782 = vadd.xlane.f32.xlu0 %v1781
        %v1783 = vpop.xlane.xlu0 %1782
        %v1784 = vsel %vm413, %v1763, 0.0
        %1785 = vadd.xlane.f32.xlu0 %v1784
        %v1786 = vpop.xlane.xlu0 %1785
        %v1787 = vsel %vm413, %v1765, 0.0
        %1788 = vadd.xlane.f32.xlu0 %v1787
        %v1789 = vpop.xlane.xlu0 %1788
        %v1790 = vrcp.pop %v1768
        %v1791 = vrcp.pop %v1771
        %v1792 = vrcp.pop %v1774
        %v1793 = vrcp.pop %v1777
        %v1794 = vrcp.pop %v1780
        %v1795 = vrcp.pop %v1783
        %v1796 = vrcp.pop %v1786
        %v1797 = vrcp.pop %v1789
        %v1798 = vmul.f32 %v1751, %v1790
        %v1799 = vmul.f32 %v1753, %v1791
        %v1800 = vmul.f32 %v1755, %v1792
        %v1801 = vmul.f32 %v1757, %v1793
        %v1802 = vmul.f32 %v1759, %v1794
        %v1803 = vmul.f32 %v1761, %v1795
        %v1804 = vmul.f32 %v1763, %v1796
        %v1805 = vmul.f32 %v1765, %v1797
        %1806 = vrot.lane.b32.xlu0 %v657, 48
        %v1807 = vpop.permute.xlu0 %1806
        %1808 = vrot.lane.b32.xlu0 %v662, 48
        %v1809 = vpop.permute.xlu0 %1808
        %1810 = vrot.lane.b32.xlu0 %v667, 48
        %v1811 = vpop.permute.xlu0 %1810
        %1812 = vrot.lane.b32.xlu0 %v672, 48
        %v1813 = vpop.permute.xlu0 %1812
        %1814 = vrot.lane.b32.xlu0 %v677, 48
        %v1815 = vpop.permute.xlu0 %1814
        %1816 = vrot.lane.b32.xlu0 %v682, 48
        %v1817 = vpop.permute.xlu0 %1816
        %1818 = vrot.lane.b32.xlu0 %v687, 48
        %v1819 = vpop.permute.xlu0 %1818
        %1820 = vrot.lane.b32.xlu0 %v692, 48
        %v1821 = vpop.permute.xlu0 %1820
        %v1831 = vsel %vm413, %v1798, 0
        %v1834 = vsel %vm413, %v1799, 0
        %v1837 = vsel %vm413, %v1800, 0
        %v1840 = vsel %vm413, %v1801, 0
        %v1843 = vsel %vm413, %v1802, 0
        %v1846 = vsel %vm413, %v1803, 0
        %v1849 = vsel %vm413, %v1804, 0
        %v1852 = vsel %vm413, %v1805, 0
        %1854 = vmatprep.subr.mxu0 0.0
        %1855 = vmatpush1.msra.mxu0 %v1807
        %1856 = vmatprep.subr.mxu0 0.0
        %1857 = vmatpush1.msra.mxu0 %v1809
        %1858 = vmatprep.subr.mxu0 0.0
        %1859 = vmatpush1.msra.mxu0 %v1811
        %1860 = vmatprep.subr.mxu0 0.0
        %1861 = vmatpush1.msra.mxu0 %v1813
        %1862 = vmatprep.subr.mxu0 0.0
        %1863 = vmatpush1.msra.mxu0 %v1815
        %1864 = vmatprep.subr.mxu0 0.0
        %1865 = vmatpush1.msra.mxu0 %v1817
        %1866 = vmatprep.subr.mxu0 0.0
        %1867 = vmatpush1.msra.mxu0 %v1819
        %1868 = vmatprep.subr.mxu0 0.0
        %1869 = vmatpush1.msra.mxu0 %v1821
        %1870 = vmatprep.subr.mxu0 0.0
        %1871 = vmatpush1.msra.mxu0 0.0
        %1872 = vmatprep.subr.mxu0 0.0
        %1873 = vmatpush1.msra.mxu0 0.0
        %1874 = vmatprep.subr.mxu0 0.0
        %1875 = vmatpush1.msra.mxu0 0.0
        %1876 = vmatprep.subr.mxu0 0.0
        %1877 = vmatpush1.msra.mxu0 0.0
        %1878 = vmatprep.subr.mxu0 0.0
        %1879 = vmatpush1.msra.mxu0 0.0
        %1880 = vmatprep.subr.mxu0 0.0
        %1881 = vmatpush1.msra.mxu0 0.0
        %1882 = vmatprep.subr.mxu0 0.0
        %1883 = vmatpush1.msra.mxu0 0.0
        %1884 = vmatprep.subr.mxu0 0.0
        %1885 = vmatpush1.msra.mxu0 0.0
        %1886 = vmatprep.subr.mxu0 0.0
        %1887 = vmatpush1.msra.mxu0 0.0
        %1888 = vmatprep.subr.mxu0 0.0
        %1889 = vmatpush1.msra.mxu0 0.0
        %1890 = vmatprep.subr.mxu0 0.0
        %1891 = vmatpush1.msra.mxu0 0.0
        %1892 = vmatprep.subr.mxu0 0.0
        %1893 = vmatpush1.msra.mxu0 0.0
        %1894 = vmatprep.subr.mxu0 0.0
        %1895 = vmatpush1.msra.mxu0 0.0
        %1896 = vmatprep.subr.mxu0 0.0
        %1897 = vmatpush1.msra.mxu0 0.0
        %1898 = vmatprep.subr.mxu0 0.0
        %1899 = vmatpush1.msra.mxu0 0.0
        %1900 = vmatprep.subr.mxu0 0.0
        %1901 = vmatpush1.msra.mxu0 0.0
        %1902 = vmatprep.subr.mxu0 0.0
        %1903 = vmatpush1.msra.mxu0 0.0
        %1904 = vmatprep.subr.mxu0 0.0
        %1905 = vmatpush1.msra.mxu0 0.0
        %1906 = vmatprep.subr.mxu0 0.0
        %1907 = vmatpush1.msra.mxu0 0.0
        %1908 = vmatprep.subr.mxu0 0.0
        %1909 = vmatpush1.msra.mxu0 0.0
        %1910 = vmatprep.subr.mxu0 0.0
        %1911 = vmatpush1.msra.mxu0 0.0
        %1912 = vmatprep.subr.mxu0 0.0
        %1913 = vmatpush1.msra.mxu0 0.0
        %1914 = vmatprep.subr.mxu0 0.0
        %1915 = vmatpush1.msra.mxu0 0.0
        %1916 = vmatprep.subr.mxu0 0.0
        %1917 = vmatpush1.msra.mxu0 0.0
        %1918 = vmatprep.mubr.f32.mxu0 0.0
        %1919 = vmatmul.mubr.f32.gmra.mrb[0].mxu0 %v1831
        %v1920 = vpop.f32.mrb[0].mxu0
        %v1921 = vadd.f32 0.0, %v1920
        %v1922 = vpop.f32.mrb[0].mxu0
        %1923 = vmatprep.mubr.f32.mxu0 0.0
        %1924 = vmatmul.mubr.f32.gmra.mrb[0].mxu0 %v1834
        %v1925 = vpop.f32.mrb[0].mxu0
        %v1926 = vadd.f32 0.0, %v1925
        %v1927 = vpop.f32.mrb[0].mxu0
        %1928 = vmatprep.mubr.f32.mxu0 0.0
        %1929 = vmatmul.mubr.f32.gmra.mrb[0].mxu0 %v1837
        %v1930 = vpop.f32.mrb[0].mxu0
        %v1931 = vadd.f32 0.0, %v1930
        %v1932 = vpop.f32.mrb[0].mxu0
        %1933 = vmatprep.mubr.f32.mxu0 0.0
        %1934 = vmatmul.mubr.f32.gmra.mrb[0].mxu0 %v1840
        %v1935 = vpop.f32.mrb[0].mxu0
        %v1936 = vadd.f32 0.0, %v1935
        %v1937 = vpop.f32.mrb[0].mxu0
        %1938 = vmatprep.mubr.f32.mxu0 0.0
        %1939 = vmatmul.mubr.f32.gmra.mrb[0].mxu0 %v1843
        %v1940 = vpop.f32.mrb[0].mxu0
        %v1941 = vadd.f32 0.0, %v1940
        %v1942 = vpop.f32.mrb[0].mxu0
        %1943 = vmatprep.mubr.f32.mxu0 0.0
        %1944 = vmatmul.mubr.f32.gmra.mrb[0].mxu0 %v1846
        %v1945 = vpop.f32.mrb[0].mxu0
        %v1946 = vadd.f32 0.0, %v1945
        %v1947 = vpop.f32.mrb[0].mxu0
        %1948 = vmatprep.mubr.f32.mxu0 0.0
        %1949 = vmatmul.mubr.f32.gmra.mrb[0].mxu0 %v1849
        %v1950 = vpop.f32.mrb[0].mxu0
        %v1951 = vadd.f32 0.0, %v1950
        %v1952 = vpop.f32.mrb[0].mxu0
        %1953 = vmatprep.mubr.f32.mxu0 0.0
        %1954 = vmatmul.mubr.f32.gmra.mrb[0].mxu0 %v1852
        %v1955 = vpop.f32.mrb[0].mxu0
        %v1956 = vadd.f32 0.0, %v1955
        %v1957 = vpop.f32.mrb[0].mxu0
        %1958 = vdwg.mxu0
        %1967 = vrot.lane.b32.xlu0 %v1921, 16
        %v1968 = vpop.permute.xlu0 %1967
        %1969 = vrot.lane.b32.xlu0 %v1926, 16
        %v1970 = vpop.permute.xlu0 %1969
        %1971 = vrot.lane.b32.xlu0 %v1931, 16
        %v1972 = vpop.permute.xlu0 %1971
        %1973 = vrot.lane.b32.xlu0 %v1936, 16
        %v1974 = vpop.permute.xlu0 %1973
        %1975 = vrot.lane.b32.xlu0 %v1941, 16
        %v1976 = vpop.permute.xlu0 %1975
        %1977 = vrot.lane.b32.xlu0 %v1946, 16
        %v1978 = vpop.permute.xlu0 %1977
        %1979 = vrot.lane.b32.xlu0 %v1951, 16
        %v1980 = vpop.permute.xlu0 %1979
        %1981 = vrot.lane.b32.xlu0 %v1956, 16
        %v1982 = vpop.permute.xlu0 %1981
        %vm1991 = vcmask 195712
        %1992 = vst.msk [vmem:[#allocation2] sm:$0xff] %vm1991, %v1968
        %1993 = vst.msk [vmem:[#allocation2 + $0x8] sm:$0xff] %vm1991, %v1970
        %1994 = vst.msk [vmem:[#allocation2 + $0x10] sm:$0xff] %vm1991, %v1972
        %1995 = vst.msk [vmem:[#allocation2 + $0x18] sm:$0xff] %vm1991, %v1974
        %1996 = vst.msk [vmem:[#allocation2 + $0x20] sm:$0xff] %vm1991, %v1976
        %1997 = vst.msk [vmem:[#allocation2 + $0x28] sm:$0xff] %vm1991, %v1978
        %1998 = vst.msk [vmem:[#allocation2 + $0x30] sm:$0xff] %vm1991, %v1980
        %1999 = vst.msk [vmem:[#allocation2 + $0x38] sm:$0xff] %vm1991, %v1982
        %2000 = vrot.lane.b32.xlu0 %v543, 104
        %v2001 = vpop.permute.xlu0 %2000
        %2002 = vrot.lane.b32.xlu0 %v544, 104
        %v2003 = vpop.permute.xlu0 %2002
        %2004 = vrot.lane.b32.xlu0 %v545, 104
        %v2005 = vpop.permute.xlu0 %2004
        %2006 = vrot.lane.b32.xlu0 %v546, 104
        %v2007 = vpop.permute.xlu0 %2006
        %2008 = vrot.lane.b32.xlu0 %v547, 104
        %v2009 = vpop.permute.xlu0 %2008
        %2010 = vrot.lane.b32.xlu0 %v548, 104
        %v2011 = vpop.permute.xlu0 %2010
        %2012 = vrot.lane.b32.xlu0 %v549, 104
        %v2013 = vpop.permute.xlu0 %2012
        %2014 = vrot.lane.b32.xlu0 %v550, 104
        %v2015 = vpop.permute.xlu0 %2014
        %2016 = vrot.lane.b32.xlu0 %v657, 104
        %v2017 = vpop.permute.xlu0 %2016
        %2018 = vrot.lane.b32.xlu0 %v662, 104
        %v2019 = vpop.permute.xlu0 %2018
        %2020 = vrot.lane.b32.xlu0 %v667, 104
        %v2021 = vpop.permute.xlu0 %2020
        %2022 = vrot.lane.b32.xlu0 %v672, 104
        %v2023 = vpop.permute.xlu0 %2022
        %2024 = vrot.lane.b32.xlu0 %v677, 104
        %v2025 = vpop.permute.xlu0 %2024
        %2026 = vrot.lane.b32.xlu0 %v682, 104
        %v2027 = vpop.permute.xlu0 %2026
        %2028 = vrot.lane.b32.xlu0 %v687, 104
        %v2029 = vpop.permute.xlu0 %2028
        %2030 = vrot.lane.b32.xlu0 %v692, 104
        %v2031 = vpop.permute.xlu0 %2030
        %v2032 = vsel %vm695, %v2001, 0
        %v2034 = vsel %vm695, %v2003, 0
        %v2036 = vsel %vm695, %v2005, 0
        %v2038 = vsel %vm695, %v2007, 0
        %v2040 = vsel %vm695, %v2009, 0
        %v2042 = vsel %vm695, %v2011, 0
        %v2044 = vsel %vm695, %v2013, 0
        %v2046 = vsel %vm695, %v2015, 0
        %v2048 = vsel %vm695, %v2017, 0
        %v2050 = vsel %vm695, %v2019, 0
        %v2052 = vsel %vm695, %v2021, 0
        %v2054 = vsel %vm695, %v2023, 0
        %v2056 = vsel %vm695, %v2025, 0
        %v2058 = vsel %vm695, %v2027, 0
        %v2060 = vsel %vm695, %v2029, 0
        %v2062 = vsel %vm695, %v2031, 0
        %2064 = vmatprep.subr.mxu0 0.0
        %2065 = vmatpush1.xpose.msra.mxu0 %v2048
        %2066 = vmatprep.subr.mxu0 0.0
        %2067 = vmatpush1.xpose.msra.mxu0 %v2050
        %2068 = vmatprep.subr.mxu0 0.0
        %2069 = vmatpush1.xpose.msra.mxu0 %v2052
        %2070 = vmatprep.subr.mxu0 0.0
        %2071 = vmatpush1.xpose.msra.mxu0 %v2054
        %2072 = vmatprep.subr.mxu0 0.0
        %2073 = vmatpush1.xpose.msra.mxu0 %v2056
        %2074 = vmatprep.subr.mxu0 0.0
        %2075 = vmatpush1.xpose.msra.mxu0 %v2058
        %2076 = vmatprep.subr.mxu0 0.0
        %2077 = vmatpush1.xpose.msra.mxu0 %v2060
        %2078 = vmatprep.subr.mxu0 0.0
        %2079 = vmatpush1.xpose.msra.mxu0 %v2062
        %2080 = vmatprep.subr.mxu0 0.0
        %2081 = vmatpush1.xpose.msra.mxu0 0.0
        %2082 = vmatprep.subr.mxu0 0.0
        %2083 = vmatpush1.xpose.msra.mxu0 0.0
        %2084 = vmatprep.subr.mxu0 0.0
        %2085 = vmatpush1.xpose.msra.mxu0 0.0
        %2086 = vmatprep.subr.mxu0 0.0
        %2087 = vmatpush1.xpose.msra.mxu0 0.0
        %2088 = vmatprep.subr.mxu0 0.0
        %2089 = vmatpush1.xpose.msra.mxu0 0.0
        %2090 = vmatprep.subr.mxu0 0.0
        %2091 = vmatpush1.xpose.msra.mxu0 0.0
        %2092 = vmatprep.subr.mxu0 0.0
        %2093 = vmatpush1.xpose.msra.mxu0 0.0
        %2094 = vmatprep.subr.mxu0 0.0
        %2095 = vmatpush1.xpose.msra.mxu0 0.0
        %2096 = vmatprep.subr.mxu0 0.0
        %2097 = vmatpush1.xpose.msra.mxu0 0.0
        %2098 = vmatprep.subr.mxu0 0.0
        %2099 = vmatpush1.xpose.msra.mxu0 0.0
        %2100 = vmatprep.subr.mxu0 0.0
        %2101 = vmatpush1.xpose.msra.mxu0 0.0
        %2102 = vmatprep.subr.mxu0 0.0
        %2103 = vmatpush1.xpose.msra.mxu0 0.0
        %2104 = vmatprep.subr.mxu0 0.0
        %2105 = vmatpush1.xpose.msra.mxu0 0.0
        %2106 = vmatprep.subr.mxu0 0.0
        %2107 = vmatpush1.xpose.msra.mxu0 0.0
        %2108 = vmatprep.subr.mxu0 0.0
        %2109 = vmatpush1.xpose.msra.mxu0 0.0
        %2110 = vmatprep.subr.mxu0 0.0
        %2111 = vmatpush1.xpose.msra.mxu0 0.0
        %2112 = vmatprep.subr.mxu0 0.0
        %2113 = vmatpush1.xpose.msra.mxu0 0.0
        %2114 = vmatprep.subr.mxu0 0.0
        %2115 = vmatpush1.xpose.msra.mxu0 0.0
        %2116 = vmatprep.subr.mxu0 0.0
        %2117 = vmatpush1.xpose.msra.mxu0 0.0
        %2118 = vmatprep.subr.mxu0 0.0
        %2119 = vmatpush1.xpose.msra.mxu0 0.0
        %2120 = vmatprep.subr.mxu0 0.0
        %2121 = vmatpush1.xpose.msra.mxu0 0.0
        %2122 = vmatprep.subr.mxu0 0.0
        %2123 = vmatpush1.xpose.msra.mxu0 0.0
        %2124 = vmatprep.subr.mxu0 0.0
        %2125 = vmatpush1.xpose.msra.mxu0 0.0
        %2126 = vmatprep.subr.mxu0 0.0
        %2127 = vmatpush1.xpose.msra.mxu0 0.0
        %2128 = vmatprep.mubr.f32.mxu0 0.0
        %2129 = vmatmul.mubr.f32.gmra.mrb[0].mxu0 %v2032
        %v2130 = vpop.f32.mrb[0].mxu0
        %v2131 = vadd.f32 0.0, %v2130
        %v2132 = vpop.f32.mrb[0].mxu0
        %2133 = vmatprep.mubr.f32.mxu0 0.0
        %2134 = vmatmul.mubr.f32.gmra.mrb[0].mxu0 %v2034
        %v2135 = vpop.f32.mrb[0].mxu0
        %v2136 = vadd.f32 0.0, %v2135
        %v2137 = vpop.f32.mrb[0].mxu0
        %2138 = vmatprep.mubr.f32.mxu0 0.0
        %2139 = vmatmul.mubr.f32.gmra.mrb[0].mxu0 %v2036
        %v2140 = vpop.f32.mrb[0].mxu0
        %v2141 = vadd.f32 0.0, %v2140
        %v2142 = vpop.f32.mrb[0].mxu0
        %2143 = vmatprep.mubr.f32.mxu0 0.0
        %2144 = vmatmul.mubr.f32.gmra.mrb[0].mxu0 %v2038
        %v2145 = vpop.f32.mrb[0].mxu0
        %v2146 = vadd.f32 0.0, %v2145
        %v2147 = vpop.f32.mrb[0].mxu0
        %2148 = vmatprep.mubr.f32.mxu0 0.0
        %2149 = vmatmul.mubr.f32.gmra.mrb[0].mxu0 %v2040
        %v2150 = vpop.f32.mrb[0].mxu0
        %v2151 = vadd.f32 0.0, %v2150
        %v2152 = vpop.f32.mrb[0].mxu0
        %2153 = vmatprep.mubr.f32.mxu0 0.0
        %2154 = vmatmul.mubr.f32.gmra.mrb[0].mxu0 %v2042
        %v2155 = vpop.f32.mrb[0].mxu0
        %v2156 = vadd.f32 0.0, %v2155
        %v2157 = vpop.f32.mrb[0].mxu0
        %2158 = vmatprep.mubr.f32.mxu0 0.0
        %2159 = vmatmul.mubr.f32.gmra.mrb[0].mxu0 %v2044
        %v2160 = vpop.f32.mrb[0].mxu0
        %v2161 = vadd.f32 0.0, %v2160
        %v2162 = vpop.f32.mrb[0].mxu0
        %2163 = vmatprep.mubr.f32.mxu0 0.0
        %2164 = vmatmul.mubr.f32.gmra.mrb[0].mxu0 %v2046
        %v2165 = vpop.f32.mrb[0].mxu0
        %v2166 = vadd.f32 0.0, %v2165
        %v2167 = vpop.f32.mrb[0].mxu0
        %2168 = vdwg.mxu0
        %v2169 = vsel %vm413, %v2131, -inf
        %2170 = vmax.xlane.f32.xlu0 %v2169
        %v2171 = vpop.xlane.xlu0 %2170
        %v2172 = vsel %vm413, %v2136, -inf
        %2173 = vmax.xlane.f32.xlu0 %v2172
        %v2174 = vpop.xlane.xlu0 %2173
        %v2175 = vsel %vm413, %v2141, -inf
        %2176 = vmax.xlane.f32.xlu0 %v2175
        %v2177 = vpop.xlane.xlu0 %2176
        %v2178 = vsel %vm413, %v2146, -inf
        %2179 = vmax.xlane.f32.xlu0 %v2178
        %v2180 = vpop.xlane.xlu0 %2179
        %v2181 = vsel %vm413, %v2151, -inf
        %2182 = vmax.xlane.f32.xlu0 %v2181
        %v2183 = vpop.xlane.xlu0 %2182
        %v2184 = vsel %vm413, %v2156, -inf
        %2185 = vmax.xlane.f32.xlu0 %v2184
        %v2186 = vpop.xlane.xlu0 %2185
        %v2187 = vsel %vm413, %v2161, -inf
        %2188 = vmax.xlane.f32.xlu0 %v2187
        %v2189 = vpop.xlane.xlu0 %2188
        %v2190 = vsel %vm413, %v2166, -inf
        %2191 = vmax.xlane.f32.xlu0 %v2190
        %v2192 = vpop.xlane.xlu0 %2191
        %v2193 = vsub.f32 %v2131, %v2171
        %v2194 = vsub.f32 %v2136, %v2174
        %v2195 = vsub.f32 %v2141, %v2177
        %v2196 = vsub.f32 %v2146, %v2180
        %v2197 = vsub.f32 %v2151, %v2183
        %v2198 = vsub.f32 %v2156, %v2186
        %v2199 = vsub.f32 %v2161, %v2189
        %v2200 = vsub.f32 %v2166, %v2192
        %v2201 = vmul.f32 %v2193, 1.442695
        %v2202 = vpow.pop %v2201
        %v2203 = vmul.f32 %v2194, 1.442695
        %v2204 = vpow.pop %v2203
        %v2205 = vmul.f32 %v2195, 1.442695
        %v2206 = vpow.pop %v2205
        %v2207 = vmul.f32 %v2196, 1.442695
        %v2208 = vpow.pop %v2207
        %v2209 = vmul.f32 %v2197, 1.442695
        %v2210 = vpow.pop %v2209
        %v2211 = vmul.f32 %v2198, 1.442695
        %v2212 = vpow.pop %v2211
        %v2213 = vmul.f32 %v2199, 1.442695
        %v2214 = vpow.pop %v2213
        %v2215 = vmul.f32 %v2200, 1.442695
        %v2216 = vpow.pop %v2215
        %v2217 = vsel %vm413, %v2202, 0.0
        %2218 = vadd.xlane.f32.xlu0 %v2217
        %v2219 = vpop.xlane.xlu0 %2218
        %v2220 = vsel %vm413, %v2204, 0.0
        %2221 = vadd.xlane.f32.xlu0 %v2220
        %v2222 = vpop.xlane.xlu0 %2221
        %v2223 = vsel %vm413, %v2206, 0.0
        %2224 = vadd.xlane.f32.xlu0 %v2223
        %v2225 = vpop.xlane.xlu0 %2224
        %v2226 = vsel %vm413, %v2208, 0.0
        %2227 = vadd.xlane.f32.xlu0 %v2226
        %v2228 = vpop.xlane.xlu0 %2227
        %v2229 = vsel %vm413, %v2210, 0.0
        %2230 = vadd.xlane.f32.xlu0 %v2229
        %v2231 = vpop.xlane.xlu0 %2230
        %v2232 = vsel %vm413, %v2212, 0.0
        %2233 = vadd.xlane.f32.xlu0 %v2232
        %v2234 = vpop.xlane.xlu0 %2233
        %v2235 = vsel %vm413, %v2214, 0.0
        %2236 = vadd.xlane.f32.xlu0 %v2235
        %v2237 = vpop.xlane.xlu0 %2236
        %v2238 = vsel %vm413, %v2216, 0.0
        %2239 = vadd.xlane.f32.xlu0 %v2238
        %v2240 = vpop.xlane.xlu0 %2239
        %v2241 = vrcp.pop %v2219
        %v2242 = vrcp.pop %v2222
        %v2243 = vrcp.pop %v2225
        %v2244 = vrcp.pop %v2228
        %v2245 = vrcp.pop %v2231
        %v2246 = vrcp.pop %v2234
        %v2247 = vrcp.pop %v2237
        %v2248 = vrcp.pop %v2240
        %v2249 = vmul.f32 %v2202, %v2241
        %v2250 = vmul.f32 %v2204, %v2242
        %v2251 = vmul.f32 %v2206, %v2243
        %v2252 = vmul.f32 %v2208, %v2244
        %v2253 = vmul.f32 %v2210, %v2245
        %v2254 = vmul.f32 %v2212, %v2246
        %v2255 = vmul.f32 %v2214, %v2247
        %v2256 = vmul.f32 %v2216, %v2248
        %2257 = vrot.lane.b32.xlu0 %v657, 40
        %v2258 = vpop.permute.xlu0 %2257
        %2259 = vrot.lane.b32.xlu0 %v662, 40
        %v2260 = vpop.permute.xlu0 %2259
        %2261 = vrot.lane.b32.xlu0 %v667, 40
        %v2262 = vpop.permute.xlu0 %2261
        %2263 = vrot.lane.b32.xlu0 %v672, 40
        %v2264 = vpop.permute.xlu0 %2263
        %2265 = vrot.lane.b32.xlu0 %v677, 40
        %v2266 = vpop.permute.xlu0 %2265
        %2267 = vrot.lane.b32.xlu0 %v682, 40
        %v2268 = vpop.permute.xlu0 %2267
        %2269 = vrot.lane.b32.xlu0 %v687, 40
        %v2270 = vpop.permute.xlu0 %2269
        %2271 = vrot.lane.b32.xlu0 %v692, 40
        %v2272 = vpop.permute.xlu0 %2271
        %v2282 = vsel %vm413, %v2249, 0
        %v2285 = vsel %vm413, %v2250, 0
        %v2288 = vsel %vm413, %v2251, 0
        %v2291 = vsel %vm413, %v2252, 0
        %v2294 = vsel %vm413, %v2253, 0
        %v2297 = vsel %vm413, %v2254, 0
        %v2300 = vsel %vm413, %v2255, 0
        %v2303 = vsel %vm413, %v2256, 0
        %2305 = vmatprep.subr.mxu0 0.0
        %2306 = vmatpush1.msra.mxu0 %v2258
        %2307 = vmatprep.subr.mxu0 0.0
        %2308 = vmatpush1.msra.mxu0 %v2260
        %2309 = vmatprep.subr.mxu0 0.0
        %2310 = vmatpush1.msra.mxu0 %v2262
        %2311 = vmatprep.subr.mxu0 0.0
        %2312 = vmatpush1.msra.mxu0 %v2264
        %2313 = vmatprep.subr.mxu0 0.0
        %2314 = vmatpush1.msra.mxu0 %v2266
        %2315 = vmatprep.subr.mxu0 0.0
        %2316 = vmatpush1.msra.mxu0 %v2268
        %2317 = vmatprep.subr.mxu0 0.0
        %2318 = vmatpush1.msra.mxu0 %v2270
        %2319 = vmatprep.subr.mxu0 0.0
        %2320 = vmatpush1.msra.mxu0 %v2272
        %2321 = vmatprep.subr.mxu0 0.0
        %2322 = vmatpush1.msra.mxu0 0.0
        %2323 = vmatprep.subr.mxu0 0.0
        %2324 = vmatpush1.msra.mxu0 0.0
        %2325 = vmatprep.subr.mxu0 0.0
        %2326 = vmatpush1.msra.mxu0 0.0
        %2327 = vmatprep.subr.mxu0 0.0
        %2328 = vmatpush1.msra.mxu0 0.0
        %2329 = vmatprep.subr.mxu0 0.0
        %2330 = vmatpush1.msra.mxu0 0.0
        %2331 = vmatprep.subr.mxu0 0.0
        %2332 = vmatpush1.msra.mxu0 0.0
        %2333 = vmatprep.subr.mxu0 0.0
        %2334 = vmatpush1.msra.mxu0 0.0
        %2335 = vmatprep.subr.mxu0 0.0
        %2336 = vmatpush1.msra.mxu0 0.0
        %2337 = vmatprep.subr.mxu0 0.0
        %2338 = vmatpush1.msra.mxu0 0.0
        %2339 = vmatprep.subr.mxu0 0.0
        %2340 = vmatpush1.msra.mxu0 0.0
        %2341 = vmatprep.subr.mxu0 0.0
        %2342 = vmatpush1.msra.mxu0 0.0
        %2343 = vmatprep.subr.mxu0 0.0
        %2344 = vmatpush1.msra.mxu0 0.0
        %2345 = vmatprep.subr.mxu0 0.0
        %2346 = vmatpush1.msra.mxu0 0.0
        %2347 = vmatprep.subr.mxu0 0.0
        %2348 = vmatpush1.msra.mxu0 0.0
        %2349 = vmatprep.subr.mxu0 0.0
        %2350 = vmatpush1.msra.mxu0 0.0
        %2351 = vmatprep.subr.mxu0 0.0
        %2352 = vmatpush1.msra.mxu0 0.0
        %2353 = vmatprep.subr.mxu0 0.0
        %2354 = vmatpush1.msra.mxu0 0.0
        %2355 = vmatprep.subr.mxu0 0.0
        %2356 = vmatpush1.msra.mxu0 0.0
        %2357 = vmatprep.subr.mxu0 0.0
        %2358 = vmatpush1.msra.mxu0 0.0
        %2359 = vmatprep.subr.mxu0 0.0
        %2360 = vmatpush1.msra.mxu0 0.0
        %2361 = vmatprep.subr.mxu0 0.0
        %2362 = vmatpush1.msra.mxu0 0.0
        %2363 = vmatprep.subr.mxu0 0.0
        %2364 = vmatpush1.msra.mxu0 0.0
        %2365 = vmatprep.subr.mxu0 0.0
        %2366 = vmatpush1.msra.mxu0 0.0
        %2367 = vmatprep.subr.mxu0 0.0
        %2368 = vmatpush1.msra.mxu0 0.0
        %2369 = vmatprep.mubr.f32.mxu0 0.0
        %2370 = vmatmul.mubr.f32.gmra.mrb[0].mxu0 %v2282
        %v2371 = vpop.f32.mrb[0].mxu0
        %v2372 = vadd.f32 0.0, %v2371
        %v2373 = vpop.f32.mrb[0].mxu0
        %2374 = vmatprep.mubr.f32.mxu0 0.0
        %2375 = vmatmul.mubr.f32.gmra.mrb[0].mxu0 %v2285
        %v2376 = vpop.f32.mrb[0].mxu0
        %v2377 = vadd.f32 0.0, %v2376
        %v2378 = vpop.f32.mrb[0].mxu0
        %2379 = vmatprep.mubr.f32.mxu0 0.0
        %2380 = vmatmul.mubr.f32.gmra.mrb[0].mxu0 %v2288
        %v2381 = vpop.f32.mrb[0].mxu0
        %v2382 = vadd.f32 0.0, %v2381
        %v2383 = vpop.f32.mrb[0].mxu0
        %2384 = vmatprep.mubr.f32.mxu0 0.0
        %2385 = vmatmul.mubr.f32.gmra.mrb[0].mxu0 %v2291
        %v2386 = vpop.f32.mrb[0].mxu0
        %v2387 = vadd.f32 0.0, %v2386
        %v2388 = vpop.f32.mrb[0].mxu0
        %2389 = vmatprep.mubr.f32.mxu0 0.0
        %2390 = vmatmul.mubr.f32.gmra.mrb[0].mxu0 %v2294
        %v2391 = vpop.f32.mrb[0].mxu0
        %v2392 = vadd.f32 0.0, %v2391
        %v2393 = vpop.f32.mrb[0].mxu0
        %2394 = vmatprep.mubr.f32.mxu0 0.0
        %2395 = vmatmul.mubr.f32.gmra.mrb[0].mxu0 %v2297
        %v2396 = vpop.f32.mrb[0].mxu0
        %v2397 = vadd.f32 0.0, %v2396
        %v2398 = vpop.f32.mrb[0].mxu0
        %2399 = vmatprep.mubr.f32.mxu0 0.0
        %2400 = vmatmul.mubr.f32.gmra.mrb[0].mxu0 %v2300
        %v2401 = vpop.f32.mrb[0].mxu0
        %v2402 = vadd.f32 0.0, %v2401
        %v2403 = vpop.f32.mrb[0].mxu0
        %2404 = vmatprep.mubr.f32.mxu0 0.0
        %2405 = vmatmul.mubr.f32.gmra.mrb[0].mxu0 %v2303
        %v2406 = vpop.f32.mrb[0].mxu0
        %v2407 = vadd.f32 0.0, %v2406
        %v2408 = vpop.f32.mrb[0].mxu0
        %2409 = vdwg.mxu0
        %2418 = vrot.lane.b32.xlu0 %v2372, 24
        %v2419 = vpop.permute.xlu0 %2418
        %2420 = vrot.lane.b32.xlu0 %v2377, 24
        %v2421 = vpop.permute.xlu0 %2420
        %2422 = vrot.lane.b32.xlu0 %v2382, 24
        %v2423 = vpop.permute.xlu0 %2422
        %2424 = vrot.lane.b32.xlu0 %v2387, 24
        %v2425 = vpop.permute.xlu0 %2424
        %2426 = vrot.lane.b32.xlu0 %v2392, 24
        %v2427 = vpop.permute.xlu0 %2426
        %2428 = vrot.lane.b32.xlu0 %v2397, 24
        %v2429 = vpop.permute.xlu0 %2428
        %2430 = vrot.lane.b32.xlu0 %v2402, 24
        %v2431 = vpop.permute.xlu0 %2430
        %2432 = vrot.lane.b32.xlu0 %v2407, 24
        %v2433 = vpop.permute.xlu0 %2432
        %vm2442 = vcmask 261312
        %2443 = vst.msk [vmem:[#allocation2] sm:$0xff] %vm2442, %v2419
        %2444 = vst.msk [vmem:[#allocation2 + $0x8] sm:$0xff] %vm2442, %v2421
        %2445 = vst.msk [vmem:[#allocation2 + $0x10] sm:$0xff] %vm2442, %v2423
        %2446 = vst.msk [vmem:[#allocation2 + $0x18] sm:$0xff] %vm2442, %v2425
        %2447 = vst.msk [vmem:[#allocation2 + $0x20] sm:$0xff] %vm2442, %v2427
        %2448 = vst.msk [vmem:[#allocation2 + $0x28] sm:$0xff] %vm2442, %v2429
        %2449 = vst.msk [vmem:[#allocation2 + $0x30] sm:$0xff] %vm2442, %v2431
        %2450 = vst.msk [vmem:[#allocation2 + $0x38] sm:$0xff] %vm2442, %v2433
        %2451 = vrot.lane.b32.xlu0 %v543, 96
        %v2452 = vpop.permute.xlu0 %2451
        %2453 = vrot.lane.b32.xlu0 %v544, 96
        %v2454 = vpop.permute.xlu0 %2453
        %2455 = vrot.lane.b32.xlu0 %v545, 96
        %v2456 = vpop.permute.xlu0 %2455
        %2457 = vrot.lane.b32.xlu0 %v546, 96
        %v2458 = vpop.permute.xlu0 %2457
        %2459 = vrot.lane.b32.xlu0 %v547, 96
        %v2460 = vpop.permute.xlu0 %2459
        %2461 = vrot.lane.b32.xlu0 %v548, 96
        %v2462 = vpop.permute.xlu0 %2461
        %2463 = vrot.lane.b32.xlu0 %v549, 96
        %v2464 = vpop.permute.xlu0 %2463
        %2465 = vrot.lane.b32.xlu0 %v550, 96
        %v2466 = vpop.permute.xlu0 %2465
        %2467 = vrot.lane.b32.xlu0 %v657, 96
        %v2468 = vpop.permute.xlu0 %2467
        %2469 = vrot.lane.b32.xlu0 %v662, 96
        %v2470 = vpop.permute.xlu0 %2469
        %2471 = vrot.lane.b32.xlu0 %v667, 96
        %v2472 = vpop.permute.xlu0 %2471
        %2473 = vrot.lane.b32.xlu0 %v672, 96
        %v2474 = vpop.permute.xlu0 %2473
        %2475 = vrot.lane.b32.xlu0 %v677, 96
        %v2476 = vpop.permute.xlu0 %2475
        %2477 = vrot.lane.b32.xlu0 %v682, 96
        %v2478 = vpop.permute.xlu0 %2477
        %2479 = vrot.lane.b32.xlu0 %v687, 96
        %v2480 = vpop.permute.xlu0 %2479
        %2481 = vrot.lane.b32.xlu0 %v692, 96
        %v2482 = vpop.permute.xlu0 %2481
        %v2483 = vsel %vm695, %v2452, 0
        %v2485 = vsel %vm695, %v2454, 0
        %v2487 = vsel %vm695, %v2456, 0
        %v2489 = vsel %vm695, %v2458, 0
        %v2491 = vsel %vm695, %v2460, 0
        %v2493 = vsel %vm695, %v2462, 0
        %v2495 = vsel %vm695, %v2464, 0
        %v2497 = vsel %vm695, %v2466, 0
        %v2499 = vsel %vm695, %v2468, 0
        %v2501 = vsel %vm695, %v2470, 0
        %v2503 = vsel %vm695, %v2472, 0
        %v2505 = vsel %vm695, %v2474, 0
        %v2507 = vsel %vm695, %v2476, 0
        %v2509 = vsel %vm695, %v2478, 0
        %v2511 = vsel %vm695, %v2480, 0
        %v2513 = vsel %vm695, %v2482, 0
        %2515 = vmatprep.subr.mxu0 0.0
        %2516 = vmatpush1.xpose.msra.mxu0 %v2499
        %2517 = vmatprep.subr.mxu0 0.0
        %2518 = vmatpush1.xpose.msra.mxu0 %v2501
        %2519 = vmatprep.subr.mxu0 0.0
        %2520 = vmatpush1.xpose.msra.mxu0 %v2503
        %2521 = vmatprep.subr.mxu0 0.0
        %2522 = vmatpush1.xpose.msra.mxu0 %v2505
        %2523 = vmatprep.subr.mxu0 0.0
        %2524 = vmatpush1.xpose.msra.mxu0 %v2507
        %2525 = vmatprep.subr.mxu0 0.0
        %2526 = vmatpush1.xpose.msra.mxu0 %v2509
        %2527 = vmatprep.subr.mxu0 0.0
        %2528 = vmatpush1.xpose.msra.mxu0 %v2511
        %2529 = vmatprep.subr.mxu0 0.0
        %2530 = vmatpush1.xpose.msra.mxu0 %v2513
        %2531 = vmatprep.subr.mxu0 0.0
        %2532 = vmatpush1.xpose.msra.mxu0 0.0
        %2533 = vmatprep.subr.mxu0 0.0
        %2534 = vmatpush1.xpose.msra.mxu0 0.0
        %2535 = vmatprep.subr.mxu0 0.0
        %2536 = vmatpush1.xpose.msra.mxu0 0.0
        %2537 = vmatprep.subr.mxu0 0.0
        %2538 = vmatpush1.xpose.msra.mxu0 0.0
        %2539 = vmatprep.subr.mxu0 0.0
        %2540 = vmatpush1.xpose.msra.mxu0 0.0
        %2541 = vmatprep.subr.mxu0 0.0
        %2542 = vmatpush1.xpose.msra.mxu0 0.0
        %2543 = vmatprep.subr.mxu0 0.0
        %2544 = vmatpush1.xpose.msra.mxu0 0.0
        %2545 = vmatprep.subr.mxu0 0.0
        %2546 = vmatpush1.xpose.msra.mxu0 0.0
        %2547 = vmatprep.subr.mxu0 0.0
        %2548 = vmatpush1.xpose.msra.mxu0 0.0
        %2549 = vmatprep.subr.mxu0 0.0
        %2550 = vmatpush1.xpose.msra.mxu0 0.0
        %2551 = vmatprep.subr.mxu0 0.0
        %2552 = vmatpush1.xpose.msra.mxu0 0.0
        %2553 = vmatprep.subr.mxu0 0.0
        %2554 = vmatpush1.xpose.msra.mxu0 0.0
        %2555 = vmatprep.subr.mxu0 0.0
        %2556 = vmatpush1.xpose.msra.mxu0 0.0
        %2557 = vmatprep.subr.mxu0 0.0
        %2558 = vmatpush1.xpose.msra.mxu0 0.0
        %2559 = vmatprep.subr.mxu0 0.0
        %2560 = vmatpush1.xpose.msra.mxu0 0.0
        %2561 = vmatprep.subr.mxu0 0.0
        %2562 = vmatpush1.xpose.msra.mxu0 0.0
        %2563 = vmatprep.subr.mxu0 0.0
        %2564 = vmatpush1.xpose.msra.mxu0 0.0
        %2565 = vmatprep.subr.mxu0 0.0
        %2566 = vmatpush1.xpose.msra.mxu0 0.0
        %2567 = vmatprep.subr.mxu0 0.0
        %2568 = vmatpush1.xpose.msra.mxu0 0.0
        %2569 = vmatprep.subr.mxu0 0.0
        %2570 = vmatpush1.xpose.msra.mxu0 0.0
        %2571 = vmatprep.subr.mxu0 0.0
        %2572 = vmatpush1.xpose.msra.mxu0 0.0
        %2573 = vmatprep.subr.mxu0 0.0
        %2574 = vmatpush1.xpose.msra.mxu0 0.0
        %2575 = vmatprep.subr.mxu0 0.0
        %2576 = vmatpush1.xpose.msra.mxu0 0.0
        %2577 = vmatprep.subr.mxu0 0.0
        %2578 = vmatpush1.xpose.msra.mxu0 0.0
        %2579 = vmatprep.mubr.f32.mxu0 0.0
        %2580 = vmatmul.mubr.f32.gmra.mrb[0].mxu0 %v2483
        %v2581 = vpop.f32.mrb[0].mxu0
        %v2582 = vadd.f32 0.0, %v2581
        %v2583 = vpop.f32.mrb[0].mxu0
        %2584 = vmatprep.mubr.f32.mxu0 0.0
        %2585 = vmatmul.mubr.f32.gmra.mrb[0].mxu0 %v2485
        %v2586 = vpop.f32.mrb[0].mxu0
        %v2587 = vadd.f32 0.0, %v2586
        %v2588 = vpop.f32.mrb[0].mxu0
        %2589 = vmatprep.mubr.f32.mxu0 0.0
        %2590 = vmatmul.mubr.f32.gmra.mrb[0].mxu0 %v2487
        %v2591 = vpop.f32.mrb[0].mxu0
        %v2592 = vadd.f32 0.0, %v2591
        %v2593 = vpop.f32.mrb[0].mxu0
        %2594 = vmatprep.mubr.f32.mxu0 0.0
        %2595 = vmatmul.mubr.f32.gmra.mrb[0].mxu0 %v2489
        %v2596 = vpop.f32.mrb[0].mxu0
        %v2597 = vadd.f32 0.0, %v2596
        %v2598 = vpop.f32.mrb[0].mxu0
        %2599 = vmatprep.mubr.f32.mxu0 0.0
        %2600 = vmatmul.mubr.f32.gmra.mrb[0].mxu0 %v2491
        %v2601 = vpop.f32.mrb[0].mxu0
        %v2602 = vadd.f32 0.0, %v2601
        %v2603 = vpop.f32.mrb[0].mxu0
        %2604 = vmatprep.mubr.f32.mxu0 0.0
        %2605 = vmatmul.mubr.f32.gmra.mrb[0].mxu0 %v2493
        %v2606 = vpop.f32.mrb[0].mxu0
        %v2607 = vadd.f32 0.0, %v2606
        %v2608 = vpop.f32.mrb[0].mxu0
        %2609 = vmatprep.mubr.f32.mxu0 0.0
        %2610 = vmatmul.mubr.f32.gmra.mrb[0].mxu0 %v2495
        %v2611 = vpop.f32.mrb[0].mxu0
        %v2612 = vadd.f32 0.0, %v2611
        %v2613 = vpop.f32.mrb[0].mxu0
        %2614 = vmatprep.mubr.f32.mxu0 0.0
        %2615 = vmatmul.mubr.f32.gmra.mrb[0].mxu0 %v2497
        %v2616 = vpop.f32.mrb[0].mxu0
        %v2617 = vadd.f32 0.0, %v2616
        %v2618 = vpop.f32.mrb[0].mxu0
        %2619 = vdwg.mxu0
        %v2620 = vsel %vm413, %v2582, -inf
        %2621 = vmax.xlane.f32.xlu0 %v2620
        %v2622 = vpop.xlane.xlu0 %2621
        %v2623 = vsel %vm413, %v2587, -inf
        %2624 = vmax.xlane.f32.xlu0 %v2623
        %v2625 = vpop.xlane.xlu0 %2624
        %v2626 = vsel %vm413, %v2592, -inf
        %2627 = vmax.xlane.f32.xlu0 %v2626
        %v2628 = vpop.xlane.xlu0 %2627
        %v2629 = vsel %vm413, %v2597, -inf
        %2630 = vmax.xlane.f32.xlu0 %v2629
        %v2631 = vpop.xlane.xlu0 %2630
        %v2632 = vsel %vm413, %v2602, -inf
        %2633 = vmax.xlane.f32.xlu0 %v2632
        %v2634 = vpop.xlane.xlu0 %2633
        %v2635 = vsel %vm413, %v2607, -inf
        %2636 = vmax.xlane.f32.xlu0 %v2635
        %v2637 = vpop.xlane.xlu0 %2636
        %v2638 = vsel %vm413, %v2612, -inf
        %2639 = vmax.xlane.f32.xlu0 %v2638
        %v2640 = vpop.xlane.xlu0 %2639
        %v2641 = vsel %vm413, %v2617, -inf
        %2642 = vmax.xlane.f32.xlu0 %v2641
        %v2643 = vpop.xlane.xlu0 %2642
        %v2644 = vsub.f32 %v2582, %v2622
        %v2645 = vsub.f32 %v2587, %v2625
        %v2646 = vsub.f32 %v2592, %v2628
        %v2647 = vsub.f32 %v2597, %v2631
        %v2648 = vsub.f32 %v2602, %v2634
        %v2649 = vsub.f32 %v2607, %v2637
        %v2650 = vsub.f32 %v2612, %v2640
        %v2651 = vsub.f32 %v2617, %v2643
        %v2652 = vmul.f32 %v2644, 1.442695
        %v2653 = vpow.pop %v2652
        %v2654 = vmul.f32 %v2645, 1.442695
        %v2655 = vpow.pop %v2654
        %v2656 = vmul.f32 %v2646, 1.442695
        %v2657 = vpow.pop %v2656
        %v2658 = vmul.f32 %v2647, 1.442695
        %v2659 = vpow.pop %v2658
        %v2660 = vmul.f32 %v2648, 1.442695
        %v2661 = vpow.pop %v2660
        %v2662 = vmul.f32 %v2649, 1.442695
        %v2663 = vpow.pop %v2662
        %v2664 = vmul.f32 %v2650, 1.442695
        %v2665 = vpow.pop %v2664
        %v2666 = vmul.f32 %v2651, 1.442695
        %v2667 = vpow.pop %v2666
        %v2668 = vsel %vm413, %v2653, 0.0
        %2669 = vadd.xlane.f32.xlu0 %v2668
        %v2670 = vpop.xlane.xlu0 %2669
        %v2671 = vsel %vm413, %v2655, 0.0
        %2672 = vadd.xlane.f32.xlu0 %v2671
        %v2673 = vpop.xlane.xlu0 %2672
        %v2674 = vsel %vm413, %v2657, 0.0
        %2675 = vadd.xlane.f32.xlu0 %v2674
        %v2676 = vpop.xlane.xlu0 %2675
        %v2677 = vsel %vm413, %v2659, 0.0
        %2678 = vadd.xlane.f32.xlu0 %v2677
        %v2679 = vpop.xlane.xlu0 %2678
        %v2680 = vsel %vm413, %v2661, 0.0
        %2681 = vadd.xlane.f32.xlu0 %v2680
        %v2682 = vpop.xlane.xlu0 %2681
        %v2683 = vsel %vm413, %v2663, 0.0
        %2684 = vadd.xlane.f32.xlu0 %v2683
        %v2685 = vpop.xlane.xlu0 %2684
        %v2686 = vsel %vm413, %v2665, 0.0
        %2687 = vadd.xlane.f32.xlu0 %v2686
        %v2688 = vpop.xlane.xlu0 %2687
        %v2689 = vsel %vm413, %v2667, 0.0
        %2690 = vadd.xlane.f32.xlu0 %v2689
        %v2691 = vpop.xlane.xlu0 %2690
        %v2692 = vrcp.pop %v2670
        %v2693 = vrcp.pop %v2673
        %v2694 = vrcp.pop %v2676
        %v2695 = vrcp.pop %v2679
        %v2696 = vrcp.pop %v2682
        %v2697 = vrcp.pop %v2685
        %v2698 = vrcp.pop %v2688
        %v2699 = vrcp.pop %v2691
        %v2700 = vmul.f32 %v2653, %v2692
        %v2701 = vmul.f32 %v2655, %v2693
        %v2702 = vmul.f32 %v2657, %v2694
        %v2703 = vmul.f32 %v2659, %v2695
        %v2704 = vmul.f32 %v2661, %v2696
        %v2705 = vmul.f32 %v2663, %v2697
        %v2706 = vmul.f32 %v2665, %v2698
        %v2707 = vmul.f32 %v2667, %v2699
        %2708 = vrot.lane.b32.xlu0 %v657, 32
        %v2709 = vpop.permute.xlu0 %2708
        %2710 = vrot.lane.b32.xlu0 %v662, 32
        %v2711 = vpop.permute.xlu0 %2710
        %2712 = vrot.lane.b32.xlu0 %v667, 32
        %v2713 = vpop.permute.xlu0 %2712
        %2714 = vrot.lane.b32.xlu0 %v672, 32
        %v2715 = vpop.permute.xlu0 %2714
        %2716 = vrot.lane.b32.xlu0 %v677, 32
        %v2717 = vpop.permute.xlu0 %2716
        %2718 = vrot.lane.b32.xlu0 %v682, 32
        %v2719 = vpop.permute.xlu0 %2718
        %2720 = vrot.lane.b32.xlu0 %v687, 32
        %v2721 = vpop.permute.xlu0 %2720
        %2722 = vrot.lane.b32.xlu0 %v692, 32
        %v2723 = vpop.permute.xlu0 %2722
        %v2733 = vsel %vm413, %v2700, 0
        %v2736 = vsel %vm413, %v2701, 0
        %v2739 = vsel %vm413, %v2702, 0
        %v2742 = vsel %vm413, %v2703, 0
        %v2745 = vsel %vm413, %v2704, 0
        %v2748 = vsel %vm413, %v2705, 0
        %v2751 = vsel %vm413, %v2706, 0
        %v2754 = vsel %vm413, %v2707, 0
        %2756 = vmatprep.subr.mxu0 0.0
        %2757 = vmatpush1.msra.mxu0 %v2709
        %2758 = vmatprep.subr.mxu0 0.0
        %2759 = vmatpush1.msra.mxu0 %v2711
        %2760 = vmatprep.subr.mxu0 0.0
        %2761 = vmatpush1.msra.mxu0 %v2713
        %2762 = vmatprep.subr.mxu0 0.0
        %2763 = vmatpush1.msra.mxu0 %v2715
        %2764 = vmatprep.subr.mxu0 0.0
        %2765 = vmatpush1.msra.mxu0 %v2717
        %2766 = vmatprep.subr.mxu0 0.0
        %2767 = vmatpush1.msra.mxu0 %v2719
        %2768 = vmatprep.subr.mxu0 0.0
        %2769 = vmatpush1.msra.mxu0 %v2721
        %2770 = vmatprep.subr.mxu0 0.0
        %2771 = vmatpush1.msra.mxu0 %v2723
        %2772 = vmatprep.subr.mxu0 0.0
        %2773 = vmatpush1.msra.mxu0 0.0
        %2774 = vmatprep.subr.mxu0 0.0
        %2775 = vmatpush1.msra.mxu0 0.0
        %2776 = vmatprep.subr.mxu0 0.0
        %2777 = vmatpush1.msra.mxu0 0.0
        %2778 = vmatprep.subr.mxu0 0.0
        %2779 = vmatpush1.msra.mxu0 0.0
        %2780 = vmatprep.subr.mxu0 0.0
        %2781 = vmatpush1.msra.mxu0 0.0
        %2782 = vmatprep.subr.mxu0 0.0
        %2783 = vmatpush1.msra.mxu0 0.0
        %2784 = vmatprep.subr.mxu0 0.0
        %2785 = vmatpush1.msra.mxu0 0.0
        %2786 = vmatprep.subr.mxu0 0.0
        %2787 = vmatpush1.msra.mxu0 0.0
        %2788 = vmatprep.subr.mxu0 0.0
        %2789 = vmatpush1.msra.mxu0 0.0
        %2790 = vmatprep.subr.mxu0 0.0
        %2791 = vmatpush1.msra.mxu0 0.0
        %2792 = vmatprep.subr.mxu0 0.0
        %2793 = vmatpush1.msra.mxu0 0.0
        %2794 = vmatprep.subr.mxu0 0.0
        %2795 = vmatpush1.msra.mxu0 0.0
        %2796 = vmatprep.subr.mxu0 0.0
        %2797 = vmatpush1.msra.mxu0 0.0
        %2798 = vmatprep.subr.mxu0 0.0
        %2799 = vmatpush1.msra.mxu0 0.0
        %2800 = vmatprep.subr.mxu0 0.0
        %2801 = vmatpush1.msra.mxu0 0.0
        %2802 = vmatprep.subr.mxu0 0.0
        %2803 = vmatpush1.msra.mxu0 0.0
        %2804 = vmatprep.subr.mxu0 0.0
        %2805 = vmatpush1.msra.mxu0 0.0
        %2806 = vmatprep.subr.mxu0 0.0
        %2807 = vmatpush1.msra.mxu0 0.0
        %2808 = vmatprep.subr.mxu0 0.0
        %2809 = vmatpush1.msra.mxu0 0.0
        %2810 = vmatprep.subr.mxu0 0.0
        %2811 = vmatpush1.msra.mxu0 0.0
        %2812 = vmatprep.subr.mxu0 0.0
        %2813 = vmatpush1.msra.mxu0 0.0
        %2814 = vmatprep.subr.mxu0 0.0
        %2815 = vmatpush1.msra.mxu0 0.0
        %2816 = vmatprep.subr.mxu0 0.0
        %2817 = vmatpush1.msra.mxu0 0.0
        %2818 = vmatprep.subr.mxu0 0.0
        %2819 = vmatpush1.msra.mxu0 0.0
        %2820 = vmatprep.mubr.f32.mxu0 0.0
        %2821 = vmatmul.mubr.f32.gmra.mrb[0].mxu0 %v2733
        %v2822 = vpop.f32.mrb[0].mxu0
        %v2823 = vadd.f32 0.0, %v2822
        %v2824 = vpop.f32.mrb[0].mxu0
        %2825 = vmatprep.mubr.f32.mxu0 0.0
        %2826 = vmatmul.mubr.f32.gmra.mrb[0].mxu0 %v2736
        %v2827 = vpop.f32.mrb[0].mxu0
        %v2828 = vadd.f32 0.0, %v2827
        %v2829 = vpop.f32.mrb[0].mxu0
        %2830 = vmatprep.mubr.f32.mxu0 0.0
        %2831 = vmatmul.mubr.f32.gmra.mrb[0].mxu0 %v2739
        %v2832 = vpop.f32.mrb[0].mxu0
        %v2833 = vadd.f32 0.0, %v2832
        %v2834 = vpop.f32.mrb[0].mxu0
        %2835 = vmatprep.mubr.f32.mxu0 0.0
        %2836 = vmatmul.mubr.f32.gmra.mrb[0].mxu0 %v2742
        %v2837 = vpop.f32.mrb[0].mxu0
        %v2838 = vadd.f32 0.0, %v2837
        %v2839 = vpop.f32.mrb[0].mxu0
        %2840 = vmatprep.mubr.f32.mxu0 0.0
        %2841 = vmatmul.mubr.f32.gmra.mrb[0].mxu0 %v2745
        %v2842 = vpop.f32.mrb[0].mxu0
        %v2843 = vadd.f32 0.0, %v2842
        %v2844 = vpop.f32.mrb[0].mxu0
        %2845 = vmatprep.mubr.f32.mxu0 0.0
        %2846 = vmatmul.mubr.f32.gmra.mrb[0].mxu0 %v2748
        %v2847 = vpop.f32.mrb[0].mxu0
        %v2848 = vadd.f32 0.0, %v2847
        %v2849 = vpop.f32.mrb[0].mxu0
        %2850 = vmatprep.mubr.f32.mxu0 0.0
        %2851 = vmatmul.mubr.f32.gmra.mrb[0].mxu0 %v2751
        %v2852 = vpop.f32.mrb[0].mxu0
        %v2853 = vadd.f32 0.0, %v2852
        %v2854 = vpop.f32.mrb[0].mxu0
        %2855 = vmatprep.mubr.f32.mxu0 0.0
        %2856 = vmatmul.mubr.f32.gmra.mrb[0].mxu0 %v2754
        %v2857 = vpop.f32.mrb[0].mxu0
        %v2858 = vadd.f32 0.0, %v2857
        %v2859 = vpop.f32.mrb[0].mxu0
        %2860 = vdwg.mxu0
        %2869 = vrot.lane.b32.xlu0 %v2823, 32
        %v2870 = vpop.permute.xlu0 %2869
        %2871 = vrot.lane.b32.xlu0 %v2828, 32
        %v2872 = vpop.permute.xlu0 %2871
        %2873 = vrot.lane.b32.xlu0 %v2833, 32
        %v2874 = vpop.permute.xlu0 %2873
        %2875 = vrot.lane.b32.xlu0 %v2838, 32
        %v2876 = vpop.permute.xlu0 %2875
        %2877 = vrot.lane.b32.xlu0 %v2843, 32
        %v2878 = vpop.permute.xlu0 %2877
        %2879 = vrot.lane.b32.xlu0 %v2848, 32
        %v2880 = vpop.permute.xlu0 %2879
        %2881 = vrot.lane.b32.xlu0 %v2853, 32
        %v2882 = vpop.permute.xlu0 %2881
        %2883 = vrot.lane.b32.xlu0 %v2858, 32
        %v2884 = vpop.permute.xlu0 %2883
        %vm2893 = vcmask 326912
        %2894 = vst.msk [vmem:[#allocation2] sm:$0xff] %vm2893, %v2870
        %2895 = vst.msk [vmem:[#allocation2 + $0x8] sm:$0xff] %vm2893, %v2872
        %2896 = vst.msk [vmem:[#allocation2 + $0x10] sm:$0xff] %vm2893, %v2874
        %2897 = vst.msk [vmem:[#allocation2 + $0x18] sm:$0xff] %vm2893, %v2876
        %2898 = vst.msk [vmem:[#allocation2 + $0x20] sm:$0xff] %vm2893, %v2878
        %2899 = vst.msk [vmem:[#allocation2 + $0x28] sm:$0xff] %vm2893, %v2880
        %2900 = vst.msk [vmem:[#allocation2 + $0x30] sm:$0xff] %vm2893, %v2882
        %2901 = vst.msk [vmem:[#allocation2 + $0x38] sm:$0xff] %vm2893, %v2884
        %2902 = vrot.lane.b32.xlu0 %v543, 88
        %v2903 = vpop.permute.xlu0 %2902
        %2904 = vrot.lane.b32.xlu0 %v544, 88
        %v2905 = vpop.permute.xlu0 %2904
        %2906 = vrot.lane.b32.xlu0 %v545, 88
        %v2907 = vpop.permute.xlu0 %2906
        %2908 = vrot.lane.b32.xlu0 %v546, 88
        %v2909 = vpop.permute.xlu0 %2908
        %2910 = vrot.lane.b32.xlu0 %v547, 88
        %v2911 = vpop.permute.xlu0 %2910
        %2912 = vrot.lane.b32.xlu0 %v548, 88
        %v2913 = vpop.permute.xlu0 %2912
        %2914 = vrot.lane.b32.xlu0 %v549, 88
        %v2915 = vpop.permute.xlu0 %2914
        %2916 = vrot.lane.b32.xlu0 %v550, 88
        %v2917 = vpop.permute.xlu0 %2916
        %2918 = vrot.lane.b32.xlu0 %v657, 88
        %v2919 = vpop.permute.xlu0 %2918
        %2920 = vrot.lane.b32.xlu0 %v662, 88
        %v2921 = vpop.permute.xlu0 %2920
        %2922 = vrot.lane.b32.xlu0 %v667, 88
        %v2923 = vpop.permute.xlu0 %2922
        %2924 = vrot.lane.b32.xlu0 %v672, 88
        %v2925 = vpop.permute.xlu0 %2924
        %2926 = vrot.lane.b32.xlu0 %v677, 88
        %v2927 = vpop.permute.xlu0 %2926
        %2928 = vrot.lane.b32.xlu0 %v682, 88
        %v2929 = vpop.permute.xlu0 %2928
        %2930 = vrot.lane.b32.xlu0 %v687, 88
        %v2931 = vpop.permute.xlu0 %2930
        %2932 = vrot.lane.b32.xlu0 %v692, 88
        %v2933 = vpop.permute.xlu0 %2932
        %v2934 = vsel %vm695, %v2903, 0
        %v2936 = vsel %vm695, %v2905, 0
        %v2938 = vsel %vm695, %v2907, 0
        %v2940 = vsel %vm695, %v2909, 0
        %v2942 = vsel %vm695, %v2911, 0
        %v2944 = vsel %vm695, %v2913, 0
        %v2946 = vsel %vm695, %v2915, 0
        %v2948 = vsel %vm695, %v2917, 0
        %v2950 = vsel %vm695, %v2919, 0
        %v2952 = vsel %vm695, %v2921, 0
        %v2954 = vsel %vm695, %v2923, 0
        %v2956 = vsel %vm695, %v2925, 0
        %v2958 = vsel %vm695, %v2927, 0
        %v2960 = vsel %vm695, %v2929, 0
        %v2962 = vsel %vm695, %v2931, 0
        %v2964 = vsel %vm695, %v2933, 0
        %2966 = vmatprep.subr.mxu0 0.0
        %2967 = vmatpush1.xpose.msra.mxu0 %v2950
        %2968 = vmatprep.subr.mxu0 0.0
        %2969 = vmatpush1.xpose.msra.mxu0 %v2952
        %2970 = vmatprep.subr.mxu0 0.0
        %2971 = vmatpush1.xpose.msra.mxu0 %v2954
        %2972 = vmatprep.subr.mxu0 0.0
        %2973 = vmatpush1.xpose.msra.mxu0 %v2956
        %2974 = vmatprep.subr.mxu0 0.0
        %2975 = vmatpush1.xpose.msra.mxu0 %v2958
        %2976 = vmatprep.subr.mxu0 0.0
        %2977 = vmatpush1.xpose.msra.mxu0 %v2960
        %2978 = vmatprep.subr.mxu0 0.0
        %2979 = vmatpush1.xpose.msra.mxu0 %v2962
        %2980 = vmatprep.subr.mxu0 0.0
        %2981 = vmatpush1.xpose.msra.mxu0 %v2964
        %2982 = vmatprep.subr.mxu0 0.0
        %2983 = vmatpush1.xpose.msra.mxu0 0.0
        %2984 = vmatprep.subr.mxu0 0.0
        %2985 = vmatpush1.xpose.msra.mxu0 0.0
        %2986 = vmatprep.subr.mxu0 0.0
        %2987 = vmatpush1.xpose.msra.mxu0 0.0
        %2988 = vmatprep.subr.mxu0 0.0
        %2989 = vmatpush1.xpose.msra.mxu0 0.0
        %2990 = vmatprep.subr.mxu0 0.0
        %2991 = vmatpush1.xpose.msra.mxu0 0.0
        %2992 = vmatprep.subr.mxu0 0.0
        %2993 = vmatpush1.xpose.msra.mxu0 0.0
        %2994 = vmatprep.subr.mxu0 0.0
        %2995 = vmatpush1.xpose.msra.mxu0 0.0
        %2996 = vmatprep.subr.mxu0 0.0
        %2997 = vmatpush1.xpose.msra.mxu0 0.0
        %2998 = vmatprep.subr.mxu0 0.0
        %2999 = vmatpush1.xpose.msra.mxu0 0.0
        %3000 = vmatprep.subr.mxu0 0.0
        %3001 = vmatpush1.xpose.msra.mxu0 0.0
        %3002 = vmatprep.subr.mxu0 0.0
        %3003 = vmatpush1.xpose.msra.mxu0 0.0
        %3004 = vmatprep.subr.mxu0 0.0
        %3005 = vmatpush1.xpose.msra.mxu0 0.0
        %3006 = vmatprep.subr.mxu0 0.0
        %3007 = vmatpush1.xpose.msra.mxu0 0.0
        %3008 = vmatprep.subr.mxu0 0.0
        %3009 = vmatpush1.xpose.msra.mxu0 0.0
        %3010 = vmatprep.subr.mxu0 0.0
        %3011 = vmatpush1.xpose.msra.mxu0 0.0
        %3012 = vmatprep.subr.mxu0 0.0
        %3013 = vmatpush1.xpose.msra.mxu0 0.0
        %3014 = vmatprep.subr.mxu0 0.0
        %3015 = vmatpush1.xpose.msra.mxu0 0.0
        %3016 = vmatprep.subr.mxu0 0.0
        %3017 = vmatpush1.xpose.msra.mxu0 0.0
        %3018 = vmatprep.subr.mxu0 0.0
        %3019 = vmatpush1.xpose.msra.mxu0 0.0
        %3020 = vmatprep.subr.mxu0 0.0
        %3021 = vmatpush1.xpose.msra.mxu0 0.0
        %3022 = vmatprep.subr.mxu0 0.0
        %3023 = vmatpush1.xpose.msra.mxu0 0.0
        %3024 = vmatprep.subr.mxu0 0.0
        %3025 = vmatpush1.xpose.msra.mxu0 0.0
        %3026 = vmatprep.subr.mxu0 0.0
        %3027 = vmatpush1.xpose.msra.mxu0 0.0
        %3028 = vmatprep.subr.mxu0 0.0
        %3029 = vmatpush1.xpose.msra.mxu0 0.0
        %3030 = vmatprep.mubr.f32.mxu0 0.0
        %3031 = vmatmul.mubr.f32.gmra.mrb[0].mxu0 %v2934
        %v3032 = vpop.f32.mrb[0].mxu0
        %v3033 = vadd.f32 0.0, %v3032
        %v3034 = vpop.f32.mrb[0].mxu0
        %3035 = vmatprep.mubr.f32.mxu0 0.0
        %3036 = vmatmul.mubr.f32.gmra.mrb[0].mxu0 %v2936
        %v3037 = vpop.f32.mrb[0].mxu0
        %v3038 = vadd.f32 0.0, %v3037
        %v3039 = vpop.f32.mrb[0].mxu0
        %3040 = vmatprep.mubr.f32.mxu0 0.0
        %3041 = vmatmul.mubr.f32.gmra.mrb[0].mxu0 %v2938
        %v3042 = vpop.f32.mrb[0].mxu0
        %v3043 = vadd.f32 0.0, %v3042
        %v3044 = vpop.f32.mrb[0].mxu0
        %3045 = vmatprep.mubr.f32.mxu0 0.0
        %3046 = vmatmul.mubr.f32.gmra.mrb[0].mxu0 %v2940
        %v3047 = vpop.f32.mrb[0].mxu0
        %v3048 = vadd.f32 0.0, %v3047
        %v3049 = vpop.f32.mrb[0].mxu0
        %3050 = vmatprep.mubr.f32.mxu0 0.0
        %3051 = vmatmul.mubr.f32.gmra.mrb[0].mxu0 %v2942
        %v3052 = vpop.f32.mrb[0].mxu0
        %v3053 = vadd.f32 0.0, %v3052
        %v3054 = vpop.f32.mrb[0].mxu0
        %3055 = vmatprep.mubr.f32.mxu0 0.0
        %3056 = vmatmul.mubr.f32.gmra.mrb[0].mxu0 %v2944
        %v3057 = vpop.f32.mrb[0].mxu0
        %v3058 = vadd.f32 0.0, %v3057
        %v3059 = vpop.f32.mrb[0].mxu0
        %3060 = vmatprep.mubr.f32.mxu0 0.0
        %3061 = vmatmul.mubr.f32.gmra.mrb[0].mxu0 %v2946
        %v3062 = vpop.f32.mrb[0].mxu0
        %v3063 = vadd.f32 0.0, %v3062
        %v3064 = vpop.f32.mrb[0].mxu0
        %3065 = vmatprep.mubr.f32.mxu0 0.0
        %3066 = vmatmul.mubr.f32.gmra.mrb[0].mxu0 %v2948
        %v3067 = vpop.f32.mrb[0].mxu0
        %v3068 = vadd.f32 0.0, %v3067
        %v3069 = vpop.f32.mrb[0].mxu0
        %3070 = vdwg.mxu0
        %v3071 = vsel %vm413, %v3033, -inf
        %3072 = vmax.xlane.f32.xlu0 %v3071
        %v3073 = vpop.xlane.xlu0 %3072
        %v3074 = vsel %vm413, %v3038, -inf
        %3075 = vmax.xlane.f32.xlu0 %v3074
        %v3076 = vpop.xlane.xlu0 %3075
        %v3077 = vsel %vm413, %v3043, -inf
        %3078 = vmax.xlane.f32.xlu0 %v3077
        %v3079 = vpop.xlane.xlu0 %3078
        %v3080 = vsel %vm413, %v3048, -inf
        %3081 = vmax.xlane.f32.xlu0 %v3080
        %v3082 = vpop.xlane.xlu0 %3081
        %v3083 = vsel %vm413, %v3053, -inf
        %3084 = vmax.xlane.f32.xlu0 %v3083
        %v3085 = vpop.xlane.xlu0 %3084
        %v3086 = vsel %vm413, %v3058, -inf
        %3087 = vmax.xlane.f32.xlu0 %v3086
        %v3088 = vpop.xlane.xlu0 %3087
        %v3089 = vsel %vm413, %v3063, -inf
        %3090 = vmax.xlane.f32.xlu0 %v3089
        %v3091 = vpop.xlane.xlu0 %3090
        %v3092 = vsel %vm413, %v3068, -inf
        %3093 = vmax.xlane.f32.xlu0 %v3092
        %v3094 = vpop.xlane.xlu0 %3093
        %v3095 = vsub.f32 %v3033, %v3073
        %v3096 = vsub.f32 %v3038, %v3076
        %v3097 = vsub.f32 %v3043, %v3079
        %v3098 = vsub.f32 %v3048, %v3082
        %v3099 = vsub.f32 %v3053, %v3085
        %v3100 = vsub.f32 %v3058, %v3088
        %v3101 = vsub.f32 %v3063, %v3091
        %v3102 = vsub.f32 %v3068, %v3094
        %v3103 = vmul.f32 %v3095, 1.442695
        %v3104 = vpow.pop %v3103
        %v3105 = vmul.f32 %v3096, 1.442695
        %v3106 = vpow.pop %v3105
        %v3107 = vmul.f32 %v3097, 1.442695
        %v3108 = vpow.pop %v3107
        %v3109 = vmul.f32 %v3098, 1.442695
        %v3110 = vpow.pop %v3109
        %v3111 = vmul.f32 %v3099, 1.442695
        %v3112 = vpow.pop %v3111
        %v3113 = vmul.f32 %v3100, 1.442695
        %v3114 = vpow.pop %v3113
        %v3115 = vmul.f32 %v3101, 1.442695
        %v3116 = vpow.pop %v3115
        %v3117 = vmul.f32 %v3102, 1.442695
        %v3118 = vpow.pop %v3117
        %v3119 = vsel %vm413, %v3104, 0.0
        %3120 = vadd.xlane.f32.xlu0 %v3119
        %v3121 = vpop.xlane.xlu0 %3120
        %v3122 = vsel %vm413, %v3106, 0.0
        %3123 = vadd.xlane.f32.xlu0 %v3122
        %v3124 = vpop.xlane.xlu0 %3123
        %v3125 = vsel %vm413, %v3108, 0.0
        %3126 = vadd.xlane.f32.xlu0 %v3125
        %v3127 = vpop.xlane.xlu0 %3126
        %v3128 = vsel %vm413, %v3110, 0.0
        %3129 = vadd.xlane.f32.xlu0 %v3128
        %v3130 = vpop.xlane.xlu0 %3129
        %v3131 = vsel %vm413, %v3112, 0.0
        %3132 = vadd.xlane.f32.xlu0 %v3131
        %v3133 = vpop.xlane.xlu0 %3132
        %v3134 = vsel %vm413, %v3114, 0.0
        %3135 = vadd.xlane.f32.xlu0 %v3134
        %v3136 = vpop.xlane.xlu0 %3135
        %v3137 = vsel %vm413, %v3116, 0.0
        %3138 = vadd.xlane.f32.xlu0 %v3137
        %v3139 = vpop.xlane.xlu0 %3138
        %v3140 = vsel %vm413, %v3118, 0.0
        %3141 = vadd.xlane.f32.xlu0 %v3140
        %v3142 = vpop.xlane.xlu0 %3141
        %v3143 = vrcp.pop %v3121
        %v3144 = vrcp.pop %v3124
        %v3145 = vrcp.pop %v3127
        %v3146 = vrcp.pop %v3130
        %v3147 = vrcp.pop %v3133
        %v3148 = vrcp.pop %v3136
        %v3149 = vrcp.pop %v3139
        %v3150 = vrcp.pop %v3142
        %v3151 = vmul.f32 %v3104, %v3143
        %v3152 = vmul.f32 %v3106, %v3144
        %v3153 = vmul.f32 %v3108, %v3145
        %v3154 = vmul.f32 %v3110, %v3146
        %v3155 = vmul.f32 %v3112, %v3147
        %v3156 = vmul.f32 %v3114, %v3148
        %v3157 = vmul.f32 %v3116, %v3149
        %v3158 = vmul.f32 %v3118, %v3150
        %3159 = vrot.lane.b32.xlu0 %v657, 24
        %v3160 = vpop.permute.xlu0 %3159
        %3161 = vrot.lane.b32.xlu0 %v662, 24
        %v3162 = vpop.permute.xlu0 %3161
        %3163 = vrot.lane.b32.xlu0 %v667, 24
        %v3164 = vpop.permute.xlu0 %3163
        %3165 = vrot.lane.b32.xlu0 %v672, 24
        %v3166 = vpop.permute.xlu0 %3165
        %3167 = vrot.lane.b32.xlu0 %v677, 24
        %v3168 = vpop.permute.xlu0 %3167
        %3169 = vrot.lane.b32.xlu0 %v682, 24
        %v3170 = vpop.permute.xlu0 %3169
        %3171 = vrot.lane.b32.xlu0 %v687, 24
        %v3172 = vpop.permute.xlu0 %3171
        %3173 = vrot.lane.b32.xlu0 %v692, 24
        %v3174 = vpop.permute.xlu0 %3173
        %v3184 = vsel %vm413, %v3151, 0
        %v3187 = vsel %vm413, %v3152, 0
        %v3190 = vsel %vm413, %v3153, 0
        %v3193 = vsel %vm413, %v3154, 0
        %v3196 = vsel %vm413, %v3155, 0
        %v3199 = vsel %vm413, %v3156, 0
        %v3202 = vsel %vm413, %v3157, 0
        %v3205 = vsel %vm413, %v3158, 0
        %3207 = vmatprep.subr.mxu0 0.0
        %3208 = vmatpush1.msra.mxu0 %v3160
        %3209 = vmatprep.subr.mxu0 0.0
        %3210 = vmatpush1.msra.mxu0 %v3162
        %3211 = vmatprep.subr.mxu0 0.0
        %3212 = vmatpush1.msra.mxu0 %v3164
        %3213 = vmatprep.subr.mxu0 0.0
        %3214 = vmatpush1.msra.mxu0 %v3166
        %3215 = vmatprep.subr.mxu0 0.0
        %3216 = vmatpush1.msra.mxu0 %v3168
        %3217 = vmatprep.subr.mxu0 0.0
        %3218 = vmatpush1.msra.mxu0 %v3170
        %3219 = vmatprep.subr.mxu0 0.0
        %3220 = vmatpush1.msra.mxu0 %v3172
        %3221 = vmatprep.subr.mxu0 0.0
        %3222 = vmatpush1.msra.mxu0 %v3174
        %3223 = vmatprep.subr.mxu0 0.0
        %3224 = vmatpush1.msra.mxu0 0.0
        %3225 = vmatprep.subr.mxu0 0.0
        %3226 = vmatpush1.msra.mxu0 0.0
        %3227 = vmatprep.subr.mxu0 0.0
        %3228 = vmatpush1.msra.mxu0 0.0
        %3229 = vmatprep.subr.mxu0 0.0
        %3230 = vmatpush1.msra.mxu0 0.0
        %3231 = vmatprep.subr.mxu0 0.0
        %3232 = vmatpush1.msra.mxu0 0.0
        %3233 = vmatprep.subr.mxu0 0.0
        %3234 = vmatpush1.msra.mxu0 0.0
        %3235 = vmatprep.subr.mxu0 0.0
        %3236 = vmatpush1.msra.mxu0 0.0
        %3237 = vmatprep.subr.mxu0 0.0
        %3238 = vmatpush1.msra.mxu0 0.0
        %3239 = vmatprep.subr.mxu0 0.0
        %3240 = vmatpush1.msra.mxu0 0.0
        %3241 = vmatprep.subr.mxu0 0.0
        %3242 = vmatpush1.msra.mxu0 0.0
        %3243 = vmatprep.subr.mxu0 0.0
        %3244 = vmatpush1.msra.mxu0 0.0
        %3245 = vmatprep.subr.mxu0 0.0
        %3246 = vmatpush1.msra.mxu0 0.0
        %3247 = vmatprep.subr.mxu0 0.0
        %3248 = vmatpush1.msra.mxu0 0.0
        %3249 = vmatprep.subr.mxu0 0.0
        %3250 = vmatpush1.msra.mxu0 0.0
        %3251 = vmatprep.subr.mxu0 0.0
        %3252 = vmatpush1.msra.mxu0 0.0
        %3253 = vmatprep.subr.mxu0 0.0
        %3254 = vmatpush1.msra.mxu0 0.0
        %3255 = vmatprep.subr.mxu0 0.0
        %3256 = vmatpush1.msra.mxu0 0.0
        %3257 = vmatprep.subr.mxu0 0.0
        %3258 = vmatpush1.msra.mxu0 0.0
        %3259 = vmatprep.subr.mxu0 0.0
        %3260 = vmatpush1.msra.mxu0 0.0
        %3261 = vmatprep.subr.mxu0 0.0
        %3262 = vmatpush1.msra.mxu0 0.0
        %3263 = vmatprep.subr.mxu0 0.0
        %3264 = vmatpush1.msra.mxu0 0.0
        %3265 = vmatprep.subr.mxu0 0.0
        %3266 = vmatpush1.msra.mxu0 0.0
        %3267 = vmatprep.subr.mxu0 0.0
        %3268 = vmatpush1.msra.mxu0 0.0
        %3269 = vmatprep.subr.mxu0 0.0
        %3270 = vmatpush1.msra.mxu0 0.0
        %3271 = vmatprep.mubr.f32.mxu0 0.0
        %3272 = vmatmul.mubr.f32.gmra.mrb[0].mxu0 %v3184
        %v3273 = vpop.f32.mrb[0].mxu0
        %v3274 = vadd.f32 0.0, %v3273
        %v3275 = vpop.f32.mrb[0].mxu0
        %3276 = vmatprep.mubr.f32.mxu0 0.0
        %3277 = vmatmul.mubr.f32.gmra.mrb[0].mxu0 %v3187
        %v3278 = vpop.f32.mrb[0].mxu0
        %v3279 = vadd.f32 0.0, %v3278
        %v3280 = vpop.f32.mrb[0].mxu0
        %3281 = vmatprep.mubr.f32.mxu0 0.0
        %3282 = vmatmul.mubr.f32.gmra.mrb[0].mxu0 %v3190
        %v3283 = vpop.f32.mrb[0].mxu0
        %v3284 = vadd.f32 0.0, %v3283
        %v3285 = vpop.f32.mrb[0].mxu0
        %3286 = vmatprep.mubr.f32.mxu0 0.0
        %3287 = vmatmul.mubr.f32.gmra.mrb[0].mxu0 %v3193
        %v3288 = vpop.f32.mrb[0].mxu0
        %v3289 = vadd.f32 0.0, %v3288
        %v3290 = vpop.f32.mrb[0].mxu0
        %3291 = vmatprep.mubr.f32.mxu0 0.0
        %3292 = vmatmul.mubr.f32.gmra.mrb[0].mxu0 %v3196
        %v3293 = vpop.f32.mrb[0].mxu0
        %v3294 = vadd.f32 0.0, %v3293
        %v3295 = vpop.f32.mrb[0].mxu0
        %3296 = vmatprep.mubr.f32.mxu0 0.0
        %3297 = vmatmul.mubr.f32.gmra.mrb[0].mxu0 %v3199
        %v3298 = vpop.f32.mrb[0].mxu0
        %v3299 = vadd.f32 0.0, %v3298
        %v3300 = vpop.f32.mrb[0].mxu0
        %3301 = vmatprep.mubr.f32.mxu0 0.0
        %3302 = vmatmul.mubr.f32.gmra.mrb[0].mxu0 %v3202
        %v3303 = vpop.f32.mrb[0].mxu0
        %v3304 = vadd.f32 0.0, %v3303
        %v3305 = vpop.f32.mrb[0].mxu0
        %3306 = vmatprep.mubr.f32.mxu0 0.0
        %3307 = vmatmul.mubr.f32.gmra.mrb[0].mxu0 %v3205
        %v3308 = vpop.f32.mrb[0].mxu0
        %v3309 = vadd.f32 0.0, %v3308
        %v3310 = vpop.f32.mrb[0].mxu0
        %3311 = vdwg.mxu0
        %3320 = vrot.lane.b32.xlu0 %v3274, 40
        %v3321 = vpop.permute.xlu0 %3320
        %3322 = vrot.lane.b32.xlu0 %v3279, 40
        %v3323 = vpop.permute.xlu0 %3322
        %3324 = vrot.lane.b32.xlu0 %v3284, 40
        %v3325 = vpop.permute.xlu0 %3324
        %3326 = vrot.lane.b32.xlu0 %v3289, 40
        %v3327 = vpop.permute.xlu0 %3326
        %3328 = vrot.lane.b32.xlu0 %v3294, 40
        %v3329 = vpop.permute.xlu0 %3328
        %3330 = vrot.lane.b32.xlu0 %v3299, 40
        %v3331 = vpop.permute.xlu0 %3330
        %3332 = vrot.lane.b32.xlu0 %v3304, 40
        %v3333 = vpop.permute.xlu0 %3332
        %3334 = vrot.lane.b32.xlu0 %v3309, 40
        %v3335 = vpop.permute.xlu0 %3334
        %vm3344 = vcmask 392512
        %3345 = vst.msk [vmem:[#allocation2] sm:$0xff] %vm3344, %v3321
        %3346 = vst.msk [vmem:[#allocation2 + $0x8] sm:$0xff] %vm3344, %v3323
        %3347 = vst.msk [vmem:[#allocation2 + $0x10] sm:$0xff] %vm3344, %v3325
        %3348 = vst.msk [vmem:[#allocation2 + $0x18] sm:$0xff] %vm3344, %v3327
        %3349 = vst.msk [vmem:[#allocation2 + $0x20] sm:$0xff] %vm3344, %v3329
        %3350 = vst.msk [vmem:[#allocation2 + $0x28] sm:$0xff] %vm3344, %v3331
        %3351 = vst.msk [vmem:[#allocation2 + $0x30] sm:$0xff] %vm3344, %v3333
        %3352 = vst.msk [vmem:[#allocation2 + $0x38] sm:$0xff] %vm3344, %v3335
        %3353 = vrot.lane.b32.xlu0 %v543, 80
        %v3354 = vpop.permute.xlu0 %3353
        %3355 = vrot.lane.b32.xlu0 %v544, 80
        %v3356 = vpop.permute.xlu0 %3355
        %3357 = vrot.lane.b32.xlu0 %v545, 80
        %v3358 = vpop.permute.xlu0 %3357
        %3359 = vrot.lane.b32.xlu0 %v546, 80
        %v3360 = vpop.permute.xlu0 %3359
        %3361 = vrot.lane.b32.xlu0 %v547, 80
        %v3362 = vpop.permute.xlu0 %3361
        %3363 = vrot.lane.b32.xlu0 %v548, 80
        %v3364 = vpop.permute.xlu0 %3363
        %3365 = vrot.lane.b32.xlu0 %v549, 80
        %v3366 = vpop.permute.xlu0 %3365
        %3367 = vrot.lane.b32.xlu0 %v550, 80
        %v3368 = vpop.permute.xlu0 %3367
        %3369 = vrot.lane.b32.xlu0 %v657, 80
        %v3370 = vpop.permute.xlu0 %3369
        %3371 = vrot.lane.b32.xlu0 %v662, 80
        %v3372 = vpop.permute.xlu0 %3371
        %3373 = vrot.lane.b32.xlu0 %v667, 80
        %v3374 = vpop.permute.xlu0 %3373
        %3375 = vrot.lane.b32.xlu0 %v672, 80
        %v3376 = vpop.permute.xlu0 %3375
        %3377 = vrot.lane.b32.xlu0 %v677, 80
        %v3378 = vpop.permute.xlu0 %3377
        %3379 = vrot.lane.b32.xlu0 %v682, 80
        %v3380 = vpop.permute.xlu0 %3379
        %3381 = vrot.lane.b32.xlu0 %v687, 80
        %v3382 = vpop.permute.xlu0 %3381
        %3383 = vrot.lane.b32.xlu0 %v692, 80
        %v3384 = vpop.permute.xlu0 %3383
        %v3385 = vsel %vm695, %v3354, 0
        %v3387 = vsel %vm695, %v3356, 0
        %v3389 = vsel %vm695, %v3358, 0
        %v3391 = vsel %vm695, %v3360, 0
        %v3393 = vsel %vm695, %v3362, 0
        %v3395 = vsel %vm695, %v3364, 0
        %v3397 = vsel %vm695, %v3366, 0
        %v3399 = vsel %vm695, %v3368, 0
        %v3401 = vsel %vm695, %v3370, 0
        %v3403 = vsel %vm695, %v3372, 0
        %v3405 = vsel %vm695, %v3374, 0
        %v3407 = vsel %vm695, %v3376, 0
        %v3409 = vsel %vm695, %v3378, 0
        %v3411 = vsel %vm695, %v3380, 0
        %v3413 = vsel %vm695, %v3382, 0
        %v3415 = vsel %vm695, %v3384, 0
        %3417 = vmatprep.subr.mxu0 0.0
        %3418 = vmatpush1.xpose.msra.mxu0 %v3401
        %3419 = vmatprep.subr.mxu0 0.0
        %3420 = vmatpush1.xpose.msra.mxu0 %v3403
        %3421 = vmatprep.subr.mxu0 0.0
        %3422 = vmatpush1.xpose.msra.mxu0 %v3405
        %3423 = vmatprep.subr.mxu0 0.0
        %3424 = vmatpush1.xpose.msra.mxu0 %v3407
        %3425 = vmatprep.subr.mxu0 0.0
        %3426 = vmatpush1.xpose.msra.mxu0 %v3409
        %3427 = vmatprep.subr.mxu0 0.0
        %3428 = vmatpush1.xpose.msra.mxu0 %v3411
        %3429 = vmatprep.subr.mxu0 0.0
        %3430 = vmatpush1.xpose.msra.mxu0 %v3413
        %3431 = vmatprep.subr.mxu0 0.0
        %3432 = vmatpush1.xpose.msra.mxu0 %v3415
        %3433 = vmatprep.subr.mxu0 0.0
        %3434 = vmatpush1.xpose.msra.mxu0 0.0
        %3435 = vmatprep.subr.mxu0 0.0
        %3436 = vmatpush1.xpose.msra.mxu0 0.0
        %3437 = vmatprep.subr.mxu0 0.0
        %3438 = vmatpush1.xpose.msra.mxu0 0.0
        %3439 = vmatprep.subr.mxu0 0.0
        %3440 = vmatpush1.xpose.msra.mxu0 0.0
        %3441 = vmatprep.subr.mxu0 0.0
        %3442 = vmatpush1.xpose.msra.mxu0 0.0
        %3443 = vmatprep.subr.mxu0 0.0
        %3444 = vmatpush1.xpose.msra.mxu0 0.0
        %3445 = vmatprep.subr.mxu0 0.0
        %3446 = vmatpush1.xpose.msra.mxu0 0.0
        %3447 = vmatprep.subr.mxu0 0.0
        %3448 = vmatpush1.xpose.msra.mxu0 0.0
        %3449 = vmatprep.subr.mxu0 0.0
        %3450 = vmatpush1.xpose.msra.mxu0 0.0
        %3451 = vmatprep.subr.mxu0 0.0
        %3452 = vmatpush1.xpose.msra.mxu0 0.0
        %3453 = vmatprep.subr.mxu0 0.0
        %3454 = vmatpush1.xpose.msra.mxu0 0.0
        %3455 = vmatprep.subr.mxu0 0.0
        %3456 = vmatpush1.xpose.msra.mxu0 0.0
        %3457 = vmatprep.subr.mxu0 0.0
        %3458 = vmatpush1.xpose.msra.mxu0 0.0
        %3459 = vmatprep.subr.mxu0 0.0
        %3460 = vmatpush1.xpose.msra.mxu0 0.0
        %3461 = vmatprep.subr.mxu0 0.0
        %3462 = vmatpush1.xpose.msra.mxu0 0.0
        %3463 = vmatprep.subr.mxu0 0.0
        %3464 = vmatpush1.xpose.msra.mxu0 0.0
        %3465 = vmatprep.subr.mxu0 0.0
        %3466 = vmatpush1.xpose.msra.mxu0 0.0
        %3467 = vmatprep.subr.mxu0 0.0
        %3468 = vmatpush1.xpose.msra.mxu0 0.0
        %3469 = vmatprep.subr.mxu0 0.0
        %3470 = vmatpush1.xpose.msra.mxu0 0.0
        %3471 = vmatprep.subr.mxu0 0.0
        %3472 = vmatpush1.xpose.msra.mxu0 0.0
        %3473 = vmatprep.subr.mxu0 0.0
        %3474 = vmatpush1.xpose.msra.mxu0 0.0
        %3475 = vmatprep.subr.mxu0 0.0
        %3476 = vmatpush1.xpose.msra.mxu0 0.0
        %3477 = vmatprep.subr.mxu0 0.0
        %3478 = vmatpush1.xpose.msra.mxu0 0.0
        %3479 = vmatprep.subr.mxu0 0.0
        %3480 = vmatpush1.xpose.msra.mxu0 0.0
        %3481 = vmatprep.mubr.f32.mxu0 0.0
        %3482 = vmatmul.mubr.f32.gmra.mrb[0].mxu0 %v3385
        %v3483 = vpop.f32.mrb[0].mxu0
        %v3484 = vadd.f32 0.0, %v3483
        %v3485 = vpop.f32.mrb[0].mxu0
        %3486 = vmatprep.mubr.f32.mxu0 0.0
        %3487 = vmatmul.mubr.f32.gmra.mrb[0].mxu0 %v3387
        %v3488 = vpop.f32.mrb[0].mxu0
        %v3489 = vadd.f32 0.0, %v3488
        %v3490 = vpop.f32.mrb[0].mxu0
        %3491 = vmatprep.mubr.f32.mxu0 0.0
        %3492 = vmatmul.mubr.f32.gmra.mrb[0].mxu0 %v3389
        %v3493 = vpop.f32.mrb[0].mxu0
        %v3494 = vadd.f32 0.0, %v3493
        %v3495 = vpop.f32.mrb[0].mxu0
        %3496 = vmatprep.mubr.f32.mxu0 0.0
        %3497 = vmatmul.mubr.f32.gmra.mrb[0].mxu0 %v3391
        %v3498 = vpop.f32.mrb[0].mxu0
        %v3499 = vadd.f32 0.0, %v3498
        %v3500 = vpop.f32.mrb[0].mxu0
        %3501 = vmatprep.mubr.f32.mxu0 0.0
        %3502 = vmatmul.mubr.f32.gmra.mrb[0].mxu0 %v3393
        %v3503 = vpop.f32.mrb[0].mxu0
        %v3504 = vadd.f32 0.0, %v3503
        %v3505 = vpop.f32.mrb[0].mxu0
        %3506 = vmatprep.mubr.f32.mxu0 0.0
        %3507 = vmatmul.mubr.f32.gmra.mrb[0].mxu0 %v3395
        %v3508 = vpop.f32.mrb[0].mxu0
        %v3509 = vadd.f32 0.0, %v3508
        %v3510 = vpop.f32.mrb[0].mxu0
        %3511 = vmatprep.mubr.f32.mxu0 0.0
        %3512 = vmatmul.mubr.f32.gmra.mrb[0].mxu0 %v3397
        %v3513 = vpop.f32.mrb[0].mxu0
        %v3514 = vadd.f32 0.0, %v3513
        %v3515 = vpop.f32.mrb[0].mxu0
        %3516 = vmatprep.mubr.f32.mxu0 0.0
        %3517 = vmatmul.mubr.f32.gmra.mrb[0].mxu0 %v3399
        %v3518 = vpop.f32.mrb[0].mxu0
        %v3519 = vadd.f32 0.0, %v3518
        %v3520 = vpop.f32.mrb[0].mxu0
        %3521 = vdwg.mxu0
        %v3522 = vsel %vm413, %v3484, -inf
        %3523 = vmax.xlane.f32.xlu0 %v3522
        %v3524 = vpop.xlane.xlu0 %3523
        %v3525 = vsel %vm413, %v3489, -inf
        %3526 = vmax.xlane.f32.xlu0 %v3525
        %v3527 = vpop.xlane.xlu0 %3526
        %v3528 = vsel %vm413, %v3494, -inf
        %3529 = vmax.xlane.f32.xlu0 %v3528
        %v3530 = vpop.xlane.xlu0 %3529
        %v3531 = vsel %vm413, %v3499, -inf
        %3532 = vmax.xlane.f32.xlu0 %v3531
        %v3533 = vpop.xlane.xlu0 %3532
        %v3534 = vsel %vm413, %v3504, -inf
        %3535 = vmax.xlane.f32.xlu0 %v3534
        %v3536 = vpop.xlane.xlu0 %3535
        %v3537 = vsel %vm413, %v3509, -inf
        %3538 = vmax.xlane.f32.xlu0 %v3537
        %v3539 = vpop.xlane.xlu0 %3538
        %v3540 = vsel %vm413, %v3514, -inf
        %3541 = vmax.xlane.f32.xlu0 %v3540
        %v3542 = vpop.xlane.xlu0 %3541
        %v3543 = vsel %vm413, %v3519, -inf
        %3544 = vmax.xlane.f32.xlu0 %v3543
        %v3545 = vpop.xlane.xlu0 %3544
        %v3546 = vsub.f32 %v3484, %v3524
        %v3547 = vsub.f32 %v3489, %v3527
        %v3548 = vsub.f32 %v3494, %v3530
        %v3549 = vsub.f32 %v3499, %v3533
        %v3550 = vsub.f32 %v3504, %v3536
        %v3551 = vsub.f32 %v3509, %v3539
        %v3552 = vsub.f32 %v3514, %v3542
        %v3553 = vsub.f32 %v3519, %v3545
        %v3554 = vmul.f32 %v3546, 1.442695
        %v3555 = vpow.pop %v3554
        %v3556 = vmul.f32 %v3547, 1.442695
        %v3557 = vpow.pop %v3556
        %v3558 = vmul.f32 %v3548, 1.442695
        %v3559 = vpow.pop %v3558
        %v3560 = vmul.f32 %v3549, 1.442695
        %v3561 = vpow.pop %v3560
        %v3562 = vmul.f32 %v3550, 1.442695
        %v3563 = vpow.pop %v3562
        %v3564 = vmul.f32 %v3551, 1.442695
        %v3565 = vpow.pop %v3564
        %v3566 = vmul.f32 %v3552, 1.442695
        %v3567 = vpow.pop %v3566
        %v3568 = vmul.f32 %v3553, 1.442695
        %v3569 = vpow.pop %v3568
        %v3570 = vsel %vm413, %v3555, 0.0
        %3571 = vadd.xlane.f32.xlu0 %v3570
        %v3572 = vpop.xlane.xlu0 %3571
        %v3573 = vsel %vm413, %v3557, 0.0
        %3574 = vadd.xlane.f32.xlu0 %v3573
        %v3575 = vpop.xlane.xlu0 %3574
        %v3576 = vsel %vm413, %v3559, 0.0
        %3577 = vadd.xlane.f32.xlu0 %v3576
        %v3578 = vpop.xlane.xlu0 %3577
        %v3579 = vsel %vm413, %v3561, 0.0
        %3580 = vadd.xlane.f32.xlu0 %v3579
        %v3581 = vpop.xlane.xlu0 %3580
        %v3582 = vsel %vm413, %v3563, 0.0
        %3583 = vadd.xlane.f32.xlu0 %v3582
        %v3584 = vpop.xlane.xlu0 %3583
        %v3585 = vsel %vm413, %v3565, 0.0
        %3586 = vadd.xlane.f32.xlu0 %v3585
        %v3587 = vpop.xlane.xlu0 %3586
        %v3588 = vsel %vm413, %v3567, 0.0
        %3589 = vadd.xlane.f32.xlu0 %v3588
        %v3590 = vpop.xlane.xlu0 %3589
        %v3591 = vsel %vm413, %v3569, 0.0
        %3592 = vadd.xlane.f32.xlu0 %v3591
        %v3593 = vpop.xlane.xlu0 %3592
        %v3594 = vrcp.pop %v3572
        %v3595 = vrcp.pop %v3575
        %v3596 = vrcp.pop %v3578
        %v3597 = vrcp.pop %v3581
        %v3598 = vrcp.pop %v3584
        %v3599 = vrcp.pop %v3587
        %v3600 = vrcp.pop %v3590
        %v3601 = vrcp.pop %v3593
        %v3602 = vmul.f32 %v3555, %v3594
        %v3603 = vmul.f32 %v3557, %v3595
        %v3604 = vmul.f32 %v3559, %v3596
        %v3605 = vmul.f32 %v3561, %v3597
        %v3606 = vmul.f32 %v3563, %v3598
        %v3607 = vmul.f32 %v3565, %v3599
        %v3608 = vmul.f32 %v3567, %v3600
        %v3609 = vmul.f32 %v3569, %v3601
        %3610 = vrot.lane.b32.xlu0 %v657, 16
        %v3611 = vpop.permute.xlu0 %3610
        %3612 = vrot.lane.b32.xlu0 %v662, 16
        %v3613 = vpop.permute.xlu0 %3612
        %3614 = vrot.lane.b32.xlu0 %v667, 16
        %v3615 = vpop.permute.xlu0 %3614
        %3616 = vrot.lane.b32.xlu0 %v672, 16
        %v3617 = vpop.permute.xlu0 %3616
        %3618 = vrot.lane.b32.xlu0 %v677, 16
        %v3619 = vpop.permute.xlu0 %3618
        %3620 = vrot.lane.b32.xlu0 %v682, 16
        %v3621 = vpop.permute.xlu0 %3620
        %3622 = vrot.lane.b32.xlu0 %v687, 16
        %v3623 = vpop.permute.xlu0 %3622
        %3624 = vrot.lane.b32.xlu0 %v692, 16
        %v3625 = vpop.permute.xlu0 %3624
        %v3635 = vsel %vm413, %v3602, 0
        %v3638 = vsel %vm413, %v3603, 0
        %v3641 = vsel %vm413, %v3604, 0
        %v3644 = vsel %vm413, %v3605, 0
        %v3647 = vsel %vm413, %v3606, 0
        %v3650 = vsel %vm413, %v3607, 0
        %v3653 = vsel %vm413, %v3608, 0
        %v3656 = vsel %vm413, %v3609, 0
        %3658 = vmatprep.subr.mxu0 0.0
        %3659 = vmatpush1.msra.mxu0 %v3611
        %3660 = vmatprep.subr.mxu0 0.0
        %3661 = vmatpush1.msra.mxu0 %v3613
        %3662 = vmatprep.subr.mxu0 0.0
        %3663 = vmatpush1.msra.mxu0 %v3615
        %3664 = vmatprep.subr.mxu0 0.0
        %3665 = vmatpush1.msra.mxu0 %v3617
        %3666 = vmatprep.subr.mxu0 0.0
        %3667 = vmatpush1.msra.mxu0 %v3619
        %3668 = vmatprep.subr.mxu0 0.0
        %3669 = vmatpush1.msra.mxu0 %v3621
        %3670 = vmatprep.subr.mxu0 0.0
        %3671 = vmatpush1.msra.mxu0 %v3623
        %3672 = vmatprep.subr.mxu0 0.0
        %3673 = vmatpush1.msra.mxu0 %v3625
        %3674 = vmatprep.subr.mxu0 0.0
        %3675 = vmatpush1.msra.mxu0 0.0
        %3676 = vmatprep.subr.mxu0 0.0
        %3677 = vmatpush1.msra.mxu0 0.0
        %3678 = vmatprep.subr.mxu0 0.0
        %3679 = vmatpush1.msra.mxu0 0.0
        %3680 = vmatprep.subr.mxu0 0.0
        %3681 = vmatpush1.msra.mxu0 0.0
        %3682 = vmatprep.subr.mxu0 0.0
        %3683 = vmatpush1.msra.mxu0 0.0
        %3684 = vmatprep.subr.mxu0 0.0
        %3685 = vmatpush1.msra.mxu0 0.0
        %3686 = vmatprep.subr.mxu0 0.0
        %3687 = vmatpush1.msra.mxu0 0.0
        %3688 = vmatprep.subr.mxu0 0.0
        %3689 = vmatpush1.msra.mxu0 0.0
        %3690 = vmatprep.subr.mxu0 0.0
        %3691 = vmatpush1.msra.mxu0 0.0
        %3692 = vmatprep.subr.mxu0 0.0
        %3693 = vmatpush1.msra.mxu0 0.0
        %3694 = vmatprep.subr.mxu0 0.0
        %3695 = vmatpush1.msra.mxu0 0.0
        %3696 = vmatprep.subr.mxu0 0.0
        %3697 = vmatpush1.msra.mxu0 0.0
        %3698 = vmatprep.subr.mxu0 0.0
        %3699 = vmatpush1.msra.mxu0 0.0
        %3700 = vmatprep.subr.mxu0 0.0
        %3701 = vmatpush1.msra.mxu0 0.0
        %3702 = vmatprep.subr.mxu0 0.0
        %3703 = vmatpush1.msra.mxu0 0.0
        %3704 = vmatprep.subr.mxu0 0.0
        %3705 = vmatpush1.msra.mxu0 0.0
        %3706 = vmatprep.subr.mxu0 0.0
        %3707 = vmatpush1.msra.mxu0 0.0
        %3708 = vmatprep.subr.mxu0 0.0
        %3709 = vmatpush1.msra.mxu0 0.0
        %3710 = vmatprep.subr.mxu0 0.0
        %3711 = vmatpush1.msra.mxu0 0.0
        %3712 = vmatprep.subr.mxu0 0.0
        %3713 = vmatpush1.msra.mxu0 0.0
        %3714 = vmatprep.subr.mxu0 0.0
        %3715 = vmatpush1.msra.mxu0 0.0
        %3716 = vmatprep.subr.mxu0 0.0
        %3717 = vmatpush1.msra.mxu0 0.0
        %3718 = vmatprep.subr.mxu0 0.0
        %3719 = vmatpush1.msra.mxu0 0.0
        %3720 = vmatprep.subr.mxu0 0.0
        %3721 = vmatpush1.msra.mxu0 0.0
        %3722 = vmatprep.mubr.f32.mxu0 0.0
        %3723 = vmatmul.mubr.f32.gmra.mrb[0].mxu0 %v3635
        %v3724 = vpop.f32.mrb[0].mxu0
        %v3725 = vadd.f32 0.0, %v3724
        %v3726 = vpop.f32.mrb[0].mxu0
        %3727 = vmatprep.mubr.f32.mxu0 0.0
        %3728 = vmatmul.mubr.f32.gmra.mrb[0].mxu0 %v3638
        %v3729 = vpop.f32.mrb[0].mxu0
        %v3730 = vadd.f32 0.0, %v3729
        %v3731 = vpop.f32.mrb[0].mxu0
        %3732 = vmatprep.mubr.f32.mxu0 0.0
        %3733 = vmatmul.mubr.f32.gmra.mrb[0].mxu0 %v3641
        %v3734 = vpop.f32.mrb[0].mxu0
        %v3735 = vadd.f32 0.0, %v3734
        %v3736 = vpop.f32.mrb[0].mxu0
        %3737 = vmatprep.mubr.f32.mxu0 0.0
        %3738 = vmatmul.mubr.f32.gmra.mrb[0].mxu0 %v3644
        %v3739 = vpop.f32.mrb[0].mxu0
        %v3740 = vadd.f32 0.0, %v3739
        %v3741 = vpop.f32.mrb[0].mxu0
        %3742 = vmatprep.mubr.f32.mxu0 0.0
        %3743 = vmatmul.mubr.f32.gmra.mrb[0].mxu0 %v3647
        %v3744 = vpop.f32.mrb[0].mxu0
        %v3745 = vadd.f32 0.0, %v3744
        %v3746 = vpop.f32.mrb[0].mxu0
        %3747 = vmatprep.mubr.f32.mxu0 0.0
        %3748 = vmatmul.mubr.f32.gmra.mrb[0].mxu0 %v3650
        %v3749 = vpop.f32.mrb[0].mxu0
        %v3750 = vadd.f32 0.0, %v3749
        %v3751 = vpop.f32.mrb[0].mxu0
        %3752 = vmatprep.mubr.f32.mxu0 0.0
        %3753 = vmatmul.mubr.f32.gmra.mrb[0].mxu0 %v3653
        %v3754 = vpop.f32.mrb[0].mxu0
        %v3755 = vadd.f32 0.0, %v3754
        %v3756 = vpop.f32.mrb[0].mxu0
        %3757 = vmatprep.mubr.f32.mxu0 0.0
        %3758 = vmatmul.mubr.f32.gmra.mrb[0].mxu0 %v3656
        %v3759 = vpop.f32.mrb[0].mxu0
        %v3760 = vadd.f32 0.0, %v3759
        %v3761 = vpop.f32.mrb[0].mxu0
        %3762 = vdwg.mxu0
        %3771 = vrot.lane.b32.xlu0 %v3725, 48
        %v3772 = vpop.permute.xlu0 %3771
        %3773 = vrot.lane.b32.xlu0 %v3730, 48
        %v3774 = vpop.permute.xlu0 %3773
        %3775 = vrot.lane.b32.xlu0 %v3735, 48
        %v3776 = vpop.permute.xlu0 %3775
        %3777 = vrot.lane.b32.xlu0 %v3740, 48
        %v3778 = vpop.permute.xlu0 %3777
        %3779 = vrot.lane.b32.xlu0 %v3745, 48
        %v3780 = vpop.permute.xlu0 %3779
        %3781 = vrot.lane.b32.xlu0 %v3750, 48
        %v3782 = vpop.permute.xlu0 %3781
        %3783 = vrot.lane.b32.xlu0 %v3755, 48
        %v3784 = vpop.permute.xlu0 %3783
        %3785 = vrot.lane.b32.xlu0 %v3760, 48
        %v3786 = vpop.permute.xlu0 %3785
        %vm3795 = vcmask 458112
        %3796 = vst.msk [vmem:[#allocation2] sm:$0xff] %vm3795, %v3772
        %3797 = vst.msk [vmem:[#allocation2 + $0x8] sm:$0xff] %vm3795, %v3774
        %3798 = vst.msk [vmem:[#allocation2 + $0x10] sm:$0xff] %vm3795, %v3776
        %3799 = vst.msk [vmem:[#allocation2 + $0x18] sm:$0xff] %vm3795, %v3778
        %3800 = vst.msk [vmem:[#allocation2 + $0x20] sm:$0xff] %vm3795, %v3780
        %3801 = vst.msk [vmem:[#allocation2 + $0x28] sm:$0xff] %vm3795, %v3782
        %3802 = vst.msk [vmem:[#allocation2 + $0x30] sm:$0xff] %vm3795, %v3784
        %3803 = vst.msk [vmem:[#allocation2 + $0x38] sm:$0xff] %vm3795, %v3786
        %3804 = vrot.lane.b32.xlu0 %v543, 72
        %v3805 = vpop.permute.xlu0 %3804
        %3806 = vrot.lane.b32.xlu0 %v544, 72
        %v3807 = vpop.permute.xlu0 %3806
        %3808 = vrot.lane.b32.xlu0 %v545, 72
        %v3809 = vpop.permute.xlu0 %3808
        %3810 = vrot.lane.b32.xlu0 %v546, 72
        %v3811 = vpop.permute.xlu0 %3810
        %3812 = vrot.lane.b32.xlu0 %v547, 72
        %v3813 = vpop.permute.xlu0 %3812
        %3814 = vrot.lane.b32.xlu0 %v548, 72
        %v3815 = vpop.permute.xlu0 %3814
        %3816 = vrot.lane.b32.xlu0 %v549, 72
        %v3817 = vpop.permute.xlu0 %3816
        %3818 = vrot.lane.b32.xlu0 %v550, 72
        %v3819 = vpop.permute.xlu0 %3818
        %3820 = vrot.lane.b32.xlu0 %v657, 72
        %v3821 = vpop.permute.xlu0 %3820
        %3822 = vrot.lane.b32.xlu0 %v662, 72
        %v3823 = vpop.permute.xlu0 %3822
        %3824 = vrot.lane.b32.xlu0 %v667, 72
        %v3825 = vpop.permute.xlu0 %3824
        %3826 = vrot.lane.b32.xlu0 %v672, 72
        %v3827 = vpop.permute.xlu0 %3826
        %3828 = vrot.lane.b32.xlu0 %v677, 72
        %v3829 = vpop.permute.xlu0 %3828
        %3830 = vrot.lane.b32.xlu0 %v682, 72
        %v3831 = vpop.permute.xlu0 %3830
        %3832 = vrot.lane.b32.xlu0 %v687, 72
        %v3833 = vpop.permute.xlu0 %3832
        %3834 = vrot.lane.b32.xlu0 %v692, 72
        %v3835 = vpop.permute.xlu0 %3834
        %v3836 = vsel %vm695, %v3805, 0
        %v3838 = vsel %vm695, %v3807, 0
        %v3840 = vsel %vm695, %v3809, 0
        %v3842 = vsel %vm695, %v3811, 0
        %v3844 = vsel %vm695, %v3813, 0
        %v3846 = vsel %vm695, %v3815, 0
        %v3848 = vsel %vm695, %v3817, 0
        %v3850 = vsel %vm695, %v3819, 0
        %v3852 = vsel %vm695, %v3821, 0
        %v3854 = vsel %vm695, %v3823, 0
        %v3856 = vsel %vm695, %v3825, 0
        %v3858 = vsel %vm695, %v3827, 0
        %v3860 = vsel %vm695, %v3829, 0
        %v3862 = vsel %vm695, %v3831, 0
        %v3864 = vsel %vm695, %v3833, 0
        %v3866 = vsel %vm695, %v3835, 0
        %3868 = vmatprep.subr.mxu0 0.0
        %3869 = vmatpush1.xpose.msra.mxu0 %v3852
        %3870 = vmatprep.subr.mxu0 0.0
        %3871 = vmatpush1.xpose.msra.mxu0 %v3854
        %3872 = vmatprep.subr.mxu0 0.0
        %3873 = vmatpush1.xpose.msra.mxu0 %v3856
        %3874 = vmatprep.subr.mxu0 0.0
        %3875 = vmatpush1.xpose.msra.mxu0 %v3858
        %3876 = vmatprep.subr.mxu0 0.0
        %3877 = vmatpush1.xpose.msra.mxu0 %v3860
        %3878 = vmatprep.subr.mxu0 0.0
        %3879 = vmatpush1.xpose.msra.mxu0 %v3862
        %3880 = vmatprep.subr.mxu0 0.0
        %3881 = vmatpush1.xpose.msra.mxu0 %v3864
        %3882 = vmatprep.subr.mxu0 0.0
        %3883 = vmatpush1.xpose.msra.mxu0 %v3866
        %3884 = vmatprep.subr.mxu0 0.0
        %3885 = vmatpush1.xpose.msra.mxu0 0.0
        %3886 = vmatprep.subr.mxu0 0.0
        %3887 = vmatpush1.xpose.msra.mxu0 0.0
        %3888 = vmatprep.subr.mxu0 0.0
        %3889 = vmatpush1.xpose.msra.mxu0 0.0
        %3890 = vmatprep.subr.mxu0 0.0
        %3891 = vmatpush1.xpose.msra.mxu0 0.0
        %3892 = vmatprep.subr.mxu0 0.0
        %3893 = vmatpush1.xpose.msra.mxu0 0.0
        %3894 = vmatprep.subr.mxu0 0.0
        %3895 = vmatpush1.xpose.msra.mxu0 0.0
        %3896 = vmatprep.subr.mxu0 0.0
        %3897 = vmatpush1.xpose.msra.mxu0 0.0
        %3898 = vmatprep.subr.mxu0 0.0
        %3899 = vmatpush1.xpose.msra.mxu0 0.0
        %3900 = vmatprep.subr.mxu0 0.0
        %3901 = vmatpush1.xpose.msra.mxu0 0.0
        %3902 = vmatprep.subr.mxu0 0.0
        %3903 = vmatpush1.xpose.msra.mxu0 0.0
        %3904 = vmatprep.subr.mxu0 0.0
        %3905 = vmatpush1.xpose.msra.mxu0 0.0
        %3906 = vmatprep.subr.mxu0 0.0
        %3907 = vmatpush1.xpose.msra.mxu0 0.0
        %3908 = vmatprep.subr.mxu0 0.0
        %3909 = vmatpush1.xpose.msra.mxu0 0.0
        %3910 = vmatprep.subr.mxu0 0.0
        %3911 = vmatpush1.xpose.msra.mxu0 0.0
        %3912 = vmatprep.subr.mxu0 0.0
        %3913 = vmatpush1.xpose.msra.mxu0 0.0
        %3914 = vmatprep.subr.mxu0 0.0
        %3915 = vmatpush1.xpose.msra.mxu0 0.0
        %3916 = vmatprep.subr.mxu0 0.0
        %3917 = vmatpush1.xpose.msra.mxu0 0.0
        %3918 = vmatprep.subr.mxu0 0.0
        %3919 = vmatpush1.xpose.msra.mxu0 0.0
        %3920 = vmatprep.subr.mxu0 0.0
        %3921 = vmatpush1.xpose.msra.mxu0 0.0
        %3922 = vmatprep.subr.mxu0 0.0
        %3923 = vmatpush1.xpose.msra.mxu0 0.0
        %3924 = vmatprep.subr.mxu0 0.0
        %3925 = vmatpush1.xpose.msra.mxu0 0.0
        %3926 = vmatprep.subr.mxu0 0.0
        %3927 = vmatpush1.xpose.msra.mxu0 0.0
        %3928 = vmatprep.subr.mxu0 0.0
        %3929 = vmatpush1.xpose.msra.mxu0 0.0
        %3930 = vmatprep.subr.mxu0 0.0
        %3931 = vmatpush1.xpose.msra.mxu0 0.0
        %3932 = vmatprep.mubr.f32.mxu0 0.0
        %3933 = vmatmul.mubr.f32.gmra.mrb[0].mxu0 %v3836
        %v3934 = vpop.f32.mrb[0].mxu0
        %v3935 = vadd.f32 0.0, %v3934
        %v3936 = vpop.f32.mrb[0].mxu0
        %3937 = vmatprep.mubr.f32.mxu0 0.0
        %3938 = vmatmul.mubr.f32.gmra.mrb[0].mxu0 %v3838
        %v3939 = vpop.f32.mrb[0].mxu0
        %v3940 = vadd.f32 0.0, %v3939
        %v3941 = vpop.f32.mrb[0].mxu0
        %3942 = vmatprep.mubr.f32.mxu0 0.0
        %3943 = vmatmul.mubr.f32.gmra.mrb[0].mxu0 %v3840
        %v3944 = vpop.f32.mrb[0].mxu0
        %v3945 = vadd.f32 0.0, %v3944
        %v3946 = vpop.f32.mrb[0].mxu0
        %3947 = vmatprep.mubr.f32.mxu0 0.0
        %3948 = vmatmul.mubr.f32.gmra.mrb[0].mxu0 %v3842
        %v3949 = vpop.f32.mrb[0].mxu0
        %v3950 = vadd.f32 0.0, %v3949
        %v3951 = vpop.f32.mrb[0].mxu0
        %3952 = vmatprep.mubr.f32.mxu0 0.0
        %3953 = vmatmul.mubr.f32.gmra.mrb[0].mxu0 %v3844
        %v3954 = vpop.f32.mrb[0].mxu0
        %v3955 = vadd.f32 0.0, %v3954
        %v3956 = vpop.f32.mrb[0].mxu0
        %3957 = vmatprep.mubr.f32.mxu0 0.0
        %3958 = vmatmul.mubr.f32.gmra.mrb[0].mxu0 %v3846
        %v3959 = vpop.f32.mrb[0].mxu0
        %v3960 = vadd.f32 0.0, %v3959
        %v3961 = vpop.f32.mrb[0].mxu0
        %3962 = vmatprep.mubr.f32.mxu0 0.0
        %3963 = vmatmul.mubr.f32.gmra.mrb[0].mxu0 %v3848
        %v3964 = vpop.f32.mrb[0].mxu0
        %v3965 = vadd.f32 0.0, %v3964
        %v3966 = vpop.f32.mrb[0].mxu0
        %3967 = vmatprep.mubr.f32.mxu0 0.0
        %3968 = vmatmul.mubr.f32.gmra.mrb[0].mxu0 %v3850
        %v3969 = vpop.f32.mrb[0].mxu0
        %v3970 = vadd.f32 0.0, %v3969
        %v3971 = vpop.f32.mrb[0].mxu0
        %3972 = vdwg.mxu0
        %v3973 = vsel %vm413, %v3935, -inf
        %3974 = vmax.xlane.f32.xlu0 %v3973
        %v3975 = vpop.xlane.xlu0 %3974
        %v3976 = vsel %vm413, %v3940, -inf
        %3977 = vmax.xlane.f32.xlu0 %v3976
        %v3978 = vpop.xlane.xlu0 %3977
        %v3979 = vsel %vm413, %v3945, -inf
        %3980 = vmax.xlane.f32.xlu0 %v3979
        %v3981 = vpop.xlane.xlu0 %3980
        %v3982 = vsel %vm413, %v3950, -inf
        %3983 = vmax.xlane.f32.xlu0 %v3982
        %v3984 = vpop.xlane.xlu0 %3983
        %v3985 = vsel %vm413, %v3955, -inf
        %3986 = vmax.xlane.f32.xlu0 %v3985
        %v3987 = vpop.xlane.xlu0 %3986
        %v3988 = vsel %vm413, %v3960, -inf
        %3989 = vmax.xlane.f32.xlu0 %v3988
        %v3990 = vpop.xlane.xlu0 %3989
        %v3991 = vsel %vm413, %v3965, -inf
        %3992 = vmax.xlane.f32.xlu0 %v3991
        %v3993 = vpop.xlane.xlu0 %3992
        %v3994 = vsel %vm413, %v3970, -inf
        %3995 = vmax.xlane.f32.xlu0 %v3994
        %v3996 = vpop.xlane.xlu0 %3995
        %v3997 = vsub.f32 %v3935, %v3975
        %v3998 = vsub.f32 %v3940, %v3978
        %v3999 = vsub.f32 %v3945, %v3981
        %v4000 = vsub.f32 %v3950, %v3984
        %v4001 = vsub.f32 %v3955, %v3987
        %v4002 = vsub.f32 %v3960, %v3990
        %v4003 = vsub.f32 %v3965, %v3993
        %v4004 = vsub.f32 %v3970, %v3996
        %v4005 = vmul.f32 %v3997, 1.442695
        %v4006 = vpow.pop %v4005
        %v4007 = vmul.f32 %v3998, 1.442695
        %v4008 = vpow.pop %v4007
        %v4009 = vmul.f32 %v3999, 1.442695
        %v4010 = vpow.pop %v4009
        %v4011 = vmul.f32 %v4000, 1.442695
        %v4012 = vpow.pop %v4011
        %v4013 = vmul.f32 %v4001, 1.442695
        %v4014 = vpow.pop %v4013
        %v4015 = vmul.f32 %v4002, 1.442695
        %v4016 = vpow.pop %v4015
        %v4017 = vmul.f32 %v4003, 1.442695
        %v4018 = vpow.pop %v4017
        %v4019 = vmul.f32 %v4004, 1.442695
        %v4020 = vpow.pop %v4019
        %v4021 = vsel %vm413, %v4006, 0.0
        %4022 = vadd.xlane.f32.xlu0 %v4021
        %v4023 = vpop.xlane.xlu0 %4022
        %v4024 = vsel %vm413, %v4008, 0.0
        %4025 = vadd.xlane.f32.xlu0 %v4024
        %v4026 = vpop.xlane.xlu0 %4025
        %v4027 = vsel %vm413, %v4010, 0.0
        %4028 = vadd.xlane.f32.xlu0 %v4027
        %v4029 = vpop.xlane.xlu0 %4028
        %v4030 = vsel %vm413, %v4012, 0.0
        %4031 = vadd.xlane.f32.xlu0 %v4030
        %v4032 = vpop.xlane.xlu0 %4031
        %v4033 = vsel %vm413, %v4014, 0.0
        %4034 = vadd.xlane.f32.xlu0 %v4033
        %v4035 = vpop.xlane.xlu0 %4034
        %v4036 = vsel %vm413, %v4016, 0.0
        %4037 = vadd.xlane.f32.xlu0 %v4036
        %v4038 = vpop.xlane.xlu0 %4037
        %v4039 = vsel %vm413, %v4018, 0.0
        %4040 = vadd.xlane.f32.xlu0 %v4039
        %v4041 = vpop.xlane.xlu0 %4040
        %v4042 = vsel %vm413, %v4020, 0.0
        %4043 = vadd.xlane.f32.xlu0 %v4042
        %v4044 = vpop.xlane.xlu0 %4043
        %v4045 = vrcp.pop %v4023
        %v4046 = vrcp.pop %v4026
        %v4047 = vrcp.pop %v4029
        %v4048 = vrcp.pop %v4032
        %v4049 = vrcp.pop %v4035
        %v4050 = vrcp.pop %v4038
        %v4051 = vrcp.pop %v4041
        %v4052 = vrcp.pop %v4044
        %v4053 = vmul.f32 %v4006, %v4045
        %v4054 = vmul.f32 %v4008, %v4046
        %v4055 = vmul.f32 %v4010, %v4047
        %v4056 = vmul.f32 %v4012, %v4048
        %v4057 = vmul.f32 %v4014, %v4049
        %v4058 = vmul.f32 %v4016, %v4050
        %v4059 = vmul.f32 %v4018, %v4051
        %v4060 = vmul.f32 %v4020, %v4052
        %4061 = vrot.lane.b32.xlu0 %v657, 8
        %v4062 = vpop.permute.xlu0 %4061
        %4063 = vrot.lane.b32.xlu0 %v662, 8
        %v4064 = vpop.permute.xlu0 %4063
        %4065 = vrot.lane.b32.xlu0 %v667, 8
        %v4066 = vpop.permute.xlu0 %4065
        %4067 = vrot.lane.b32.xlu0 %v672, 8
        %v4068 = vpop.permute.xlu0 %4067
        %4069 = vrot.lane.b32.xlu0 %v677, 8
        %v4070 = vpop.permute.xlu0 %4069
        %4071 = vrot.lane.b32.xlu0 %v682, 8
        %v4072 = vpop.permute.xlu0 %4071
        %4073 = vrot.lane.b32.xlu0 %v687, 8
        %v4074 = vpop.permute.xlu0 %4073
        %4075 = vrot.lane.b32.xlu0 %v692, 8
        %v4076 = vpop.permute.xlu0 %4075
        %v4086 = vsel %vm413, %v4053, 0
        %v4089 = vsel %vm413, %v4054, 0
        %v4092 = vsel %vm413, %v4055, 0
        %v4095 = vsel %vm413, %v4056, 0
        %v4098 = vsel %vm413, %v4057, 0
        %v4101 = vsel %vm413, %v4058, 0
        %v4104 = vsel %vm413, %v4059, 0
        %v4107 = vsel %vm413, %v4060, 0
        %4109 = vmatprep.subr.mxu0 0.0
        %4110 = vmatpush1.msra.mxu0 %v4062
        %4111 = vmatprep.subr.mxu0 0.0
        %4112 = vmatpush1.msra.mxu0 %v4064
        %4113 = vmatprep.subr.mxu0 0.0
        %4114 = vmatpush1.msra.mxu0 %v4066
        %4115 = vmatprep.subr.mxu0 0.0
        %4116 = vmatpush1.msra.mxu0 %v4068
        %4117 = vmatprep.subr.mxu0 0.0
        %4118 = vmatpush1.msra.mxu0 %v4070
        %4119 = vmatprep.subr.mxu0 0.0
        %4120 = vmatpush1.msra.mxu0 %v4072
        %4121 = vmatprep.subr.mxu0 0.0
        %4122 = vmatpush1.msra.mxu0 %v4074
        %4123 = vmatprep.subr.mxu0 0.0
        %4124 = vmatpush1.msra.mxu0 %v4076
        %4125 = vmatprep.subr.mxu0 0.0
        %4126 = vmatpush1.msra.mxu0 0.0
        %4127 = vmatprep.subr.mxu0 0.0
        %4128 = vmatpush1.msra.mxu0 0.0
        %4129 = vmatprep.subr.mxu0 0.0
        %4130 = vmatpush1.msra.mxu0 0.0
        %4131 = vmatprep.subr.mxu0 0.0
        %4132 = vmatpush1.msra.mxu0 0.0
        %4133 = vmatprep.subr.mxu0 0.0
        %4134 = vmatpush1.msra.mxu0 0.0
        %4135 = vmatprep.subr.mxu0 0.0
        %4136 = vmatpush1.msra.mxu0 0.0
        %4137 = vmatprep.subr.mxu0 0.0
        %4138 = vmatpush1.msra.mxu0 0.0
        %4139 = vmatprep.subr.mxu0 0.0
        %4140 = vmatpush1.msra.mxu0 0.0
        %4141 = vmatprep.subr.mxu0 0.0
        %4142 = vmatpush1.msra.mxu0 0.0
        %4143 = vmatprep.subr.mxu0 0.0
        %4144 = vmatpush1.msra.mxu0 0.0
        %4145 = vmatprep.subr.mxu0 0.0
        %4146 = vmatpush1.msra.mxu0 0.0
        %4147 = vmatprep.subr.mxu0 0.0
        %4148 = vmatpush1.msra.mxu0 0.0
        %4149 = vmatprep.subr.mxu0 0.0
        %4150 = vmatpush1.msra.mxu0 0.0
        %4151 = vmatprep.subr.mxu0 0.0
        %4152 = vmatpush1.msra.mxu0 0.0
        %4153 = vmatprep.subr.mxu0 0.0
        %4154 = vmatpush1.msra.mxu0 0.0
        %4155 = vmatprep.subr.mxu0 0.0
        %4156 = vmatpush1.msra.mxu0 0.0
        %4157 = vmatprep.subr.mxu0 0.0
        %4158 = vmatpush1.msra.mxu0 0.0
        %4159 = vmatprep.subr.mxu0 0.0
        %4160 = vmatpush1.msra.mxu0 0.0
        %4161 = vmatprep.subr.mxu0 0.0
        %4162 = vmatpush1.msra.mxu0 0.0
        %4163 = vmatprep.subr.mxu0 0.0
        %4164 = vmatpush1.msra.mxu0 0.0
        %4165 = vmatprep.subr.mxu0 0.0
        %4166 = vmatpush1.msra.mxu0 0.0
        %4167 = vmatprep.subr.mxu0 0.0
        %4168 = vmatpush1.msra.mxu0 0.0
        %4169 = vmatprep.subr.mxu0 0.0
        %4170 = vmatpush1.msra.mxu0 0.0
        %4171 = vmatprep.subr.mxu0 0.0
        %4172 = vmatpush1.msra.mxu0 0.0
        %4173 = vmatprep.mubr.f32.mxu0 0.0
        %4174 = vmatmul.mubr.f32.gmra.mrb[0].mxu0 %v4086
        %v4175 = vpop.f32.mrb[0].mxu0
        %v4176 = vadd.f32 0.0, %v4175
        %v4177 = vpop.f32.mrb[0].mxu0
        %4178 = vmatprep.mubr.f32.mxu0 0.0
        %4179 = vmatmul.mubr.f32.gmra.mrb[0].mxu0 %v4089
        %v4180 = vpop.f32.mrb[0].mxu0
        %v4181 = vadd.f32 0.0, %v4180
        %v4182 = vpop.f32.mrb[0].mxu0
        %4183 = vmatprep.mubr.f32.mxu0 0.0
        %4184 = vmatmul.mubr.f32.gmra.mrb[0].mxu0 %v4092
        %v4185 = vpop.f32.mrb[0].mxu0
        %v4186 = vadd.f32 0.0, %v4185
        %v4187 = vpop.f32.mrb[0].mxu0
        %4188 = vmatprep.mubr.f32.mxu0 0.0
        %4189 = vmatmul.mubr.f32.gmra.mrb[0].mxu0 %v4095
        %v4190 = vpop.f32.mrb[0].mxu0
        %v4191 = vadd.f32 0.0, %v4190
        %v4192 = vpop.f32.mrb[0].mxu0
        %4193 = vmatprep.mubr.f32.mxu0 0.0
        %4194 = vmatmul.mubr.f32.gmra.mrb[0].mxu0 %v4098
        %v4195 = vpop.f32.mrb[0].mxu0
        %v4196 = vadd.f32 0.0, %v4195
        %v4197 = vpop.f32.mrb[0].mxu0
        %4198 = vmatprep.mubr.f32.mxu0 0.0
        %4199 = vmatmul.mubr.f32.gmra.mrb[0].mxu0 %v4101
        %v4200 = vpop.f32.mrb[0].mxu0
        %v4201 = vadd.f32 0.0, %v4200
        %v4202 = vpop.f32.mrb[0].mxu0
        %4203 = vmatprep.mubr.f32.mxu0 0.0
        %4204 = vmatmul.mubr.f32.gmra.mrb[0].mxu0 %v4104
        %v4205 = vpop.f32.mrb[0].mxu0
        %v4206 = vadd.f32 0.0, %v4205
        %v4207 = vpop.f32.mrb[0].mxu0
        %4208 = vmatprep.mubr.f32.mxu0 0.0
        %4209 = vmatmul.mubr.f32.gmra.mrb[0].mxu0 %v4107
        %v4210 = vpop.f32.mrb[0].mxu0
        %v4211 = vadd.f32 0.0, %v4210
        %v4212 = vpop.f32.mrb[0].mxu0
        %4213 = vdwg.mxu0
        %4222 = vrot.lane.b32.xlu0 %v4176, 56
        %v4223 = vpop.permute.xlu0 %4222
        %4224 = vrot.lane.b32.xlu0 %v4181, 56
        %v4225 = vpop.permute.xlu0 %4224
        %4226 = vrot.lane.b32.xlu0 %v4186, 56
        %v4227 = vpop.permute.xlu0 %4226
        %4228 = vrot.lane.b32.xlu0 %v4191, 56
        %v4229 = vpop.permute.xlu0 %4228
        %4230 = vrot.lane.b32.xlu0 %v4196, 56
        %v4231 = vpop.permute.xlu0 %4230
        %4232 = vrot.lane.b32.xlu0 %v4201, 56
        %v4233 = vpop.permute.xlu0 %4232
        %4234 = vrot.lane.b32.xlu0 %v4206, 56
        %v4235 = vpop.permute.xlu0 %4234
        %4236 = vrot.lane.b32.xlu0 %v4211, 56
        %v4237 = vpop.permute.xlu0 %4236
        %vm4246 = vcmask 523712
        %4247 = vst.msk [vmem:[#allocation2] sm:$0xff] %vm4246, %v4223
        %4248 = vst.msk [vmem:[#allocation2 + $0x8] sm:$0xff] %vm4246, %v4225
        %4249 = vst.msk [vmem:[#allocation2 + $0x10] sm:$0xff] %vm4246, %v4227
        %4250 = vst.msk [vmem:[#allocation2 + $0x18] sm:$0xff] %vm4246, %v4229
        %4251 = vst.msk [vmem:[#allocation2 + $0x20] sm:$0xff] %vm4246, %v4231
        %4252 = vst.msk [vmem:[#allocation2 + $0x28] sm:$0xff] %vm4246, %v4233
        %4253 = vst.msk [vmem:[#allocation2 + $0x30] sm:$0xff] %vm4246, %v4235
        %4254 = vst.msk [vmem:[#allocation2 + $0x38] sm:$0xff] %vm4246, %v4237
        %v4255 = vld [vmem:[#allocation2] sm:$0xff]
        %v4256 = vld [vmem:[#allocation2 + $0x8] sm:$0xff]
        %v4257 = vld [vmem:[#allocation2 + $0x10] sm:$0xff]
        %v4258 = vld [vmem:[#allocation2 + $0x18] sm:$0xff]
        %v4259 = vld [vmem:[#allocation2 + $0x20] sm:$0xff]
        %v4260 = vld [vmem:[#allocation2 + $0x28] sm:$0xff]
        %v4261 = vld [vmem:[#allocation2 + $0x30] sm:$0xff]
        %v4262 = vld [vmem:[#allocation2 + $0x38] sm:$0xff]
        %v4263 = vld [vmem:[#allocation11] sm:$0xff]
        %v4264 = vld [vmem:[#allocation11 + $0x8] sm:$0xff]
        %v4265 = vld [vmem:[#allocation11 + $0x10] sm:$0xff]
        %v4266 = vld [vmem:[#allocation11 + $0x18] sm:$0xff]
        %v4267 = vld [vmem:[#allocation11 + $0x20] sm:$0xff]
        %v4268 = vld [vmem:[#allocation11 + $0x28] sm:$0xff]
        %v4269 = vld [vmem:[#allocation11 + $0x30] sm:$0xff]
        %v4270 = vld [vmem:[#allocation11 + $0x38] sm:$0xff]
        %v4271 = vld [vmem:[%s7] sm:$0x1]
        %v4273 = vlaneseq
        %v4274 = vshrl.u32 %v4273, 7
        %v4275 = vsub.s32 0, %v4274
        %v4276 = vrot.slane %v4271, %v4275
        %v4279 = vsel %vm413, %v4255, 0
        %v4282 = vsel %vm413, %v4256, 0
        %v4285 = vsel %vm413, %v4257, 0
        %v4288 = vsel %vm413, %v4258, 0
        %v4291 = vsel %vm413, %v4259, 0
        %v4294 = vsel %vm413, %v4260, 0
        %v4297 = vsel %vm413, %v4261, 0
        %v4300 = vsel %vm413, %v4262, 0
        %4302 = vmatprep.subr.mxu0 0.0
        %4303 = vmatpush1.msra.mxu0 %v4263
        %4304 = vmatprep.subr.mxu0 0.0
        %4305 = vmatpush1.msra.mxu0 %v4264
        %4306 = vmatprep.subr.mxu0 0.0
        %4307 = vmatpush1.msra.mxu0 %v4265
        %4308 = vmatprep.subr.mxu0 0.0
        %4309 = vmatpush1.msra.mxu0 %v4266
        %4310 = vmatprep.subr.mxu0 0.0
        %4311 = vmatpush1.msra.mxu0 %v4267
        %4312 = vmatprep.subr.mxu0 0.0
        %4313 = vmatpush1.msra.mxu0 %v4268
        %4314 = vmatprep.subr.mxu0 0.0
        %4315 = vmatpush1.msra.mxu0 %v4269
        %4316 = vmatprep.subr.mxu0 0.0
        %4317 = vmatpush1.msra.mxu0 %v4270
        %4318 = vmatprep.subr.mxu0 0.0
        %4319 = vmatpush1.msra.mxu0 0.0
        %4320 = vmatprep.subr.mxu0 0.0
        %4321 = vmatpush1.msra.mxu0 0.0
        %4322 = vmatprep.subr.mxu0 0.0
        %4323 = vmatpush1.msra.mxu0 0.0
        %4324 = vmatprep.subr.mxu0 0.0
        %4325 = vmatpush1.msra.mxu0 0.0
        %4326 = vmatprep.subr.mxu0 0.0
        %4327 = vmatpush1.msra.mxu0 0.0
        %4328 = vmatprep.subr.mxu0 0.0
        %4329 = vmatpush1.msra.mxu0 0.0
        %4330 = vmatprep.subr.mxu0 0.0
        %4331 = vmatpush1.msra.mxu0 0.0
        %4332 = vmatprep.subr.mxu0 0.0
        %4333 = vmatpush1.msra.mxu0 0.0
        %4334 = vmatprep.subr.mxu0 0.0
        %4335 = vmatpush1.msra.mxu0 0.0
        %4336 = vmatprep.subr.mxu0 0.0
        %4337 = vmatpush1.msra.mxu0 0.0
        %4338 = vmatprep.subr.mxu0 0.0
        %4339 = vmatpush1.msra.mxu0 0.0
        %4340 = vmatprep.subr.mxu0 0.0
        %4341 = vmatpush1.msra.mxu0 0.0
        %4342 = vmatprep.subr.mxu0 0.0
        %4343 = vmatpush1.msra.mxu0 0.0
        %4344 = vmatprep.subr.mxu0 0.0
        %4345 = vmatpush1.msra.mxu0 0.0
        %4346 = vmatprep.subr.mxu0 0.0
        %4347 = vmatpush1.msra.mxu0 0.0
        %4348 = vmatprep.subr.mxu0 0.0
        %4349 = vmatpush1.msra.mxu0 0.0
        %4350 = vmatprep.subr.mxu0 0.0
        %4351 = vmatpush1.msra.mxu0 0.0
        %4352 = vmatprep.subr.mxu0 0.0
        %4353 = vmatpush1.msra.mxu0 0.0
        %4354 = vmatprep.subr.mxu0 0.0
        %4355 = vmatpush1.msra.mxu0 0.0
        %4356 = vmatprep.subr.mxu0 0.0
        %4357 = vmatpush1.msra.mxu0 0.0
        %4358 = vmatprep.subr.mxu0 0.0
        %4359 = vmatpush1.msra.mxu0 0.0
        %4360 = vmatprep.subr.mxu0 0.0
        %4361 = vmatpush1.msra.mxu0 0.0
        %4362 = vmatprep.subr.mxu0 0.0
        %4363 = vmatpush1.msra.mxu0 0.0
        %4364 = vmatprep.subr.mxu0 0.0
        %4365 = vmatpush1.msra.mxu0 0.0
        %4366 = vmatprep.mubr.f32.mxu0 0.0
        %4367 = vmatmul.mubr.f32.gmra.mrb[0].mxu0 %v4279
        %v4368 = vpop.f32.mrb[0].mxu0
        %v4369 = vadd.f32 %v4276, %v4368
        %v4370 = vpop.f32.mrb[0].mxu0
        %4371 = vmatprep.mubr.f32.mxu0 0.0
        %4372 = vmatmul.mubr.f32.gmra.mrb[0].mxu0 %v4282
        %v4373 = vpop.f32.mrb[0].mxu0
        %v4374 = vadd.f32 %v4276, %v4373
        %v4375 = vpop.f32.mrb[0].mxu0
        %4376 = vmatprep.mubr.f32.mxu0 0.0
        %4377 = vmatmul.mubr.f32.gmra.mrb[0].mxu0 %v4285
        %v4378 = vpop.f32.mrb[0].mxu0
        %v4379 = vadd.f32 %v4276, %v4378
        %v4380 = vpop.f32.mrb[0].mxu0
        %4381 = vmatprep.mubr.f32.mxu0 0.0
        %4382 = vmatmul.mubr.f32.gmra.mrb[0].mxu0 %v4288
        %v4383 = vpop.f32.mrb[0].mxu0
        %v4384 = vadd.f32 %v4276, %v4383
        %v4385 = vpop.f32.mrb[0].mxu0
        %4386 = vmatprep.mubr.f32.mxu0 0.0
        %4387 = vmatmul.mubr.f32.gmra.mrb[0].mxu0 %v4291
        %v4388 = vpop.f32.mrb[0].mxu0
        %v4389 = vadd.f32 %v4276, %v4388
        %v4390 = vpop.f32.mrb[0].mxu0
        %4391 = vmatprep.mubr.f32.mxu0 0.0
        %4392 = vmatmul.mubr.f32.gmra.mrb[0].mxu0 %v4294
        %v4393 = vpop.f32.mrb[0].mxu0
        %v4394 = vadd.f32 %v4276, %v4393
        %v4395 = vpop.f32.mrb[0].mxu0
        %4396 = vmatprep.mubr.f32.mxu0 0.0
        %4397 = vmatmul.mubr.f32.gmra.mrb[0].mxu0 %v4297
        %v4398 = vpop.f32.mrb[0].mxu0
        %v4399 = vadd.f32 %v4276, %v4398
        %v4400 = vpop.f32.mrb[0].mxu0
        %4401 = vmatprep.mubr.f32.mxu0 0.0
        %4402 = vmatmul.mubr.f32.gmra.mrb[0].mxu0 %v4300
        %v4403 = vpop.f32.mrb[0].mxu0
        %v4404 = vadd.f32 %v4276, %v4403
        %v4405 = vpop.f32.mrb[0].mxu0
        %4406 = vdwg.mxu0
        %4407 = vst.msk [vmem:[%s381] sm:$0xff] %vm413, %v4369
        %4408 = vst.msk [vmem:[%s381 + $0x8] sm:$0xff] %vm413, %v4374
        %4409 = vst.msk [vmem:[%s381 + $0x10] sm:$0xff] %vm413, %v4379
        %4410 = vst.msk [vmem:[%s381 + $0x18] sm:$0xff] %vm413, %v4384
        %4411 = vst.msk [vmem:[%s381 + $0x20] sm:$0xff] %vm413, %v4389
        %4412 = vst.msk [vmem:[%s381 + $0x28] sm:$0xff] %vm413, %v4394
        %4413 = vst.msk [vmem:[%s381 + $0x30] sm:$0xff] %vm413, %v4399
        %4414 = vst.msk [vmem:[%s381 + $0x38] sm:$0xff] %vm413, %v4404
        %s4415 = sand.u32 %s208, 1
        %s4416 = scalar_lea.sflag [#allocation5], %s4415
        %s4417 = sand.u32 %s208, 1
        %s4418 = smul.addr %s4417, 64
        %s4419 = scalar_lea.vmem [#allocation12], %s4418
        // Predicated region
        $region73: #{tpu_custom_call.1} parent=51 // pred_check
          %p4420 = pneg %p218
        $region74: #{tpu_custom_call.1} parent=51 // pred_check_branch
          %4422 = sbr.rel (%p4420) target = $region76
        $region75: #{tpu_custom_call.1} parent=51 // pred_region
          %s4424 = ssub.s32 1024, 1024
          %4425 = vsyncadd %s4416, %s4424
          %s4426 = smul.addr %s27, 8
          %s4427 = smul.addr %s4426, 128
          %s4428 = scalar_lea.hbm %s8, %s4427
          %s4429 = sshll.u32 %s4419, 4
          %s4430 = int_to_ptr.vmem [resolvable:$true] %s4429
          %4435 = dma.vmem_to_hbm [thread:$0]  %s4430, 1024, %s4428, %s4416, 128, 128, 8
        $region76: #{tpu_custom_call.1} parent=51 // pred_fallthru
          _
      $region52: #{tpu_custom_call.1} parent=5 // pred_fallthru
        _
      %p4436 = scmp.le.s32.totalorder 2, %s22
      // Predicated region
      $region77: #{tpu_custom_call.1} parent=5 // pred_check
        %p4437 = pneg %p4436
      $region78: #{tpu_custom_call.1} parent=5 // pred_check_branch
        %4439 = sbr.rel (%p4437) target = $region80
      $region79: #{tpu_custom_call.1} parent=5 // pred_region
        %s4440 = ssub.s32 %s22, 2
        // Predicated region
        $region81: #{tpu_custom_call.1} parent=79 // pred_check
          %p4441 = pneg %p224
        $region82: #{tpu_custom_call.1} parent=79 // pred_check_branch
          %4443 = sbr.rel (%p4441) target = $region84
        $region83: #{tpu_custom_call.1} parent=79 // pred_region
          %s4444 = sand.u32 %s209, 1
          %s4445 = scalar_lea.sflag [#allocation5], %s4444
          %s4446 = sand.u32 %s209, 1
          %s4447 = smul.addr %s4446, 64
          %s4448 = scalar_lea.vmem [#allocation12], %s4447
          %4449 = dma.done %s4445, 1024
        $region84: #{tpu_custom_call.1} parent=79 // pred_fallthru
          _
      $region80: #{tpu_custom_call.1} parent=5 // pred_fallthru
        _
    $region6: #{tpu_custom_call.1} parent=1 // loop_footer
      %s26 = sadd.s32 1, %s22
    $region7: #{tpu_custom_call.1} parent=1 // loop_footer_branch
      %21 = sbr.rel target = $region3
    $region8: #{tpu_custom_call.1} parent=1 // loop_exit
      _
    %4450 = vsyncpa [#allocation4], 1
    %s4451 = scalar_lea.sflag [#allocation4], 1
    %4452 = vsyncpa %s4451, 1
    %4453 = vsyncpa [#allocation7], 1
    %4454 = vsyncpa [#allocation10], 1
    %4455 = vsyncpa [#allocation5], 1
    %s4456 = scalar_lea.sflag [#allocation5], 1
    %4457 = vsyncpa %s4456, 1

</llo_original>
